<compile_context>
chip_gen: v7x
topology: tpu7x:2x2x1
jax: 0.10.0
libtpu: 0.0.40
codegen_flags: <defaults>
</compile_context>

<pallas_src>
import functools

import numpy as np
import jax
import jax.numpy as jnp
from jax import lax
from jax.experimental import pallas as pl
from jax.experimental.pallas import tpu as pltpu

EPS = 1e-5     # PyTorch BatchNorm2d default eps
LEAK = 0.2     # LeakyReLU negative slope


# ----------------------------------------------------------------------------
# Fused forward kernel
# ----------------------------------------------------------------------------
def _make_generator_kernel(B, ngf, nc, img_size):
    c0 = 2 * ngf
    s0 = img_size // 4
    ss = s0 * s0
    s1, s2 = 2 * s0, img_size
    PI1, PI2 = (s1 + 1) * (s1 + 1), (s2 + 1) * (s2 + 1)   # per-image padded len
    Lpad1, Lpad2 = B * PI1, B * PI2
    MARG = s2 + 2            # covers the largest tap offset (W+2) of any conv

    def _bn(x, n, gamma, beta, mask):
        # training-mode batch stats; `mask` (1, L) zeroes layout-gap positions
        xm = x if mask is None else x * mask
        s = jnp.sum(xm, axis=1, keepdims=True)
        sq = jnp.sum(xm * xm, axis=1, keepdims=True)
        mean = s * (1.0 / n)
        var = sq * (1.0 / n) - mean * mean
        inv = lax.rsqrt(var + EPS)
        if gamma is None:                                   # affine=False
            return (x - mean) * inv
        scale = gamma * inv
        return x * scale + (beta - mean * scale)

    def _conv3x3(ext_ref, wt_ref, b_ref, cin, W, L):
        # ext_ref holds the bf16 activation in the zero-padded flat layout,
        # with MARG zero lanes of margin on each side.  Each of the 9 taps is
        # a static shifted-window load + one small MXU matmul, accumulated f32.
        stride = W + 1
        acc = None
        t = 0
        for dy in (-1, 0, 1):
            for dx in (-1, 0, 1):
                off = MARG + dy * stride + dx
                win = ext_ref[0:cin, off:off + L]           # (cin, L) bf16
                part = jnp.dot(wt_ref[t], win,
                               preferred_element_type=jnp.float32)
                acc = part if acc is None else acc + part
                t += 1
        return acc + b_ref[...]                             # bias (Cout, 1)

    def kernel(zt_ref, w1_ref, b1_ref, a_ref, msk_ref, rep_ref, g0_ref, be0_ref,
               u1_ref, wt1_ref, bc1_ref, g1_ref, be1_ref,
               u2_ref, wt2_ref, bc2_ref, g2_ref, be2_ref,
               wt3_ref, bc3_ref, gm1_ref, gm2_ref,
               o_ref, ext_ref):
        # Zero the padded/margined staging buffer ONCE: gaps and margins feed
        # the conv taps and the masked BN statistics, so they must be finite 0.
        ext_ref[...] = jnp.zeros(ext_ref.shape, ext_ref.dtype)

        # ---- l1: Linear(nz -> c0*s0*s0), feature-major ----------------------
        lin = jnp.dot(w1_ref[...], zt_ref[...],
                      preferred_element_type=jnp.float32) + b1_ref[...]  # (feat, B)

        # ---- relayout to channel-major (c0, B*ss) via exact 0/1 matmuls -----
        bcst = jnp.dot(lin.astype(jnp.bfloat16), rep_ref[...],
                       preferred_element_type=jnp.float32)               # (feat, B*ss)
        d = (bcst * msk_ref[...]).astype(jnp.bfloat16)
        x0 = jnp.dot(a_ref[...], d, preferred_element_type=jnp.float32)  # (c0, B*ss)

        # ---- conv_blocks0: BatchNorm2d(c0) ----------------------------------
        x0 = _bn(x0, float(B * ss), g0_ref[...], be0_ref[...], None)

        # ---- nearest x2 upsample -> zero-padded s1 layout, staged as bf16 ---
        for b in range(B):
            blk = x0[:, b * ss:(b + 1) * ss].astype(jnp.bfloat16)
            up = jnp.dot(blk, u1_ref[...], preferred_element_type=jnp.float32)
            ext_ref[0:c0, MARG + b * PI1:MARG + (b + 1) * PI1] = \
                up.astype(jnp.bfloat16)

        # ---- conv_blocks1: conv3x3 + BN + LeakyReLU -------------------------
        y = _conv3x3(ext_ref, wt1_ref, bc1_ref, c0, s1, Lpad1)           # (c0, Lpad1)
        y = _bn(y, float(B * s1 * s1), g1_ref[...], be1_ref[...], gm1_ref[...])
        y = jnp.maximum(y, LEAK * y)

        # ---- nearest x2 upsample -> zero-padded s2 layout -------------------
        for b in range(B):
            blk = y[:, b * PI1:(b + 1) * PI1].astype(jnp.bfloat16)
            up = jnp.dot(blk, u2_ref[...], preferred_element_type=jnp.float32)
            ext_ref[0:c0, MARG + b * PI2:MARG + (b + 1) * PI2] = \
                up.astype(jnp.bfloat16)

        # ---- conv_blocks2: conv + BN + LReLU + conv + tanh + BN(no affine) --
        y = _conv3x3(ext_ref, wt2_ref, bc2_ref, c0, s2, Lpad2)           # (ngf, Lpad2)
        y = _bn(y, float(B * s2 * s2), g2_ref[...], be2_ref[...], gm2_ref[...])
        y = jnp.maximum(y, LEAK * y)

        # stage conv3 input (gap-masked so the padding stays exactly zero)
        ext_ref[0:ngf, MARG:MARG + Lpad2] = (y * gm2_ref[...]).astype(jnp.bfloat16)
        y = _conv3x3(ext_ref, wt3_ref, bc3_ref, ngf, s2, Lpad2)          # (nc, Lpad2)
        y = jnp.tanh(y)
        o_ref[...] = _bn(y, float(B * s2 * s2), None, None, gm2_ref[...])

    return kernel


def generator_forward(z, kp, *, ngf, nc, img_size):
    B = z.shape[0]
    c0 = 2 * ngf
    s2 = img_size
    PI2 = (s2 + 1) * (s2 + 1)
    Lpad2 = B * PI2
    MARG = s2 + 2
    EXTW = MARG + Lpad2 + MARG

    kernel = _make_generator_kernel(B, ngf, nc, img_size)
    zt = jnp.transpose(z).astype(jnp.bfloat16)              # (nz, B)
    inputs = (zt, kp["w1"], kp["b1"], kp["A"], kp["msk"], kp["rep"],
              kp["g0"], kp["be0"],
              kp["u1"], kp["wt1"], kp["bc1"], kp["g1"], kp["be1"],
              kp["u2"], kp["wt2"], kp["bc2"], kp["g2"], kp["be2"],
              kp["wt3"], kp["bc3"], kp["gm1"], kp["gm2"])
    vmem = pl.BlockSpec(memory_space=pltpu.MemorySpace.VMEM)

    out = pl.pallas_call(
        kernel,
        out_shape=jax.ShapeDtypeStruct((nc, Lpad2), jnp.float32),
        in_specs=[vmem] * len(inputs),
        out_specs=vmem,
        scratch_shapes=[
            pltpu.VMEM((c0, EXTW), jnp.bfloat16),   # zero-padded conv staging
        ],
    )(*inputs)

    # (nc, B*(s2+1)*(s2+1)) padded layout -> (B, nc, s2, s2); tiny XLA relayout
    img = out.reshape(nc, B, s2 + 1, s2 + 1)[:, :, :s2, :s2]
    return jnp.transpose(img, (1, 0, 2, 3))


# ----------------------------------------------------------------------------
# Parameter setup (torch-style params, converted once to kernel layouts)
# ----------------------------------------------------------------------------
def init_params(key, nz, ngf, nc, img_size):
    s0 = img_size // 4
    c0 = 2 * ngf
    feat = c0 * s0 * s0
    ks = jax.random.split(key, 14)

    def nrm(k, shape, scale):
        return scale * jax.random.normal(k, shape, jnp.float32)

    return {
        "l1_w": nrm(ks[0], (feat, nz), 0.1),          # torch Linear weight (out, in)
        "l1_b": nrm(ks[1], (feat,), 0.05),
        "bn0_g": 1.0 + nrm(ks[2], (c0,), 0.1),
        "bn0_b": nrm(ks[3], (c0,), 0.1),
        "c1_w": nrm(ks[4], (c0, c0, 3, 3), 0.1),      # torch Conv2d (Cout,Cin,3,3)
        "c1_b": nrm(ks[5], (c0,), 0.05),
        "bn1_g": 1.0 + nrm(ks[6], (c0,), 0.1),
        "bn1_b": nrm(ks[7], (c0,), 0.1),
        "c2_w": nrm(ks[8], (ngf, c0, 3, 3), 0.1),
        "c2_b": nrm(ks[9], (ngf,), 0.05),
        "bn2_g": 1.0 + nrm(ks[10], (ngf,), 0.1),
        "bn2_b": nrm(ks[11], (ngf,), 0.1),
        "c3_w": nrm(ks[12], (nc, ngf, 3, 3), 0.1),
        "c3_b": nrm(ks[13], (nc,), 0.05),
    }


def prepare_params(params, B, ngf, nc, img_size):
    c0 = 2 * ngf
    s0 = img_size // 4
    ss = s0 * s0
    feat = c0 * ss
    s1, s2 = 2 * s0, img_size
    PI1, PI2 = (s1 + 1) * (s1 + 1), (s2 + 1) * (s2 + 1)

    # --- exact 0/1 selection matrices (relayout: (B, feat) -> (c0, B*ss)) ----
    f = np.arange(feat)
    A = np.zeros((c0, feat), np.float32)
    A[f // ss, f] = 1.0
    msk = np.zeros((feat, B * ss), np.float32)
    rep = np.zeros((B, B * ss), np.float32)
    for b in range(B):
        msk[f, b * ss + (f % ss)] = 1.0
        rep[b, b * ss:(b + 1) * ss] = 1.0

    # --- per-image (batch-independent) x2 nearest upsample + zero padding ----
    u1 = np.zeros((ss, PI1), np.float32)                 # compact s0 -> padded s1
    for y in range(s1):
        for x in range(s1):
            u1[(y // 2) * s0 + (x // 2), y * (s1 + 1) + x] = 1.0
    u2 = np.zeros((PI1, PI2), np.float32)                # padded s1 -> padded s2
    for y in range(s2):
        for x in range(s2):
            u2[(y // 2) * (s1 + 1) + (x // 2), y * (s2 + 1) + x] = 1.0

    def gapmask(H):
        m = np.zeros((1, B * (H + 1) * (H + 1)), np.float32)
        for b in range(B):
            base = b * (H + 1) * (H + 1)
            for y in range(H):
                m[0, base + y * (H + 1): base + y * (H + 1) + H] = 1.0
        return m

    def taps(w):   # (Cout, Cin, 3, 3) -> (9, Cout, Cin), tap t = ky*3+kx
        co, ci = w.shape[0], w.shape[1]
        return jnp.transpose(w, (2, 3, 0, 1)).reshape(9, co, ci).astype(jnp.bfloat16)

    def col(v):    # per-channel vector -> (C, 1) for sublane broadcast
        return v.reshape(-1, 1).astype(jnp.float32)

    bf = lambda a: jnp.asarray(a, jnp.bfloat16)
    f32 = lambda a: jnp.asarray(a, jnp.float32)

    return {
        "w1": params["l1_w"].astype(jnp.bfloat16),        # (feat, nz)
        "b1": col(params["l1_b"]),
        "A": bf(A), "msk": f32(msk), "rep": bf(rep),
        "g0": col(params["bn0_g"]), "be0": col(params["bn0_b"]),
        "u1": bf(u1),
        "wt1": taps(params["c1_w"]), "bc1": col(params["c1_b"]),
        "g1": col(params["bn1_g"]), "be1": col(params["bn1_b"]),
        "u2": bf(u2),
        "wt2": taps(params["c2_w"]), "bc2": col(params["c2_b"]),
        "g2": col(params["bn2_g"]), "be2": col(params["bn2_b"]),
        "wt3": taps(params["c3_w"]), "bc3": col(params["c3_b"]),
        "gm1": f32(gapmask(s1)), "gm2": f32(gapmask(s2)),
    }


# ----------------------------------------------------------------------------
# Pure-JAX (XLA) reference, mirroring the kernel's bf16 quantization points
# ----------------------------------------------------------------------------
def reference_forward(z, params, *, ngf, nc, img_size):
    B = z.shape[0]
    c0 = 2 * ngf
    s0 = img_size // 4
    bf = lambda a: a.astype(jnp.bfloat16)
    rnd = lambda a: a.astype(jnp.bfloat16).astype(jnp.float32)

    def bn(x, g, b):
        mean = jnp.mean(x, axis=(0, 2, 3), keepdims=True)
        var = jnp.mean((x - mean) ** 2, axis=(0, 2, 3), keepdims=True)
        y = (x - mean) * lax.rsqrt(var + EPS)
        if g is None:
            return y
        return y * g.reshape(1, -1, 1, 1) + b.reshape(1, -1, 1, 1)

    def conv(x, w, b):
        y = lax.conv_general_dilated(
            bf(x), bf(w), window_strides=(1, 1), padding=((1, 1), (1, 1)),
            dimension_numbers=("NCHW", "OIHW", "NCHW"),
            preferred_element_type=jnp.float32)
        return y + b.reshape(1, -1, 1, 1)

    up2 = lambda x: jnp.repeat(jnp.repeat(x, 2, axis=2), 2, axis=3)
    lrelu = lambda x: jnp.where(x > 0, x, LEAK * x)

    out = jnp.dot(bf(z), bf(params["l1_w"].T),
                  preferred_element_type=jnp.float32) + params["l1_b"]
    x = rnd(out).reshape(B, c0, s0, s0)                 # kernel rounds lin to bf16
    x = bn(x, params["bn0_g"], params["bn0_b"])
    x = up2(rnd(x))                                     # kernel rounds before up1
    x = lrelu(bn(conv(x, params["c1_w"], params["c1_b"]),
                 params["bn1_g"], params["bn1_b"]))
    x = up2(rnd(x))                                     # kernel rounds before up2
    x = lrelu(bn(conv(x, params["c2_w"], params["c2_b"]),
                 params["bn2_g"], params["bn2_b"]))
    x = jnp.tanh(conv(x, params["c3_w"], params["c3_b"]))
    return bn(x, None, None)


# ----------------------------------------------------------------------------
if __name__ == "__main__":
    # Small, forward-consistent shapes
    B, nz, ngf, nc, img_size = 2, 16, 8, 1, 16

    key = jax.random.PRNGKey(0)
    kparam, kz = jax.random.split(key)
    params = init_params(kparam, nz, ngf, nc, img_size)
    kparams = prepare_params(params, B, ngf, nc, img_size)
    z = jax.random.normal(kz, (B, nz), jnp.float32)

    fwd = jax.jit(functools.partial(
        generator_forward, ngf=ngf, nc=nc, img_size=img_size))
    out = jax.block_until_ready(fwd(z, kparams))

    assert out.shape == (B, nc, img_size, img_size), out.shape
    assert out.dtype == jnp.float32
    assert bool(jnp.all(jnp.isfinite(out)))

    ref = reference_forward(z, params, ngf=ngf, nc=nc, img_size=img_size)
    max_err = float(jnp.max(jnp.abs(out - ref)))
    assert max_err < 1e-2, f"max |kernel - reference| = {max_err}"

    print("KERNEL_OK")
</pallas_src>

<mosaic_0001>
module attributes {stable_mosaic.version = 11 : i64} {
  func.func @kernel(%arg0: memref<16x2xbf16, #tpu.memory_space<vmem>>, %arg1: memref<256x16xbf16, #tpu.memory_space<vmem>>, %arg2: memref<256x1xf32, #tpu.memory_space<vmem>>, %arg3: memref<16x256xbf16, #tpu.memory_space<vmem>>, %arg4: memref<256x32xf32, #tpu.memory_space<vmem>>, %arg5: memref<2x32xbf16, #tpu.memory_space<vmem>>, %arg6: memref<16x1xf32, #tpu.memory_space<vmem>>, %arg7: memref<16x1xf32, #tpu.memory_space<vmem>>, %arg8: memref<16x81xbf16, #tpu.memory_space<vmem>>, %arg9: memref<9x16x16xbf16, #tpu.memory_space<vmem>>, %arg10: memref<16x1xf32, #tpu.memory_space<vmem>>, %arg11: memref<16x1xf32, #tpu.memory_space<vmem>>, %arg12: memref<16x1xf32, #tpu.memory_space<vmem>>, %arg13: memref<81x289xbf16, #tpu.memory_space<vmem>>, %arg14: memref<9x8x16xbf16, #tpu.memory_space<vmem>>, %arg15: memref<8x1xf32, #tpu.memory_space<vmem>>, %arg16: memref<8x1xf32, #tpu.memory_space<vmem>>, %arg17: memref<8x1xf32, #tpu.memory_space<vmem>>, %arg18: memref<9x1x8xbf16, #tpu.memory_space<vmem>>, %arg19: memref<1x1xf32, #tpu.memory_space<vmem>>, %arg20: memref<1x162xf32, #tpu.memory_space<vmem>>, %arg21: memref<1x578xf32, #tpu.memory_space<vmem>>, %arg22: memref<1x578xf32, #tpu.memory_space<vmem>>, %arg23: memref<16x614xbf16, #tpu.memory_space<vmem>>) attributes {dimension_semantics = [], scalar_prefetch = 0 : i64, scratch_operands = 1 : i64, tpu.core_type = #tpu.core_type<tc>} {
    %cst = arith.constant 0.000000e+00 : bf16
    %0 = vector.broadcast %cst : bf16 to vector<16x614xbf16>
    %c0 = arith.constant 0 : index
    %c0_0 = arith.constant 0 : index
    %1 = vector.load %arg23[%c0, %c0_0] : memref<16x614xbf16, #tpu.memory_space<vmem>>, vector<16x614xbf16>
    tpu.vector_store %arg23[%c0, %c0_0], %0 {strides = array<i32>} : memref<16x614xbf16, #tpu.memory_space<vmem>>, vector<16x614xbf16>,
    %c0_1 = arith.constant 0 : index
    %c0_2 = arith.constant 0 : index
    %2 = vector.load %arg1[%c0_1, %c0_2] : memref<256x16xbf16, #tpu.memory_space<vmem>>, vector<256x16xbf16>
    %c0_3 = arith.constant 0 : index
    %c0_4 = arith.constant 0 : index
    %3 = vector.load %arg0[%c0_3, %c0_4] : memref<16x2xbf16, #tpu.memory_space<vmem>>, vector<16x2xbf16>
    %cst_5 = arith.constant dense<0.000000e+00> : vector<256x2xf32>
    %4 = tpu.matmul %2, %3, %cst_5 {dimension_numbers = #tpu.dot_dimension_numbers<[1], [0], [0], [1], [0, 0, 1, 1], [], []>} : vector<256x16xbf16>, vector<16x2xbf16>, vector<256x2xf32> -> vector<256x2xf32>
    %c0_6 = arith.constant 0 : index
    %c0_7 = arith.constant 0 : index
    %5 = vector.load %arg2[%c0_6, %c0_7] : memref<256x1xf32, #tpu.memory_space<vmem>>, vector<256x1xf32>
    %6 = vector.broadcast %5 : vector<256x1xf32> to vector<256x2xf32>
    %7 = arith.addf %4, %6 : vector<256x2xf32>
    %8 = arith.truncf %7 : vector<256x2xf32> to vector<256x2xbf16>
    %c0_8 = arith.constant 0 : index
    %c0_9 = arith.constant 0 : index
    %9 = vector.load %arg5[%c0_8, %c0_9] : memref<2x32xbf16, #tpu.memory_space<vmem>>, vector<2x32xbf16>
    %cst_10 = arith.constant dense<0.000000e+00> : vector<256x32xf32>
    %10 = tpu.matmul %8, %9, %cst_10 {dimension_numbers = #tpu.dot_dimension_numbers<[1], [0], [0], [1], [0, 0, 1, 1], [], []>} : vector<256x2xbf16>, vector<2x32xbf16>, vector<256x32xf32> -> vector<256x32xf32>
    %c0_11 = arith.constant 0 : index
    %c0_12 = arith.constant 0 : index
    %11 = vector.load %arg4[%c0_11, %c0_12] : memref<256x32xf32, #tpu.memory_space<vmem>>, vector<256x32xf32>
    %12 = arith.mulf %10, %11 : vector<256x32xf32>
    %13 = arith.truncf %12 : vector<256x32xf32> to vector<256x32xbf16>
    %c0_13 = arith.constant 0 : index
    %c0_14 = arith.constant 0 : index
    %14 = vector.load %arg3[%c0_13, %c0_14] : memref<16x256xbf16, #tpu.memory_space<vmem>>, vector<16x256xbf16>
    %cst_15 = arith.constant dense<0.000000e+00> : vector<16x32xf32>
    %15 = tpu.matmul %14, %13, %cst_15 {dimension_numbers = #tpu.dot_dimension_numbers<[1], [0], [0], [1], [0, 0, 1, 1], [], []>} : vector<16x256xbf16>, vector<256x32xbf16>, vector<16x32xf32> -> vector<16x32xf32>
    %c0_16 = arith.constant 0 : index
    %c0_17 = arith.constant 0 : index
    %16 = vector.load %arg6[%c0_16, %c0_17] : memref<16x1xf32, #tpu.memory_space<vmem>>, vector<16x1xf32>
    %c0_18 = arith.constant 0 : index
    %c0_19 = arith.constant 0 : index
    %17 = vector.load %arg7[%c0_18, %c0_19] : memref<16x1xf32, #tpu.memory_space<vmem>>, vector<16x1xf32>
    %cst_20 = arith.constant dense<0.000000e+00> : vector<16xf32>
    %18 = vector.multi_reduction <add>, %15, %cst_20 [1] : vector<16x32xf32> to vector<16xf32>
    %19 = vector.shape_cast %18 : vector<16xf32> to vector<16x1xf32>
    %20 = arith.mulf %15, %15 : vector<16x32xf32>
    %cst_21 = arith.constant dense<0.000000e+00> : vector<16xf32>
    %21 = vector.multi_reduction <add>, %20, %cst_21 [1] : vector<16x32xf32> to vector<16xf32>
    %22 = vector.shape_cast %21 : vector<16xf32> to vector<16x1xf32>
    %cst_22 = arith.constant 3.125000e-02 : f32
    %23 = vector.broadcast %cst_22 : f32 to vector<16x1xf32>
    %24 = arith.mulf %19, %23 : vector<16x1xf32>
    %cst_23 = arith.constant 3.125000e-02 : f32
    %25 = vector.broadcast %cst_23 : f32 to vector<16x1xf32>
    %26 = arith.mulf %22, %25 : vector<16x1xf32>
    %27 = arith.mulf %24, %24 : vector<16x1xf32>
    %28 = arith.subf %26, %27 : vector<16x1xf32>
    %cst_24 = arith.constant 9.99999974E-6 : f32
    %29 = vector.broadcast %cst_24 : f32 to vector<16x1xf32>
    %30 = arith.addf %28, %29 : vector<16x1xf32>
    %31 = math.rsqrt %30 : vector<16x1xf32>
    %32 = arith.mulf %16, %31 : vector<16x1xf32>
    %33 = vector.broadcast %32 : vector<16x1xf32> to vector<16x32xf32>
    %34 = arith.mulf %15, %33 : vector<16x32xf32>
    %35 = arith.mulf %24, %32 : vector<16x1xf32>
    %36 = arith.subf %17, %35 : vector<16x1xf32>
    %37 = vector.broadcast %36 : vector<16x1xf32> to vector<16x32xf32>
    %38 = arith.addf %34, %37 : vector<16x32xf32>
    %39 = vector.extract_strided_slice %38 {offsets = [0, 0], sizes = [16, 16], strides = [1, 1]} : vector<16x32xf32> to vector<16x16xf32>
    %40 = arith.truncf %39 : vector<16x16xf32> to vector<16x16xbf16>
    %c0_25 = arith.constant 0 : index
    %c0_26 = arith.constant 0 : index
    %41 = vector.load %arg8[%c0_25, %c0_26] : memref<16x81xbf16, #tpu.memory_space<vmem>>, vector<16x81xbf16>
    %cst_27 = arith.constant dense<0.000000e+00> : vector<16x81xf32>
    %42 = tpu.matmul %40, %41, %cst_27 {dimension_numbers = #tpu.dot_dimension_numbers<[1], [0], [0], [1], [0, 0, 1, 1], [], []>} : vector<16x16xbf16>, vector<16x81xbf16>, vector<16x81xf32> -> vector<16x81xf32>
    %43 = arith.truncf %42 : vector<16x81xf32> to vector<16x81xbf16>
    %c0_28 = arith.constant 0 : index
    %c18 = arith.constant 18 : index
    %44 = vector.load %arg23[%c0_28, %c18] : memref<16x614xbf16, #tpu.memory_space<vmem>>, vector<16x81xbf16>
    tpu.vector_store %arg23[%c0_28, %c18], %43 {strides = array<i32>} : memref<16x614xbf16, #tpu.memory_space<vmem>>, vector<16x81xbf16>,
    %45 = vector.extract_strided_slice %38 {offsets = [0, 16], sizes = [16, 16], strides = [1, 1]} : vector<16x32xf32> to vector<16x16xf32>
    %46 = arith.truncf %45 : vector<16x16xf32> to vector<16x16xbf16>
    %c0_29 = arith.constant 0 : index
    %c0_30 = arith.constant 0 : index
    %47 = vector.load %arg8[%c0_29, %c0_30] : memref<16x81xbf16, #tpu.memory_space<vmem>>, vector<16x81xbf16>
    %cst_31 = arith.constant dense<0.000000e+00> : vector<16x81xf32>
    %48 = tpu.matmul %46, %47, %cst_31 {dimension_numbers = #tpu.dot_dimension_numbers<[1], [0], [0], [1], [0, 0, 1, 1], [], []>} : vector<16x16xbf16>, vector<16x81xbf16>, vector<16x81xf32> -> vector<16x81xf32>
    %49 = arith.truncf %48 : vector<16x81xf32> to vector<16x81xbf16>
    %c0_32 = arith.constant 0 : index
    %c99 = arith.constant 99 : index
    %50 = vector.load %arg23[%c0_32, %c99] : memref<16x614xbf16, #tpu.memory_space<vmem>>, vector<16x81xbf16>
    tpu.vector_store %arg23[%c0_32, %c99], %49 {strides = array<i32>} : memref<16x614xbf16, #tpu.memory_space<vmem>>, vector<16x81xbf16>,
    %c0_33 = arith.constant 0 : index
    %c8 = arith.constant 8 : index
    %51 = vector.load %arg23[%c0_33, %c8] : memref<16x614xbf16, #tpu.memory_space<vmem>>, vector<16x162xbf16>
    %c0_34 = arith.constant 0 : index
    %c0_35 = arith.constant 0 : index
    %c0_36 = arith.constant 0 : index
    %52 = vector.load %arg9[%c0_34, %c0_35, %c0_36] : memref<9x16x16xbf16, #tpu.memory_space<vmem>>, vector<1x16x16xbf16>
    %53 = vector.shape_cast %52 : vector<1x16x16xbf16> to vector<16x16xbf16>
    %cst_37 = arith.constant dense<0.000000e+00> : vector<16x162xf32>
    %54 = tpu.matmul %53, %51, %cst_37 {dimension_numbers = #tpu.dot_dimension_numbers<[1], [0], [0], [1], [0, 0, 1, 1], [], []>} : vector<16x16xbf16>, vector<16x162xbf16>, vector<16x162xf32> -> vector<16x162xf32>
    %c0_38 = arith.constant 0 : index
    %c9 = arith.constant 9 : index
    %55 = vector.load %arg23[%c0_38, %c9] : memref<16x614xbf16, #tpu.memory_space<vmem>>, vector<16x162xbf16>
    %c1 = arith.constant 1 : index
    %c0_39 = arith.constant 0 : index
    %c0_40 = arith.constant 0 : index
    %56 = vector.load %arg9[%c1, %c0_39, %c0_40] : memref<9x16x16xbf16, #tpu.memory_space<vmem>>, vector<1x16x16xbf16>
    %57 = vector.shape_cast %56 : vector<1x16x16xbf16> to vector<16x16xbf16>
    %cst_41 = arith.constant dense<0.000000e+00> : vector<16x162xf32>
    %58 = tpu.matmul %57, %55, %cst_41 {dimension_numbers = #tpu.dot_dimension_numbers<[1], [0], [0], [1], [0, 0, 1, 1], [], []>} : vector<16x16xbf16>, vector<16x162xbf16>, vector<16x162xf32> -> vector<16x162xf32>
    %59 = arith.addf %54, %58 : vector<16x162xf32>
    %c0_42 = arith.constant 0 : index
    %c10 = arith.constant 10 : index
    %60 = vector.load %arg23[%c0_42, %c10] : memref<16x614xbf16, #tpu.memory_space<vmem>>, vector<16x162xbf16>
    %c2 = arith.constant 2 : index
    %c0_43 = arith.constant 0 : index
    %c0_44 = arith.constant 0 : index
    %61 = vector.load %arg9[%c2, %c0_43, %c0_44] : memref<9x16x16xbf16, #tpu.memory_space<vmem>>, vector<1x16x16xbf16>
    %62 = vector.shape_cast %61 : vector<1x16x16xbf16> to vector<16x16xbf16>
    %cst_45 = arith.constant dense<0.000000e+00> : vector<16x162xf32>
    %63 = tpu.matmul %62, %60, %cst_45 {dimension_numbers = #tpu.dot_dimension_numbers<[1], [0], [0], [1], [0, 0, 1, 1], [], []>} : vector<16x16xbf16>, vector<16x162xbf16>, vector<16x162xf32> -> vector<16x162xf32>
    %64 = arith.addf %59, %63 : vector<16x162xf32>
    %c0_46 = arith.constant 0 : index
    %c17 = arith.constant 17 : index
    %65 = vector.load %arg23[%c0_46, %c17] : memref<16x614xbf16, #tpu.memory_space<vmem>>, vector<16x162xbf16>
    %c3 = arith.constant 3 : index
    %c0_47 = arith.constant 0 : index
    %c0_48 = arith.constant 0 : index
    %66 = vector.load %arg9[%c3, %c0_47, %c0_48] : memref<9x16x16xbf16, #tpu.memory_space<vmem>>, vector<1x16x16xbf16>
    %67 = vector.shape_cast %66 : vector<1x16x16xbf16> to vector<16x16xbf16>
    %cst_49 = arith.constant dense<0.000000e+00> : vector<16x162xf32>
    %68 = tpu.matmul %67, %65, %cst_49 {dimension_numbers = #tpu.dot_dimension_numbers<[1], [0], [0], [1], [0, 0, 1, 1], [], []>} : vector<16x16xbf16>, vector<16x162xbf16>, vector<16x162xf32> -> vector<16x162xf32>
    %69 = arith.addf %64, %68 : vector<16x162xf32>
    %c0_50 = arith.constant 0 : index
    %c18_51 = arith.constant 18 : index
    %70 = vector.load %arg23[%c0_50, %c18_51] : memref<16x614xbf16, #tpu.memory_space<vmem>>, vector<16x162xbf16>
    %c4 = arith.constant 4 : index
    %c0_52 = arith.constant 0 : index
    %c0_53 = arith.constant 0 : index
    %71 = vector.load %arg9[%c4, %c0_52, %c0_53] : memref<9x16x16xbf16, #tpu.memory_space<vmem>>, vector<1x16x16xbf16>
    %72 = vector.shape_cast %71 : vector<1x16x16xbf16> to vector<16x16xbf16>
    %cst_54 = arith.constant dense<0.000000e+00> : vector<16x162xf32>
    %73 = tpu.matmul %72, %70, %cst_54 {dimension_numbers = #tpu.dot_dimension_numbers<[1], [0], [0], [1], [0, 0, 1, 1], [], []>} : vector<16x16xbf16>, vector<16x162xbf16>, vector<16x162xf32> -> vector<16x162xf32>
    %74 = arith.addf %69, %73 : vector<16x162xf32>
    %c0_55 = arith.constant 0 : index
    %c19 = arith.constant 19 : index
    %75 = vector.load %arg23[%c0_55, %c19] : memref<16x614xbf16, #tpu.memory_space<vmem>>, vector<16x162xbf16>
    %c5 = arith.constant 5 : index
    %c0_56 = arith.constant 0 : index
    %c0_57 = arith.constant 0 : index
    %76 = vector.load %arg9[%c5, %c0_56, %c0_57] : memref<9x16x16xbf16, #tpu.memory_space<vmem>>, vector<1x16x16xbf16>
    %77 = vector.shape_cast %76 : vector<1x16x16xbf16> to vector<16x16xbf16>
    %cst_58 = arith.constant dense<0.000000e+00> : vector<16x162xf32>
    %78 = tpu.matmul %77, %75, %cst_58 {dimension_numbers = #tpu.dot_dimension_numbers<[1], [0], [0], [1], [0, 0, 1, 1], [], []>} : vector<16x16xbf16>, vector<16x162xbf16>, vector<16x162xf32> -> vector<16x162xf32>
    %79 = arith.addf %74, %78 : vector<16x162xf32>
    %c0_59 = arith.constant 0 : index
    %c26 = arith.constant 26 : index
    %80 = vector.load %arg23[%c0_59, %c26] : memref<16x614xbf16, #tpu.memory_space<vmem>>, vector<16x162xbf16>
    %c6 = arith.constant 6 : index
    %c0_60 = arith.constant 0 : index
    %c0_61 = arith.constant 0 : index
    %81 = vector.load %arg9[%c6, %c0_60, %c0_61] : memref<9x16x16xbf16, #tpu.memory_space<vmem>>, vector<1x16x16xbf16>
    %82 = vector.shape_cast %81 : vector<1x16x16xbf16> to vector<16x16xbf16>
    %cst_62 = arith.constant dense<0.000000e+00> : vector<16x162xf32>
    %83 = tpu.matmul %82, %80, %cst_62 {dimension_numbers = #tpu.dot_dimension_numbers<[1], [0], [0], [1], [0, 0, 1, 1], [], []>} : vector<16x16xbf16>, vector<16x162xbf16>, vector<16x162xf32> -> vector<16x162xf32>
    %84 = arith.addf %79, %83 : vector<16x162xf32>
    %c0_63 = arith.constant 0 : index
    %c27 = arith.constant 27 : index
    %85 = vector.load %arg23[%c0_63, %c27] : memref<16x614xbf16, #tpu.memory_space<vmem>>, vector<16x162xbf16>
    %c7 = arith.constant 7 : index
    %c0_64 = arith.constant 0 : index
    %c0_65 = arith.constant 0 : index
    %86 = vector.load %arg9[%c7, %c0_64, %c0_65] : memref<9x16x16xbf16, #tpu.memory_space<vmem>>, vector<1x16x16xbf16>
    %87 = vector.shape_cast %86 : vector<1x16x16xbf16> to vector<16x16xbf16>
    %cst_66 = arith.constant dense<0.000000e+00> : vector<16x162xf32>
    %88 = tpu.matmul %87, %85, %cst_66 {dimension_numbers = #tpu.dot_dimension_numbers<[1], [0], [0], [1], [0, 0, 1, 1], [], []>} : vector<16x16xbf16>, vector<16x162xbf16>, vector<16x162xf32> -> vector<16x162xf32>
    %89 = arith.addf %84, %88 : vector<16x162xf32>
    %c0_67 = arith.constant 0 : index
    %c28 = arith.constant 28 : index
    %90 = vector.load %arg23[%c0_67, %c28] : memref<16x614xbf16, #tpu.memory_space<vmem>>, vector<16x162xbf16>
    %c8_68 = arith.constant 8 : index
    %c0_69 = arith.constant 0 : index
    %c0_70 = arith.constant 0 : index
    %91 = vector.load %arg9[%c8_68, %c0_69, %c0_70] : memref<9x16x16xbf16, #tpu.memory_space<vmem>>, vector<1x16x16xbf16>
    %92 = vector.shape_cast %91 : vector<1x16x16xbf16> to vector<16x16xbf16>
    %cst_71 = arith.constant dense<0.000000e+00> : vector<16x162xf32>
    %93 = tpu.matmul %92, %90, %cst_71 {dimension_numbers = #tpu.dot_dimension_numbers<[1], [0], [0], [1], [0, 0, 1, 1], [], []>} : vector<16x16xbf16>, vector<16x162xbf16>, vector<16x162xf32> -> vector<16x162xf32>
    %94 = arith.addf %89, %93 : vector<16x162xf32>
    %c0_72 = arith.constant 0 : index
    %c0_73 = arith.constant 0 : index
    %95 = vector.load %arg10[%c0_72, %c0_73] : memref<16x1xf32, #tpu.memory_space<vmem>>, vector<16x1xf32>
    %96 = vector.broadcast %95 : vector<16x1xf32> to vector<16x162xf32>
    %97 = arith.addf %94, %96 : vector<16x162xf32>
    %c0_74 = arith.constant 0 : index
    %c0_75 = arith.constant 0 : index
    %98 = vector.load %arg11[%c0_74, %c0_75] : memref<16x1xf32, #tpu.memory_space<vmem>>, vector<16x1xf32>
    %c0_76 = arith.constant 0 : index
    %c0_77 = arith.constant 0 : index
    %99 = vector.load %arg12[%c0_76, %c0_77] : memref<16x1xf32, #tpu.memory_space<vmem>>, vector<16x1xf32>
    %c0_78 = arith.constant 0 : index
    %c0_79 = arith.constant 0 : index
    %100 = vector.load %arg20[%c0_78, %c0_79] : memref<1x162xf32, #tpu.memory_space<vmem>>, vector<1x162xf32>
    %101 = vector.broadcast %100 : vector<1x162xf32> to vector<16x162xf32>
    %102 = arith.mulf %97, %101 : vector<16x162xf32>
    %cst_80 = arith.constant dense<0.000000e+00> : vector<16xf32>
    %103 = vector.multi_reduction <add>, %102, %cst_80 [1] : vector<16x162xf32> to vector<16xf32>
    %104 = vector.shape_cast %103 : vector<16xf32> to vector<16x1xf32>
    %105 = arith.mulf %102, %102 : vector<16x162xf32>
    %cst_81 = arith.constant dense<0.000000e+00> : vector<16xf32>
    %106 = vector.multi_reduction <add>, %105, %cst_81 [1] : vector<16x162xf32> to vector<16xf32>
    %107 = vector.shape_cast %106 : vector<16xf32> to vector<16x1xf32>
    %cst_82 = arith.constant 7.812500e-03 : f32
    %108 = vector.broadcast %cst_82 : f32 to vector<16x1xf32>
    %109 = arith.mulf %104, %108 : vector<16x1xf32>
    %cst_83 = arith.constant 7.812500e-03 : f32
    %110 = vector.broadcast %cst_83 : f32 to vector<16x1xf32>
    %111 = arith.mulf %107, %110 : vector<16x1xf32>
    %112 = arith.mulf %109, %109 : vector<16x1xf32>
    %113 = arith.subf %111, %112 : vector<16x1xf32>
    %cst_84 = arith.constant 9.99999974E-6 : f32
    %114 = vector.broadcast %cst_84 : f32 to vector<16x1xf32>
    %115 = arith.addf %113, %114 : vector<16x1xf32>
    %116 = math.rsqrt %115 : vector<16x1xf32>
    %117 = arith.mulf %98, %116 : vector<16x1xf32>
    %118 = vector.broadcast %117 : vector<16x1xf32> to vector<16x162xf32>
    %119 = arith.mulf %97, %118 : vector<16x162xf32>
    %120 = arith.mulf %109, %117 : vector<16x1xf32>
    %121 = arith.subf %99, %120 : vector<16x1xf32>
    %122 = vector.broadcast %121 : vector<16x1xf32> to vector<16x162xf32>
    %123 = arith.addf %119, %122 : vector<16x162xf32>
    %cst_85 = arith.constant 2.000000e-01 : f32
    %124 = vector.broadcast %cst_85 : f32 to vector<16x162xf32>
    %125 = arith.mulf %124, %123 : vector<16x162xf32>
    %126 = arith.maximumf %123, %125 : vector<16x162xf32>
    %127 = vector.extract_strided_slice %126 {offsets = [0, 0], sizes = [16, 81], strides = [1, 1]} : vector<16x162xf32> to vector<16x81xf32>
    %128 = arith.truncf %127 : vector<16x81xf32> to vector<16x81xbf16>
    %c0_86 = arith.constant 0 : index
    %c0_87 = arith.constant 0 : index
    %129 = vector.load %arg13[%c0_86, %c0_87] : memref<81x289xbf16, #tpu.memory_space<vmem>>, vector<81x289xbf16>
    %cst_88 = arith.constant dense<0.000000e+00> : vector<16x289xf32>
    %130 = tpu.matmul %128, %129, %cst_88 {dimension_numbers = #tpu.dot_dimension_numbers<[1], [0], [0], [1], [0, 0, 1, 1], [], []>} : vector<16x81xbf16>, vector<81x289xbf16>, vector<16x289xf32> -> vector<16x289xf32>
    %131 = arith.truncf %130 : vector<16x289xf32> to vector<16x289xbf16>
    %c0_89 = arith.constant 0 : index
    %c18_90 = arith.constant 18 : index
    %132 = vector.load %arg23[%c0_89, %c18_90] : memref<16x614xbf16, #tpu.memory_space<vmem>>, vector<16x289xbf16>
    tpu.vector_store %arg23[%c0_89, %c18_90], %131 {strides = array<i32>} : memref<16x614xbf16, #tpu.memory_space<vmem>>, vector<16x289xbf16>,
    %133 = vector.extract_strided_slice %126 {offsets = [0, 81], sizes = [16, 81], strides = [1, 1]} : vector<16x162xf32> to vector<16x81xf32>
    %134 = arith.truncf %133 : vector<16x81xf32> to vector<16x81xbf16>
    %c0_91 = arith.constant 0 : index
    %c0_92 = arith.constant 0 : index
    %135 = vector.load %arg13[%c0_91, %c0_92] : memref<81x289xbf16, #tpu.memory_space<vmem>>, vector<81x289xbf16>
    %cst_93 = arith.constant dense<0.000000e+00> : vector<16x289xf32>
    %136 = tpu.matmul %134, %135, %cst_93 {dimension_numbers = #tpu.dot_dimension_numbers<[1], [0], [0], [1], [0, 0, 1, 1], [], []>} : vector<16x81xbf16>, vector<81x289xbf16>, vector<16x289xf32> -> vector<16x289xf32>
    %137 = arith.truncf %136 : vector<16x289xf32> to vector<16x289xbf16>
    %c0_94 = arith.constant 0 : index
    %c307 = arith.constant 307 : index
    %138 = vector.load %arg23[%c0_94, %c307] : memref<16x614xbf16, #tpu.memory_space<vmem>>, vector<16x289xbf16>
    tpu.vector_store %arg23[%c0_94, %c307], %137 {strides = array<i32>} : memref<16x614xbf16, #tpu.memory_space<vmem>>, vector<16x289xbf16>,
    %c0_95 = arith.constant 0 : index
    %c0_96 = arith.constant 0 : index
    %139 = vector.load %arg23[%c0_95, %c0_96] : memref<16x614xbf16, #tpu.memory_space<vmem>>, vector<16x578xbf16>
    %c0_97 = arith.constant 0 : index
    %c0_98 = arith.constant 0 : index
    %c0_99 = arith.constant 0 : index
    %140 = vector.load %arg14[%c0_97, %c0_98, %c0_99] : memref<9x8x16xbf16, #tpu.memory_space<vmem>>, vector<1x8x16xbf16>
    %141 = vector.shape_cast %140 : vector<1x8x16xbf16> to vector<8x16xbf16>
    %cst_100 = arith.constant dense<0.000000e+00> : vector<8x578xf32>
    %142 = tpu.matmul %141, %139, %cst_100 {dimension_numbers = #tpu.dot_dimension_numbers<[1], [0], [0], [1], [0, 0, 1, 1], [], []>} : vector<8x16xbf16>, vector<16x578xbf16>, vector<8x578xf32> -> vector<8x578xf32>
    %c0_101 = arith.constant 0 : index
    %c1_102 = arith.constant 1 : index
    %143 = vector.load %arg23[%c0_101, %c1_102] : memref<16x614xbf16, #tpu.memory_space<vmem>>, vector<16x578xbf16>
    %c1_103 = arith.constant 1 : index
    %c0_104 = arith.constant 0 : index
    %c0_105 = arith.constant 0 : index
    %144 = vector.load %arg14[%c1_103, %c0_104, %c0_105] : memref<9x8x16xbf16, #tpu.memory_space<vmem>>, vector<1x8x16xbf16>
    %145 = vector.shape_cast %144 : vector<1x8x16xbf16> to vector<8x16xbf16>
    %cst_106 = arith.constant dense<0.000000e+00> : vector<8x578xf32>
    %146 = tpu.matmul %145, %143, %cst_106 {dimension_numbers = #tpu.dot_dimension_numbers<[1], [0], [0], [1], [0, 0, 1, 1], [], []>} : vector<8x16xbf16>, vector<16x578xbf16>, vector<8x578xf32> -> vector<8x578xf32>
    %147 = arith.addf %142, %146 : vector<8x578xf32>
    %c0_107 = arith.constant 0 : index
    %c2_108 = arith.constant 2 : index
    %148 = vector.load %arg23[%c0_107, %c2_108] : memref<16x614xbf16, #tpu.memory_space<vmem>>, vector<16x578xbf16>
    %c2_109 = arith.constant 2 : index
    %c0_110 = arith.constant 0 : index
    %c0_111 = arith.constant 0 : index
    %149 = vector.load %arg14[%c2_109, %c0_110, %c0_111] : memref<9x8x16xbf16, #tpu.memory_space<vmem>>, vector<1x8x16xbf16>
    %150 = vector.shape_cast %149 : vector<1x8x16xbf16> to vector<8x16xbf16>
    %cst_112 = arith.constant dense<0.000000e+00> : vector<8x578xf32>
    %151 = tpu.matmul %150, %148, %cst_112 {dimension_numbers = #tpu.dot_dimension_numbers<[1], [0], [0], [1], [0, 0, 1, 1], [], []>} : vector<8x16xbf16>, vector<16x578xbf16>, vector<8x578xf32> -> vector<8x578xf32>
    %152 = arith.addf %147, %151 : vector<8x578xf32>
    %c0_113 = arith.constant 0 : index
    %c17_114 = arith.constant 17 : index
    %153 = vector.load %arg23[%c0_113, %c17_114] : memref<16x614xbf16, #tpu.memory_space<vmem>>, vector<16x578xbf16>
    %c3_115 = arith.constant 3 : index
    %c0_116 = arith.constant 0 : index
    %c0_117 = arith.constant 0 : index
    %154 = vector.load %arg14[%c3_115, %c0_116, %c0_117] : memref<9x8x16xbf16, #tpu.memory_space<vmem>>, vector<1x8x16xbf16>
    %155 = vector.shape_cast %154 : vector<1x8x16xbf16> to vector<8x16xbf16>
    %cst_118 = arith.constant dense<0.000000e+00> : vector<8x578xf32>
    %156 = tpu.matmul %155, %153, %cst_118 {dimension_numbers = #tpu.dot_dimension_numbers<[1], [0], [0], [1], [0, 0, 1, 1], [], []>} : vector<8x16xbf16>, vector<16x578xbf16>, vector<8x578xf32> -> vector<8x578xf32>
    %157 = arith.addf %152, %156 : vector<8x578xf32>
    %c0_119 = arith.constant 0 : index
    %c18_120 = arith.constant 18 : index
    %158 = vector.load %arg23[%c0_119, %c18_120] : memref<16x614xbf16, #tpu.memory_space<vmem>>, vector<16x578xbf16>
    %c4_121 = arith.constant 4 : index
    %c0_122 = arith.constant 0 : index
    %c0_123 = arith.constant 0 : index
    %159 = vector.load %arg14[%c4_121, %c0_122, %c0_123] : memref<9x8x16xbf16, #tpu.memory_space<vmem>>, vector<1x8x16xbf16>
    %160 = vector.shape_cast %159 : vector<1x8x16xbf16> to vector<8x16xbf16>
    %cst_124 = arith.constant dense<0.000000e+00> : vector<8x578xf32>
    %161 = tpu.matmul %160, %158, %cst_124 {dimension_numbers = #tpu.dot_dimension_numbers<[1], [0], [0], [1], [0, 0, 1, 1], [], []>} : vector<8x16xbf16>, vector<16x578xbf16>, vector<8x578xf32> -> vector<8x578xf32>
    %162 = arith.addf %157, %161 : vector<8x578xf32>
    %c0_125 = arith.constant 0 : index
    %c19_126 = arith.constant 19 : index
    %163 = vector.load %arg23[%c0_125, %c19_126] : memref<16x614xbf16, #tpu.memory_space<vmem>>, vector<16x578xbf16>
    %c5_127 = arith.constant 5 : index
    %c0_128 = arith.constant 0 : index
    %c0_129 = arith.constant 0 : index
    %164 = vector.load %arg14[%c5_127, %c0_128, %c0_129] : memref<9x8x16xbf16, #tpu.memory_space<vmem>>, vector<1x8x16xbf16>
    %165 = vector.shape_cast %164 : vector<1x8x16xbf16> to vector<8x16xbf16>
    %cst_130 = arith.constant dense<0.000000e+00> : vector<8x578xf32>
    %166 = tpu.matmul %165, %163, %cst_130 {dimension_numbers = #tpu.dot_dimension_numbers<[1], [0], [0], [1], [0, 0, 1, 1], [], []>} : vector<8x16xbf16>, vector<16x578xbf16>, vector<8x578xf32> -> vector<8x578xf32>
    %167 = arith.addf %162, %166 : vector<8x578xf32>
    %c0_131 = arith.constant 0 : index
    %c34 = arith.constant 34 : index
    %168 = vector.load %arg23[%c0_131, %c34] : memref<16x614xbf16, #tpu.memory_space<vmem>>, vector<16x578xbf16>
    %c6_132 = arith.constant 6 : index
    %c0_133 = arith.constant 0 : index
    %c0_134 = arith.constant 0 : index
    %169 = vector.load %arg14[%c6_132, %c0_133, %c0_134] : memref<9x8x16xbf16, #tpu.memory_space<vmem>>, vector<1x8x16xbf16>
    %170 = vector.shape_cast %169 : vector<1x8x16xbf16> to vector<8x16xbf16>
    %cst_135 = arith.constant dense<0.000000e+00> : vector<8x578xf32>
    %171 = tpu.matmul %170, %168, %cst_135 {dimension_numbers = #tpu.dot_dimension_numbers<[1], [0], [0], [1], [0, 0, 1, 1], [], []>} : vector<8x16xbf16>, vector<16x578xbf16>, vector<8x578xf32> -> vector<8x578xf32>
    %172 = arith.addf %167, %171 : vector<8x578xf32>
    %c0_136 = arith.constant 0 : index
    %c35 = arith.constant 35 : index
    %173 = vector.load %arg23[%c0_136, %c35] : memref<16x614xbf16, #tpu.memory_space<vmem>>, vector<16x578xbf16>
    %c7_137 = arith.constant 7 : index
    %c0_138 = arith.constant 0 : index
    %c0_139 = arith.constant 0 : index
    %174 = vector.load %arg14[%c7_137, %c0_138, %c0_139] : memref<9x8x16xbf16, #tpu.memory_space<vmem>>, vector<1x8x16xbf16>
    %175 = vector.shape_cast %174 : vector<1x8x16xbf16> to vector<8x16xbf16>
    %cst_140 = arith.constant dense<0.000000e+00> : vector<8x578xf32>
    %176 = tpu.matmul %175, %173, %cst_140 {dimension_numbers = #tpu.dot_dimension_numbers<[1], [0], [0], [1], [0, 0, 1, 1], [], []>} : vector<8x16xbf16>, vector<16x578xbf16>, vector<8x578xf32> -> vector<8x578xf32>
    %177 = arith.addf %172, %176 : vector<8x578xf32>
    %c0_141 = arith.constant 0 : index
    %c36 = arith.constant 36 : index
    %178 = vector.load %arg23[%c0_141, %c36] : memref<16x614xbf16, #tpu.memory_space<vmem>>, vector<16x578xbf16>
    %c8_142 = arith.constant 8 : index
    %c0_143 = arith.constant 0 : index
    %c0_144 = arith.constant 0 : index
    %179 = vector.load %arg14[%c8_142, %c0_143, %c0_144] : memref<9x8x16xbf16, #tpu.memory_space<vmem>>, vector<1x8x16xbf16>
    %180 = vector.shape_cast %179 : vector<1x8x16xbf16> to vector<8x16xbf16>
    %cst_145 = arith.constant dense<0.000000e+00> : vector<8x578xf32>
    %181 = tpu.matmul %180, %178, %cst_145 {dimension_numbers = #tpu.dot_dimension_numbers<[1], [0], [0], [1], [0, 0, 1, 1], [], []>} : vector<8x16xbf16>, vector<16x578xbf16>, vector<8x578xf32> -> vector<8x578xf32>
    %182 = arith.addf %177, %181 : vector<8x578xf32>
    %c0_146 = arith.constant 0 : index
    %c0_147 = arith.constant 0 : index
    %183 = vector.load %arg15[%c0_146, %c0_147] : memref<8x1xf32, #tpu.memory_space<vmem>>, vector<8x1xf32>
    %184 = vector.broadcast %183 : vector<8x1xf32> to vector<8x578xf32>
    %185 = arith.addf %182, %184 : vector<8x578xf32>
    %c0_148 = arith.constant 0 : index
    %c0_149 = arith.constant 0 : index
    %186 = vector.load %arg16[%c0_148, %c0_149] : memref<8x1xf32, #tpu.memory_space<vmem>>, vector<8x1xf32>
    %c0_150 = arith.constant 0 : index
    %c0_151 = arith.constant 0 : index
    %187 = vector.load %arg17[%c0_150, %c0_151] : memref<8x1xf32, #tpu.memory_space<vmem>>, vector<8x1xf32>
    %c0_152 = arith.constant 0 : index
    %c0_153 = arith.constant 0 : index
    %188 = vector.load %arg21[%c0_152, %c0_153] : memref<1x578xf32, #tpu.memory_space<vmem>>, vector<1x578xf32>
    %189 = vector.broadcast %188 : vector<1x578xf32> to vector<8x578xf32>
    %190 = arith.mulf %185, %189 : vector<8x578xf32>
    %cst_154 = arith.constant dense<0.000000e+00> : vector<8xf32>
    %191 = vector.multi_reduction <add>, %190, %cst_154 [1] : vector<8x578xf32> to vector<8xf32>
    %192 = vector.shape_cast %191 : vector<8xf32> to vector<8x1xf32>
    %193 = arith.mulf %190, %190 : vector<8x578xf32>
    %cst_155 = arith.constant dense<0.000000e+00> : vector<8xf32>
    %194 = vector.multi_reduction <add>, %193, %cst_155 [1] : vector<8x578xf32> to vector<8xf32>
    %195 = vector.shape_cast %194 : vector<8xf32> to vector<8x1xf32>
    %cst_156 = arith.constant 0.001953125 : f32
    %196 = vector.broadcast %cst_156 : f32 to vector<8x1xf32>
    %197 = arith.mulf %192, %196 : vector<8x1xf32>
    %cst_157 = arith.constant 0.001953125 : f32
    %198 = vector.broadcast %cst_157 : f32 to vector<8x1xf32>
    %199 = arith.mulf %195, %198 : vector<8x1xf32>
    %200 = arith.mulf %197, %197 : vector<8x1xf32>
    %201 = arith.subf %199, %200 : vector<8x1xf32>
    %cst_158 = arith.constant 9.99999974E-6 : f32
    %202 = vector.broadcast %cst_158 : f32 to vector<8x1xf32>
    %203 = arith.addf %201, %202 : vector<8x1xf32>
    %204 = math.rsqrt %203 : vector<8x1xf32>
    %205 = arith.mulf %186, %204 : vector<8x1xf32>
    %206 = vector.broadcast %205 : vector<8x1xf32> to vector<8x578xf32>
    %207 = arith.mulf %185, %206 : vector<8x578xf32>
    %208 = arith.mulf %197, %205 : vector<8x1xf32>
    %209 = arith.subf %187, %208 : vector<8x1xf32>
    %210 = vector.broadcast %209 : vector<8x1xf32> to vector<8x578xf32>
    %211 = arith.addf %207, %210 : vector<8x578xf32>
    %cst_159 = arith.constant 2.000000e-01 : f32
    %212 = vector.broadcast %cst_159 : f32 to vector<8x578xf32>
    %213 = arith.mulf %212, %211 : vector<8x578xf32>
    %214 = arith.maximumf %211, %213 : vector<8x578xf32>
    %c0_160 = arith.constant 0 : index
    %c0_161 = arith.constant 0 : index
    %215 = vector.load %arg21[%c0_160, %c0_161] : memref<1x578xf32, #tpu.memory_space<vmem>>, vector<1x578xf32>
    %216 = vector.broadcast %215 : vector<1x578xf32> to vector<8x578xf32>
    %217 = arith.mulf %214, %216 : vector<8x578xf32>
    %218 = arith.truncf %217 : vector<8x578xf32> to vector<8x578xbf16>
    %c0_162 = arith.constant 0 : index
    %c18_163 = arith.constant 18 : index
    %219 = vector.load %arg23[%c0_162, %c18_163] : memref<16x614xbf16, #tpu.memory_space<vmem>>, vector<8x578xbf16>
    tpu.vector_store %arg23[%c0_162, %c18_163], %218 {strides = array<i32>} : memref<16x614xbf16, #tpu.memory_space<vmem>>, vector<8x578xbf16>,
    %c0_164 = arith.constant 0 : index
    %c0_165 = arith.constant 0 : index
    %220 = vector.load %arg23[%c0_164, %c0_165] : memref<16x614xbf16, #tpu.memory_space<vmem>>, vector<8x578xbf16>
    %c0_166 = arith.constant 0 : index
    %c0_167 = arith.constant 0 : index
    %c0_168 = arith.constant 0 : index
    %221 = vector.load %arg18[%c0_166, %c0_167, %c0_168] : memref<9x1x8xbf16, #tpu.memory_space<vmem>>, vector<1x1x8xbf16>
    %222 = vector.shape_cast %221 : vector<1x1x8xbf16> to vector<1x8xbf16>
    %cst_169 = arith.constant dense<0.000000e+00> : vector<1x578xf32>
    %223 = tpu.matmul %222, %220, %cst_169 {dimension_numbers = #tpu.dot_dimension_numbers<[1], [0], [0], [1], [0, 0, 1, 1], [], []>} : vector<1x8xbf16>, vector<8x578xbf16>, vector<1x578xf32> -> vector<1x578xf32>
    %c0_170 = arith.constant 0 : index
    %c1_171 = arith.constant 1 : index
    %224 = vector.load %arg23[%c0_170, %c1_171] : memref<16x614xbf16, #tpu.memory_space<vmem>>, vector<8x578xbf16>
    %c1_172 = arith.constant 1 : index
    %c0_173 = arith.constant 0 : index
    %c0_174 = arith.constant 0 : index
    %225 = vector.load %arg18[%c1_172, %c0_173, %c0_174] : memref<9x1x8xbf16, #tpu.memory_space<vmem>>, vector<1x1x8xbf16>
    %226 = vector.shape_cast %225 : vector<1x1x8xbf16> to vector<1x8xbf16>
    %cst_175 = arith.constant dense<0.000000e+00> : vector<1x578xf32>
    %227 = tpu.matmul %226, %224, %cst_175 {dimension_numbers = #tpu.dot_dimension_numbers<[1], [0], [0], [1], [0, 0, 1, 1], [], []>} : vector<1x8xbf16>, vector<8x578xbf16>, vector<1x578xf32> -> vector<1x578xf32>
    %228 = arith.addf %223, %227 : vector<1x578xf32>
    %c0_176 = arith.constant 0 : index
    %c2_177 = arith.constant 2 : index
    %229 = vector.load %arg23[%c0_176, %c2_177] : memref<16x614xbf16, #tpu.memory_space<vmem>>, vector<8x578xbf16>
    %c2_178 = arith.constant 2 : index
    %c0_179 = arith.constant 0 : index
    %c0_180 = arith.constant 0 : index
    %230 = vector.load %arg18[%c2_178, %c0_179, %c0_180] : memref<9x1x8xbf16, #tpu.memory_space<vmem>>, vector<1x1x8xbf16>
    %231 = vector.shape_cast %230 : vector<1x1x8xbf16> to vector<1x8xbf16>
    %cst_181 = arith.constant dense<0.000000e+00> : vector<1x578xf32>
    %232 = tpu.matmul %231, %229, %cst_181 {dimension_numbers = #tpu.dot_dimension_numbers<[1], [0], [0], [1], [0, 0, 1, 1], [], []>} : vector<1x8xbf16>, vector<8x578xbf16>, vector<1x578xf32> -> vector<1x578xf32>
    %233 = arith.addf %228, %232 : vector<1x578xf32>
    %c0_182 = arith.constant 0 : index
    %c17_183 = arith.constant 17 : index
    %234 = vector.load %arg23[%c0_182, %c17_183] : memref<16x614xbf16, #tpu.memory_space<vmem>>, vector<8x578xbf16>
    %c3_184 = arith.constant 3 : index
    %c0_185 = arith.constant 0 : index
    %c0_186 = arith.constant 0 : index
    %235 = vector.load %arg18[%c3_184, %c0_185, %c0_186] : memref<9x1x8xbf16, #tpu.memory_space<vmem>>, vector<1x1x8xbf16>
    %236 = vector.shape_cast %235 : vector<1x1x8xbf16> to vector<1x8xbf16>
    %cst_187 = arith.constant dense<0.000000e+00> : vector<1x578xf32>
    %237 = tpu.matmul %236, %234, %cst_187 {dimension_numbers = #tpu.dot_dimension_numbers<[1], [0], [0], [1], [0, 0, 1, 1], [], []>} : vector<1x8xbf16>, vector<8x578xbf16>, vector<1x578xf32> -> vector<1x578xf32>
    %238 = arith.addf %233, %237 : vector<1x578xf32>
    %c0_188 = arith.constant 0 : index
    %c18_189 = arith.constant 18 : index
    %239 = vector.load %arg23[%c0_188, %c18_189] : memref<16x614xbf16, #tpu.memory_space<vmem>>, vector<8x578xbf16>
    %c4_190 = arith.constant 4 : index
    %c0_191 = arith.constant 0 : index
    %c0_192 = arith.constant 0 : index
    %240 = vector.load %arg18[%c4_190, %c0_191, %c0_192] : memref<9x1x8xbf16, #tpu.memory_space<vmem>>, vector<1x1x8xbf16>
    %241 = vector.shape_cast %240 : vector<1x1x8xbf16> to vector<1x8xbf16>
    %cst_193 = arith.constant dense<0.000000e+00> : vector<1x578xf32>
    %242 = tpu.matmul %241, %239, %cst_193 {dimension_numbers = #tpu.dot_dimension_numbers<[1], [0], [0], [1], [0, 0, 1, 1], [], []>} : vector<1x8xbf16>, vector<8x578xbf16>, vector<1x578xf32> -> vector<1x578xf32>
    %243 = arith.addf %238, %242 : vector<1x578xf32>
    %c0_194 = arith.constant 0 : index
    %c19_195 = arith.constant 19 : index
    %244 = vector.load %arg23[%c0_194, %c19_195] : memref<16x614xbf16, #tpu.memory_space<vmem>>, vector<8x578xbf16>
    %c5_196 = arith.constant 5 : index
    %c0_197 = arith.constant 0 : index
    %c0_198 = arith.constant 0 : index
    %245 = vector.load %arg18[%c5_196, %c0_197, %c0_198] : memref<9x1x8xbf16, #tpu.memory_space<vmem>>, vector<1x1x8xbf16>
    %246 = vector.shape_cast %245 : vector<1x1x8xbf16> to vector<1x8xbf16>
    %cst_199 = arith.constant dense<0.000000e+00> : vector<1x578xf32>
    %247 = tpu.matmul %246, %244, %cst_199 {dimension_numbers = #tpu.dot_dimension_numbers<[1], [0], [0], [1], [0, 0, 1, 1], [], []>} : vector<1x8xbf16>, vector<8x578xbf16>, vector<1x578xf32> -> vector<1x578xf32>
    %248 = arith.addf %243, %247 : vector<1x578xf32>
    %c0_200 = arith.constant 0 : index
    %c34_201 = arith.constant 34 : index
    %249 = vector.load %arg23[%c0_200, %c34_201] : memref<16x614xbf16, #tpu.memory_space<vmem>>, vector<8x578xbf16>
    %c6_202 = arith.constant 6 : index
    %c0_203 = arith.constant 0 : index
    %c0_204 = arith.constant 0 : index
    %250 = vector.load %arg18[%c6_202, %c0_203, %c0_204] : memref<9x1x8xbf16, #tpu.memory_space<vmem>>, vector<1x1x8xbf16>
    %251 = vector.shape_cast %250 : vector<1x1x8xbf16> to vector<1x8xbf16>
    %cst_205 = arith.constant dense<0.000000e+00> : vector<1x578xf32>
    %252 = tpu.matmul %251, %249, %cst_205 {dimension_numbers = #tpu.dot_dimension_numbers<[1], [0], [0], [1], [0, 0, 1, 1], [], []>} : vector<1x8xbf16>, vector<8x578xbf16>, vector<1x578xf32> -> vector<1x578xf32>
    %253 = arith.addf %248, %252 : vector<1x578xf32>
    %c0_206 = arith.constant 0 : index
    %c35_207 = arith.constant 35 : index
    %254 = vector.load %arg23[%c0_206, %c35_207] : memref<16x614xbf16, #tpu.memory_space<vmem>>, vector<8x578xbf16>
    %c7_208 = arith.constant 7 : index
    %c0_209 = arith.constant 0 : index
    %c0_210 = arith.constant 0 : index
    %255 = vector.load %arg18[%c7_208, %c0_209, %c0_210] : memref<9x1x8xbf16, #tpu.memory_space<vmem>>, vector<1x1x8xbf16>
    %256 = vector.shape_cast %255 : vector<1x1x8xbf16> to vector<1x8xbf16>
    %cst_211 = arith.constant dense<0.000000e+00> : vector<1x578xf32>
    %257 = tpu.matmul %256, %254, %cst_211 {dimension_numbers = #tpu.dot_dimension_numbers<[1], [0], [0], [1], [0, 0, 1, 1], [], []>} : vector<1x8xbf16>, vector<8x578xbf16>, vector<1x578xf32> -> vector<1x578xf32>
    %258 = arith.addf %253, %257 : vector<1x578xf32>
    %c0_212 = arith.constant 0 : index
    %c36_213 = arith.constant 36 : index
    %259 = vector.load %arg23[%c0_212, %c36_213] : memref<16x614xbf16, #tpu.memory_space<vmem>>, vector<8x578xbf16>
    %c8_214 = arith.constant 8 : index
    %c0_215 = arith.constant 0 : index
    %c0_216 = arith.constant 0 : index
    %260 = vector.load %arg18[%c8_214, %c0_215, %c0_216] : memref<9x1x8xbf16, #tpu.memory_space<vmem>>, vector<1x1x8xbf16>
    %261 = vector.shape_cast %260 : vector<1x1x8xbf16> to vector<1x8xbf16>
    %cst_217 = arith.constant dense<0.000000e+00> : vector<1x578xf32>
    %262 = tpu.matmul %261, %259, %cst_217 {dimension_numbers = #tpu.dot_dimension_numbers<[1], [0], [0], [1], [0, 0, 1, 1], [], []>} : vector<1x8xbf16>, vector<8x578xbf16>, vector<1x578xf32> -> vector<1x578xf32>
    %263 = arith.addf %258, %262 : vector<1x578xf32>
    %c0_218 = arith.constant 0 : index
    %c0_219 = arith.constant 0 : index
    %264 = vector.load %arg19[%c0_218, %c0_219] : memref<1x1xf32, #tpu.memory_space<vmem>>, vector<1x1xf32>
    %265 = vector.broadcast %264 : vector<1x1xf32> to vector<1x578xf32>
    %266 = arith.addf %263, %265 : vector<1x578xf32>
    %267 = math.tanh %266 : vector<1x578xf32>
    %c0_220 = arith.constant 0 : index
    %c0_221 = arith.constant 0 : index
    %268 = vector.load %arg21[%c0_220, %c0_221] : memref<1x578xf32, #tpu.memory_space<vmem>>, vector<1x578xf32>
    %269 = arith.mulf %267, %268 : vector<1x578xf32>
    %cst_222 = arith.constant dense<0.000000e+00> : vector<1xf32>
    %270 = vector.multi_reduction <add>, %269, %cst_222 [1] : vector<1x578xf32> to vector<1xf32>
    %271 = vector.shape_cast %270 : vector<1xf32> to vector<1x1xf32>
    %272 = arith.mulf %269, %269 : vector<1x578xf32>
    %cst_223 = arith.constant dense<0.000000e+00> : vector<1xf32>
    %273 = vector.multi_reduction <add>, %272, %cst_223 [1] : vector<1x578xf32> to vector<1xf32>
    %274 = vector.shape_cast %273 : vector<1xf32> to vector<1x1xf32>
    %cst_224 = arith.constant 0.001953125 : f32
    %275 = vector.broadcast %cst_224 : f32 to vector<1x1xf32>
    %276 = arith.mulf %271, %275 : vector<1x1xf32>
    %cst_225 = arith.constant 0.001953125 : f32
    %277 = vector.broadcast %cst_225 : f32 to vector<1x1xf32>
    %278 = arith.mulf %274, %277 : vector<1x1xf32>
    %279 = arith.mulf %276, %276 : vector<1x1xf32>
    %280 = arith.subf %278, %279 : vector<1x1xf32>
    %cst_226 = arith.constant 9.99999974E-6 : f32
    %281 = vector.broadcast %cst_226 : f32 to vector<1x1xf32>
    %282 = arith.addf %280, %281 : vector<1x1xf32>
    %283 = math.rsqrt %282 : vector<1x1xf32>
    %284 = vector.broadcast %276 : vector<1x1xf32> to vector<1x578xf32>
    %285 = arith.subf %267, %284 : vector<1x578xf32>
    %286 = vector.broadcast %283 : vector<1x1xf32> to vector<1x578xf32>
    %287 = arith.mulf %285, %286 : vector<1x578xf32>
    %c0_227 = arith.constant 0 : index
    %c0_228 = arith.constant 0 : index
    %288 = vector.load %arg22[%c0_227, %c0_228] : memref<1x578xf32, #tpu.memory_space<vmem>>, vector<1x578xf32>
    tpu.vector_store %arg22[%c0_227, %c0_228], %287 {strides = array<i32>} : memref<1x578xf32, #tpu.memory_space<vmem>>, vector<1x578xf32>,
    return
  }
}

</mosaic_0001>

<llo_original>
// kernel: generator_forward.1
$region0: #{generator_forward.1}
  #allocation0 [shape = 'u32[]', space=smem, size = 0x4, offset = 0x4, fixed_abs, tag = 'smem constant byte address 0x4 - core index']
  #allocation1 [shape = 'u32[144,128]{1,0:T(1,128)}', space=vmem, size = 0x12000, scoped, tag = 'internal scratch']
  #allocation2 [shape = 'bf16[16,614]{1,0:T(16,128)(2,1)}', space=vmem, size = 0x5000, scoped, tag = 'scratch operand']
  #allocation3 [shape = 'f32[1,1]{1,0:T(1,128)S(1)}', space=vmem, size = 0x200, scoped, tag = 'scoped memory for generator_forward.1']
  %s0 = inlined_call_operand.vmem [shape: bf16[16,2], index: 0, kind: input, shape index: {}]
  %s1 = inlined_call_operand.vmem [shape: bf16[256,16], index: 1, kind: input, shape index: {}]
  %s2 = inlined_call_operand.vmem [shape: f32[256,1], index: 2, kind: input, shape index: {}]
  %s3 = inlined_call_operand.vmem [shape: bf16[16,256], index: 3, kind: input, shape index: {}]
  %s4 = inlined_call_operand.vmem [shape: f32[256,32], index: 4, kind: input, shape index: {}]
  %s5 = inlined_call_operand.vmem [shape: bf16[2,32], index: 5, kind: input, shape index: {}]
  %s6 = inlined_call_operand.vmem [shape: f32[16,1], index: 6, kind: input, shape index: {}]
  %s7 = inlined_call_operand.vmem [shape: f32[16,1], index: 7, kind: input, shape index: {}]
  %s8 = inlined_call_operand.vmem [shape: bf16[16,81], index: 8, kind: input, shape index: {}]
  %s9 = inlined_call_operand.vmem [shape: bf16[9,16,16], index: 9, kind: input, shape index: {}]
  %s10 = inlined_call_operand.vmem [shape: f32[16,1], index: 10, kind: input, shape index: {}]
  %s11 = inlined_call_operand.vmem [shape: f32[16,1], index: 11, kind: input, shape index: {}]
  %s12 = inlined_call_operand.vmem [shape: f32[16,1], index: 12, kind: input, shape index: {}]
  %s13 = inlined_call_operand.vmem [shape: bf16[81,289], index: 13, kind: input, shape index: {}]
  %s14 = inlined_call_operand.vmem [shape: bf16[9,8,16], index: 14, kind: input, shape index: {}]
  %s15 = inlined_call_operand.vmem [shape: f32[8,1], index: 15, kind: input, shape index: {}]
  %s16 = inlined_call_operand.vmem [shape: f32[8,1], index: 16, kind: input, shape index: {}]
  %s17 = inlined_call_operand.vmem [shape: f32[8,1], index: 17, kind: input, shape index: {}]
  %s18 = inlined_call_operand.vmem [shape: bf16[9,1,8], index: 18, kind: input, shape index: {}]
  %s19 = inlined_call_operand.<no memory space> [shape: f32[1,1], index: 19, kind: input, shape index: {}]
  %s20 = inlined_call_operand.vmem [shape: f32[1,162], index: 20, kind: input, shape index: {}]
  %s21 = inlined_call_operand.vmem [shape: f32[1,578], index: 21, kind: input, shape index: {}]
  %s22 = inlined_call_operand.vmem [shape: f32[1,578], index: 22, kind: output, shape index: {}]
  %s23 = sld [smem:[#allocation0]]
  $region98: #{generator_forward.1} parent=0
    _
  %s25 = ssub.s32 1, %s23
  %s26 = scalar_select 0, %s25, %s23
  %v27 = vstv %s19
  %28 = vst [vmem:[#allocation3] sm:$0x1] %v27
  // Predicated region
  $region2: #{generator_forward.1} parent=0 // pred_check
    _
  $region3: #{generator_forward.1} parent=0 // pred_check_branch
    %30 = sbr.rel (0) target = $region5
  $region4: #{generator_forward.1} parent=0 // pred_region
    _
  $region5: #{generator_forward.1} parent=0 // pred_fallthru
    _
  // Predicated region
  $region6: #{generator_forward.1} parent=0 // pred_check
    _
  $region7: #{generator_forward.1} parent=0 // pred_check_branch
    %32 = sbr.rel (0) target = $region9
  $region8: #{generator_forward.1} parent=0 // pred_region
    _
  $region9: #{generator_forward.1} parent=0 // pred_fallthru
    _
  // Predicated region
  $region10: #{generator_forward.1} parent=0 // pred_check
    _
  $region11: #{generator_forward.1} parent=0 // pred_check_branch
    %34 = sbr.rel (0) target = $region13
  $region12: #{generator_forward.1} parent=0 // pred_region
    _
  $region13: #{generator_forward.1} parent=0 // pred_fallthru
    _
  // Predicated region
  $region14: #{generator_forward.1} parent=0 // pred_check
    _
  $region15: #{generator_forward.1} parent=0 // pred_check_branch
    %36 = sbr.rel (0) target = $region17
  $region16: #{generator_forward.1} parent=0 // pred_region
    _
  $region17: #{generator_forward.1} parent=0 // pred_fallthru
    _
  // Predicated region
  $region18: #{generator_forward.1} parent=0 // pred_check
    _
  $region19: #{generator_forward.1} parent=0 // pred_check_branch
    %38 = sbr.rel (0) target = $region21
  $region20: #{generator_forward.1} parent=0 // pred_region
    _
  $region21: #{generator_forward.1} parent=0 // pred_fallthru
    _
  // Predicated region
  $region22: #{generator_forward.1} parent=0 // pred_check
    _
  $region23: #{generator_forward.1} parent=0 // pred_check_branch
    %40 = sbr.rel (0) target = $region25
  $region24: #{generator_forward.1} parent=0 // pred_region
    _
  $region25: #{generator_forward.1} parent=0 // pred_fallthru
    _
  // Predicated region
  $region26: #{generator_forward.1} parent=0 // pred_check
    _
  $region27: #{generator_forward.1} parent=0 // pred_check_branch
    %42 = sbr.rel (0) target = $region29
  $region28: #{generator_forward.1} parent=0 // pred_region
    _
  $region29: #{generator_forward.1} parent=0 // pred_fallthru
    _
  // Predicated region
  $region30: #{generator_forward.1} parent=0 // pred_check
    _
  $region31: #{generator_forward.1} parent=0 // pred_check_branch
    %44 = sbr.rel (0) target = $region33
  $region32: #{generator_forward.1} parent=0 // pred_region
    _
  $region33: #{generator_forward.1} parent=0 // pred_fallthru
    _
  // Predicated region
  $region34: #{generator_forward.1} parent=0 // pred_check
    _
  $region35: #{generator_forward.1} parent=0 // pred_check_branch
    %46 = sbr.rel (0) target = $region37
  $region36: #{generator_forward.1} parent=0 // pred_region
    _
  $region37: #{generator_forward.1} parent=0 // pred_fallthru
    _
  // Predicated region
  $region38: #{generator_forward.1} parent=0 // pred_check
    _
  $region39: #{generator_forward.1} parent=0 // pred_check_branch
    %48 = sbr.rel (0) target = $region41
  $region40: #{generator_forward.1} parent=0 // pred_region
    _
  $region41: #{generator_forward.1} parent=0 // pred_fallthru
    _
  // Predicated region
  $region42: #{generator_forward.1} parent=0 // pred_check
    _
  $region43: #{generator_forward.1} parent=0 // pred_check_branch
    %50 = sbr.rel (0) target = $region45
  $region44: #{generator_forward.1} parent=0 // pred_region
    _
  $region45: #{generator_forward.1} parent=0 // pred_fallthru
    _
  // Predicated region
  $region46: #{generator_forward.1} parent=0 // pred_check
    _
  $region47: #{generator_forward.1} parent=0 // pred_check_branch
    %52 = sbr.rel (0) target = $region49
  $region48: #{generator_forward.1} parent=0 // pred_region
    _
  $region49: #{generator_forward.1} parent=0 // pred_fallthru
    _
  // Predicated region
  $region50: #{generator_forward.1} parent=0 // pred_check
    _
  $region51: #{generator_forward.1} parent=0 // pred_check_branch
    %54 = sbr.rel (0) target = $region53
  $region52: #{generator_forward.1} parent=0 // pred_region
    _
  $region53: #{generator_forward.1} parent=0 // pred_fallthru
    _
  // Predicated region
  $region54: #{generator_forward.1} parent=0 // pred_check
    _
  $region55: #{generator_forward.1} parent=0 // pred_check_branch
    %56 = sbr.rel (0) target = $region57
  $region56: #{generator_forward.1} parent=0 // pred_region
    _
  $region57: #{generator_forward.1} parent=0 // pred_fallthru
    _
  // Predicated region
  $region58: #{generator_forward.1} parent=0 // pred_check
    _
  $region59: #{generator_forward.1} parent=0 // pred_check_branch
    %58 = sbr.rel (0) target = $region61
  $region60: #{generator_forward.1} parent=0 // pred_region
    _
  $region61: #{generator_forward.1} parent=0 // pred_fallthru
    _
  // Predicated region
  $region62: #{generator_forward.1} parent=0 // pred_check
    _
  $region63: #{generator_forward.1} parent=0 // pred_check_branch
    %60 = sbr.rel (0) target = $region65
  $region64: #{generator_forward.1} parent=0 // pred_region
    _
  $region65: #{generator_forward.1} parent=0 // pred_fallthru
    _
  // Predicated region
  $region66: #{generator_forward.1} parent=0 // pred_check
    _
  $region67: #{generator_forward.1} parent=0 // pred_check_branch
    %62 = sbr.rel (0) target = $region69
  $region68: #{generator_forward.1} parent=0 // pred_region
    _
  $region69: #{generator_forward.1} parent=0 // pred_fallthru
    _
  // Predicated region
  $region70: #{generator_forward.1} parent=0 // pred_check
    _
  $region71: #{generator_forward.1} parent=0 // pred_check_branch
    %64 = sbr.rel (0) target = $region73
  $region72: #{generator_forward.1} parent=0 // pred_region
    _
  $region73: #{generator_forward.1} parent=0 // pred_fallthru
    _
  // Predicated region
  $region74: #{generator_forward.1} parent=0 // pred_check
    _
  $region75: #{generator_forward.1} parent=0 // pred_check_branch
    %66 = sbr.rel (0) target = $region77
  $region76: #{generator_forward.1} parent=0 // pred_region
    _
  $region77: #{generator_forward.1} parent=0 // pred_fallthru
    _
  // Predicated region
  $region78: #{generator_forward.1} parent=0 // pred_check
    _
  $region79: #{generator_forward.1} parent=0 // pred_check_branch
    %68 = sbr.rel (0) target = $region81
  $region80: #{generator_forward.1} parent=0 // pred_region
    _
  $region81: #{generator_forward.1} parent=0 // pred_fallthru
    _
  // Predicated region
  $region82: #{generator_forward.1} parent=0 // pred_check
    _
  $region83: #{generator_forward.1} parent=0 // pred_check_branch
    %70 = sbr.rel (0) target = $region85
  $region84: #{generator_forward.1} parent=0 // pred_region
    _
  $region85: #{generator_forward.1} parent=0 // pred_fallthru
    _
  // Predicated region
  $region86: #{generator_forward.1} parent=0 // pred_check
    _
  $region87: #{generator_forward.1} parent=0 // pred_check_branch
    %72 = sbr.rel (0) target = $region89
  $region88: #{generator_forward.1} parent=0 // pred_region
    _
  $region89: #{generator_forward.1} parent=0 // pred_fallthru
    _
  %74 = vst [vmem:[#allocation2] sm:$0xff] 0
  %75 = vst [vmem:[#allocation2 + $0x8] sm:$0xff] 0
  %76 = vst [vmem:[#allocation2 + $0x10] sm:$0xff] 0
  %77 = vst [vmem:[#allocation2 + $0x18] sm:$0xff] 0
  %vm78 = vcmask 834560
  %79 = vst.msk [vmem:[#allocation2 + $0x20] sm:$0xff] %vm78, 0
  %v80 = vld [vmem:[%s1] sm:$0xf]
  %v81 = vld [vmem:[%s1 + $0x4] sm:$0xf]
  %v82 = vld [vmem:[%s1 + $0x8] sm:$0xf]
  %v83 = vld [vmem:[%s1 + $0xc] sm:$0xf]
  %v84 = vld [vmem:[%s1 + $0x10] sm:$0xf]
  %v85 = vld [vmem:[%s1 + $0x14] sm:$0xf]
  %v86 = vld [vmem:[%s1 + $0x18] sm:$0xf]
  %v87 = vld [vmem:[%s1 + $0x1c] sm:$0xf]
  %v88 = vld [vmem:[%s1 + $0x20] sm:$0xf]
  %v89 = vld [vmem:[%s1 + $0x24] sm:$0xf]
  %v90 = vld [vmem:[%s1 + $0x28] sm:$0xf]
  %v91 = vld [vmem:[%s1 + $0x2c] sm:$0xf]
  %v92 = vld [vmem:[%s1 + $0x30] sm:$0xf]
  %v93 = vld [vmem:[%s1 + $0x34] sm:$0xf]
  %v94 = vld [vmem:[%s1 + $0x38] sm:$0xf]
  %v95 = vld [vmem:[%s1 + $0x3c] sm:$0xf]
  %v96 = vld [vmem:[%s1 + $0x40] sm:$0xf]
  %v97 = vld [vmem:[%s1 + $0x44] sm:$0xf]
  %v98 = vld [vmem:[%s1 + $0x48] sm:$0xf]
  %v99 = vld [vmem:[%s1 + $0x4c] sm:$0xf]
  %v100 = vld [vmem:[%s1 + $0x50] sm:$0xf]
  %v101 = vld [vmem:[%s1 + $0x54] sm:$0xf]
  %v102 = vld [vmem:[%s1 + $0x58] sm:$0xf]
  %v103 = vld [vmem:[%s1 + $0x5c] sm:$0xf]
  %v104 = vld [vmem:[%s1 + $0x60] sm:$0xf]
  %v105 = vld [vmem:[%s1 + $0x64] sm:$0xf]
  %v106 = vld [vmem:[%s1 + $0x68] sm:$0xf]
  %v107 = vld [vmem:[%s1 + $0x6c] sm:$0xf]
  %v108 = vld [vmem:[%s1 + $0x70] sm:$0xf]
  %v109 = vld [vmem:[%s1 + $0x74] sm:$0xf]
  %v110 = vld [vmem:[%s1 + $0x78] sm:$0xf]
  %v111 = vld [vmem:[%s1 + $0x7c] sm:$0xf]
  %v112 = vld [vmem:[%s0] sm:$0xf]
  %v113 = vld [vmem:[%s0 + $0x4] sm:$0xf]
  %v114 = vld [vmem:[%s2] sm:$0xff]
  %v115 = vld [vmem:[%s2 + $0x8] sm:$0xff]
  %v116 = vld [vmem:[%s2 + $0x10] sm:$0xff]
  %v117 = vld [vmem:[%s2 + $0x18] sm:$0xff]
  %v118 = vld [vmem:[%s2 + $0x20] sm:$0xff]
  %v119 = vld [vmem:[%s2 + $0x28] sm:$0xff]
  %v120 = vld [vmem:[%s2 + $0x30] sm:$0xff]
  %v121 = vld [vmem:[%s2 + $0x38] sm:$0xff]
  %v122 = vld [vmem:[%s2 + $0x40] sm:$0xff]
  %v123 = vld [vmem:[%s2 + $0x48] sm:$0xff]
  %v124 = vld [vmem:[%s2 + $0x50] sm:$0xff]
  %v125 = vld [vmem:[%s2 + $0x58] sm:$0xff]
  %v126 = vld [vmem:[%s2 + $0x60] sm:$0xff]
  %v127 = vld [vmem:[%s2 + $0x68] sm:$0xff]
  %v128 = vld [vmem:[%s2 + $0x70] sm:$0xff]
  %v129 = vld [vmem:[%s2 + $0x78] sm:$0xff]
  %v130 = vld [vmem:[%s2 + $0x80] sm:$0xff]
  %v131 = vld [vmem:[%s2 + $0x88] sm:$0xff]
  %v132 = vld [vmem:[%s2 + $0x90] sm:$0xff]
  %v133 = vld [vmem:[%s2 + $0x98] sm:$0xff]
  %v134 = vld [vmem:[%s2 + $0xa0] sm:$0xff]
  %v135 = vld [vmem:[%s2 + $0xa8] sm:$0xff]
  %v136 = vld [vmem:[%s2 + $0xb0] sm:$0xff]
  %v137 = vld [vmem:[%s2 + $0xb8] sm:$0xff]
  %v138 = vld [vmem:[%s2 + $0xc0] sm:$0xff]
  %v139 = vld [vmem:[%s2 + $0xc8] sm:$0xff]
  %v140 = vld [vmem:[%s2 + $0xd0] sm:$0xff]
  %v141 = vld [vmem:[%s2 + $0xd8] sm:$0xff]
  %v142 = vld [vmem:[%s2 + $0xe0] sm:$0xff]
  %v143 = vld [vmem:[%s2 + $0xe8] sm:$0xff]
  %v144 = vld [vmem:[%s2 + $0xf0] sm:$0xff]
  %v145 = vld [vmem:[%s2 + $0xf8] sm:$0xff]
  %147 = vset.pattern.permute.xlu0 0
  %148 = vperm.xlu0 %147, %v114
  %v149 = vpop.permute.xlu0 %148
  %152 = vset.pattern.permute.xlu0 0
  %153 = vperm.xlu0 %152, %v115
  %v154 = vpop.permute.xlu0 %153
  %157 = vset.pattern.permute.xlu0 0
  %158 = vperm.xlu0 %157, %v116
  %v159 = vpop.permute.xlu0 %158
  %162 = vset.pattern.permute.xlu0 0
  %163 = vperm.xlu0 %162, %v117
  %v164 = vpop.permute.xlu0 %163
  %167 = vset.pattern.permute.xlu0 0
  %168 = vperm.xlu0 %167, %v118
  %v169 = vpop.permute.xlu0 %168
  %172 = vset.pattern.permute.xlu0 0
  %173 = vperm.xlu0 %172, %v119
  %v174 = vpop.permute.xlu0 %173
  %177 = vset.pattern.permute.xlu0 0
  %178 = vperm.xlu0 %177, %v120
  %v179 = vpop.permute.xlu0 %178
  %182 = vset.pattern.permute.xlu0 0
  %183 = vperm.xlu0 %182, %v121
  %v184 = vpop.permute.xlu0 %183
  %187 = vset.pattern.permute.xlu0 0
  %188 = vperm.xlu0 %187, %v122
  %v189 = vpop.permute.xlu0 %188
  %192 = vset.pattern.permute.xlu0 0
  %193 = vperm.xlu0 %192, %v123
  %v194 = vpop.permute.xlu0 %193
  %197 = vset.pattern.permute.xlu0 0
  %198 = vperm.xlu0 %197, %v124
  %v199 = vpop.permute.xlu0 %198
  %202 = vset.pattern.permute.xlu0 0
  %203 = vperm.xlu0 %202, %v125
  %v204 = vpop.permute.xlu0 %203
  %207 = vset.pattern.permute.xlu0 0
  %208 = vperm.xlu0 %207, %v126
  %v209 = vpop.permute.xlu0 %208
  %212 = vset.pattern.permute.xlu0 0
  %213 = vperm.xlu0 %212, %v127
  %v214 = vpop.permute.xlu0 %213
  %217 = vset.pattern.permute.xlu0 0
  %218 = vperm.xlu0 %217, %v128
  %v219 = vpop.permute.xlu0 %218
  %222 = vset.pattern.permute.xlu0 0
  %223 = vperm.xlu0 %222, %v129
  %v224 = vpop.permute.xlu0 %223
  %227 = vset.pattern.permute.xlu0 0
  %228 = vperm.xlu0 %227, %v130
  %v229 = vpop.permute.xlu0 %228
  %232 = vset.pattern.permute.xlu0 0
  %233 = vperm.xlu0 %232, %v131
  %v234 = vpop.permute.xlu0 %233
  %237 = vset.pattern.permute.xlu0 0
  %238 = vperm.xlu0 %237, %v132
  %v239 = vpop.permute.xlu0 %238
  %242 = vset.pattern.permute.xlu0 0
  %243 = vperm.xlu0 %242, %v133
  %v244 = vpop.permute.xlu0 %243
  %247 = vset.pattern.permute.xlu0 0
  %248 = vperm.xlu0 %247, %v134
  %v249 = vpop.permute.xlu0 %248
  %252 = vset.pattern.permute.xlu0 0
  %253 = vperm.xlu0 %252, %v135
  %v254 = vpop.permute.xlu0 %253
  %257 = vset.pattern.permute.xlu0 0
  %258 = vperm.xlu0 %257, %v136
  %v259 = vpop.permute.xlu0 %258
  %262 = vset.pattern.permute.xlu0 0
  %263 = vperm.xlu0 %262, %v137
  %v264 = vpop.permute.xlu0 %263
  %267 = vset.pattern.permute.xlu0 0
  %268 = vperm.xlu0 %267, %v138
  %v269 = vpop.permute.xlu0 %268
  %272 = vset.pattern.permute.xlu0 0
  %273 = vperm.xlu0 %272, %v139
  %v274 = vpop.permute.xlu0 %273
  %277 = vset.pattern.permute.xlu0 0
  %278 = vperm.xlu0 %277, %v140
  %v279 = vpop.permute.xlu0 %278
  %282 = vset.pattern.permute.xlu0 0
  %283 = vperm.xlu0 %282, %v141
  %v284 = vpop.permute.xlu0 %283
  %287 = vset.pattern.permute.xlu0 0
  %288 = vperm.xlu0 %287, %v142
  %v289 = vpop.permute.xlu0 %288
  %292 = vset.pattern.permute.xlu0 0
  %293 = vperm.xlu0 %292, %v143
  %v294 = vpop.permute.xlu0 %293
  %297 = vset.pattern.permute.xlu0 0
  %298 = vperm.xlu0 %297, %v144
  %v299 = vpop.permute.xlu0 %298
  %302 = vset.pattern.permute.xlu0 0
  %303 = vperm.xlu0 %302, %v145
  %v304 = vpop.permute.xlu0 %303
  %v338 = vunpack.c.l.b16 %v80
  %v339 = vunpack.c.l.b16 %v81
  %v340 = vunpack.c.l.b16 %v82
  %v341 = vunpack.c.l.b16 %v83
  %v342 = vunpack.c.l.b16 %v84
  %v343 = vunpack.c.l.b16 %v85
  %v344 = vunpack.c.l.b16 %v86
  %v345 = vunpack.c.l.b16 %v87
  %v346 = vunpack.c.l.b16 %v88
  %v347 = vunpack.c.l.b16 %v89
  %v348 = vunpack.c.l.b16 %v90
  %v349 = vunpack.c.l.b16 %v91
  %v350 = vunpack.c.l.b16 %v92
  %v351 = vunpack.c.l.b16 %v93
  %v352 = vunpack.c.l.b16 %v94
  %v353 = vunpack.c.l.b16 %v95
  %v354 = vunpack.c.l.b16 %v96
  %v355 = vunpack.c.l.b16 %v97
  %v356 = vunpack.c.l.b16 %v98
  %v357 = vunpack.c.l.b16 %v99
  %v358 = vunpack.c.l.b16 %v100
  %v359 = vunpack.c.l.b16 %v101
  %v360 = vunpack.c.l.b16 %v102
  %v361 = vunpack.c.l.b16 %v103
  %v362 = vunpack.c.l.b16 %v104
  %v363 = vunpack.c.l.b16 %v105
  %v364 = vunpack.c.l.b16 %v106
  %v365 = vunpack.c.l.b16 %v107
  %v366 = vunpack.c.l.b16 %v108
  %v367 = vunpack.c.l.b16 %v109
  %v368 = vunpack.c.l.b16 %v110
  %v369 = vunpack.c.l.b16 %v111
  %v370 = vpack.c.b16 %v339, %v338
  %v371 = vpack.c.b16 %v341, %v340
  %v372 = vpack.c.b16 %v343, %v342
  %v373 = vpack.c.b16 %v345, %v344
  %v374 = vpack.c.b16 %v347, %v346
  %v375 = vpack.c.b16 %v349, %v348
  %v376 = vpack.c.b16 %v351, %v350
  %v377 = vpack.c.b16 %v353, %v352
  %v378 = vpack.c.b16 %v355, %v354
  %v379 = vpack.c.b16 %v357, %v356
  %v380 = vpack.c.b16 %v359, %v358
  %v381 = vpack.c.b16 %v361, %v360
  %v382 = vpack.c.b16 %v363, %v362
  %v383 = vpack.c.b16 %v365, %v364
  %v384 = vpack.c.b16 %v367, %v366
  %v385 = vpack.c.b16 %v369, %v368
  %v388 = vunpack.c.l.b16 %v112
  %v389 = vunpack.c.l.b16 %v113
  %v390 = vpack.c.b16 %v389, %v388
  %vm392 = vcmask 130048
  %v394 = vsel %vm392, %v370, 0
  %v397 = vsel %vm392, %v371, 0
  %v400 = vsel %vm392, %v372, 0
  %v403 = vsel %vm392, %v373, 0
  %v406 = vsel %vm392, %v374, 0
  %v409 = vsel %vm392, %v375, 0
  %v412 = vsel %vm392, %v376, 0
  %v415 = vsel %vm392, %v377, 0
  %v418 = vsel %vm392, %v378, 0
  %v421 = vsel %vm392, %v379, 0
  %v424 = vsel %vm392, %v380, 0
  %v427 = vsel %vm392, %v381, 0
  %v430 = vsel %vm392, %v382, 0
  %v433 = vsel %vm392, %v383, 0
  %v436 = vsel %vm392, %v384, 0
  %v439 = vsel %vm392, %v385, 0
  %441 = vmatprep.subr.bf16.mxu0 0
  %442 = vmatpush1.bf16.msra.mxu0 %v390
  %443 = vmatprep.subr.bf16.mxu0 0
  %444 = vmatpush1.bf16.msra.mxu0 0
  %445 = vmatprep.subr.bf16.mxu0 0
  %446 = vmatpush1.bf16.msra.mxu0 0
  %447 = vmatprep.subr.bf16.mxu0 0
  %448 = vmatpush1.bf16.msra.mxu0 0
  %449 = vmatprep.subr.bf16.mxu0 0
  %450 = vmatpush1.bf16.msra.mxu0 0
  %451 = vmatprep.subr.bf16.mxu0 0
  %452 = vmatpush1.bf16.msra.mxu0 0
  %453 = vmatprep.subr.bf16.mxu0 0
  %454 = vmatpush1.bf16.msra.mxu0 0
  %455 = vmatprep.subr.bf16.mxu0 0
  %456 = vmatpush1.bf16.msra.mxu0 0
  %457 = vmatprep.subr.bf16.mxu0 0
  %458 = vmatpush1.bf16.msra.mxu0 0
  %459 = vmatprep.subr.bf16.mxu0 0
  %460 = vmatpush1.bf16.msra.mxu0 0
  %461 = vmatprep.subr.bf16.mxu0 0
  %462 = vmatpush1.bf16.msra.mxu0 0
  %463 = vmatprep.subr.bf16.mxu0 0
  %464 = vmatpush1.bf16.msra.mxu0 0
  %465 = vmatprep.subr.bf16.mxu0 0
  %466 = vmatpush1.bf16.msra.mxu0 0
  %467 = vmatprep.subr.bf16.mxu0 0
  %468 = vmatpush1.bf16.msra.mxu0 0
  %469 = vmatprep.subr.bf16.mxu0 0
  %470 = vmatpush1.bf16.msra.mxu0 0
  %471 = vmatprep.subr.bf16.mxu0 0
  %472 = vmatpush1.bf16.msra.mxu0 0
  %473 = vmatprep.mubr.bf16.mxu0 0
  %474 = vmatmul.mubr.bf16.gmra.mrb[0].mxu0 %v394
  %v475 = vpop.f32.mrb[0].mxu0
  %v476 = vadd.f32 %v149, %v475
  %v477 = vpop.f32.mrb[0].mxu0
  %v478 = vpop.f32.mrb[0].mxu0
  %v479 = vadd.f32 %v154, %v478
  %v480 = vpop.f32.mrb[0].mxu0
  %481 = vmatprep.mubr.bf16.mxu0 0
  %482 = vmatmul.mubr.bf16.gmra.mrb[0].mxu0 %v397
  %v483 = vpop.f32.mrb[0].mxu0
  %v484 = vadd.f32 %v159, %v483
  %v485 = vpop.f32.mrb[0].mxu0
  %v486 = vpop.f32.mrb[0].mxu0
  %v487 = vadd.f32 %v164, %v486
  %v488 = vpop.f32.mrb[0].mxu0
  %489 = vmatprep.mubr.bf16.mxu0 0
  %490 = vmatmul.mubr.bf16.gmra.mrb[0].mxu0 %v400
  %v491 = vpop.f32.mrb[0].mxu0
  %v492 = vadd.f32 %v169, %v491
  %v493 = vpop.f32.mrb[0].mxu0
  %v494 = vpop.f32.mrb[0].mxu0
  %v495 = vadd.f32 %v174, %v494
  %v496 = vpop.f32.mrb[0].mxu0
  %497 = vmatprep.mubr.bf16.mxu0 0
  %498 = vmatmul.mubr.bf16.gmra.mrb[0].mxu0 %v403
  %v499 = vpop.f32.mrb[0].mxu0
  %v500 = vadd.f32 %v179, %v499
  %v501 = vpop.f32.mrb[0].mxu0
  %v502 = vpop.f32.mrb[0].mxu0
  %v503 = vadd.f32 %v184, %v502
  %v504 = vpop.f32.mrb[0].mxu0
  %505 = vmatprep.mubr.bf16.mxu0 0
  %506 = vmatmul.mubr.bf16.gmra.mrb[0].mxu0 %v406
  %v507 = vpop.f32.mrb[0].mxu0
  %v508 = vadd.f32 %v189, %v507
  %v509 = vpop.f32.mrb[0].mxu0
  %v510 = vpop.f32.mrb[0].mxu0
  %v511 = vadd.f32 %v194, %v510
  %v512 = vpop.f32.mrb[0].mxu0
  %513 = vmatprep.mubr.bf16.mxu0 0
  %514 = vmatmul.mubr.bf16.gmra.mrb[0].mxu0 %v409
  %v515 = vpop.f32.mrb[0].mxu0
  %v516 = vadd.f32 %v199, %v515
  %v517 = vpop.f32.mrb[0].mxu0
  %v518 = vpop.f32.mrb[0].mxu0
  %v519 = vadd.f32 %v204, %v518
  %v520 = vpop.f32.mrb[0].mxu0
  %521 = vmatprep.mubr.bf16.mxu0 0
  %522 = vmatmul.mubr.bf16.gmra.mrb[0].mxu0 %v412
  %v523 = vpop.f32.mrb[0].mxu0
  %v524 = vadd.f32 %v209, %v523
  %v525 = vpop.f32.mrb[0].mxu0
  %v526 = vpop.f32.mrb[0].mxu0
  %v527 = vadd.f32 %v214, %v526
  %v528 = vpop.f32.mrb[0].mxu0
  %529 = vmatprep.mubr.bf16.mxu0 0
  %530 = vmatmul.mubr.bf16.gmra.mrb[0].mxu0 %v415
  %v531 = vpop.f32.mrb[0].mxu0
  %v532 = vadd.f32 %v219, %v531
  %v533 = vpop.f32.mrb[0].mxu0
  %v534 = vpop.f32.mrb[0].mxu0
  %v535 = vadd.f32 %v224, %v534
  %v536 = vpop.f32.mrb[0].mxu0
  %537 = vmatprep.mubr.bf16.mxu0 0
  %538 = vmatmul.mubr.bf16.gmra.mrb[0].mxu0 %v418
  %v539 = vpop.f32.mrb[0].mxu0
  %v540 = vadd.f32 %v229, %v539
  %v541 = vpop.f32.mrb[0].mxu0
  %v542 = vpop.f32.mrb[0].mxu0
  %v543 = vadd.f32 %v234, %v542
  %v544 = vpop.f32.mrb[0].mxu0
  %545 = vmatprep.mubr.bf16.mxu0 0
  %546 = vmatmul.mubr.bf16.gmra.mrb[0].mxu0 %v421
  %v547 = vpop.f32.mrb[0].mxu0
  %v548 = vadd.f32 %v239, %v547
  %v549 = vpop.f32.mrb[0].mxu0
  %v550 = vpop.f32.mrb[0].mxu0
  %v551 = vadd.f32 %v244, %v550
  %v552 = vpop.f32.mrb[0].mxu0
  %553 = vmatprep.mubr.bf16.mxu0 0
  %554 = vmatmul.mubr.bf16.gmra.mrb[0].mxu0 %v424
  %v555 = vpop.f32.mrb[0].mxu0
  %v556 = vadd.f32 %v249, %v555
  %v557 = vpop.f32.mrb[0].mxu0
  %v558 = vpop.f32.mrb[0].mxu0
  %v559 = vadd.f32 %v254, %v558
  %v560 = vpop.f32.mrb[0].mxu0
  %561 = vmatprep.mubr.bf16.mxu0 0
  %562 = vmatmul.mubr.bf16.gmra.mrb[0].mxu0 %v427
  %v563 = vpop.f32.mrb[0].mxu0
  %v564 = vadd.f32 %v259, %v563
  %v565 = vpop.f32.mrb[0].mxu0
  %v566 = vpop.f32.mrb[0].mxu0
  %v567 = vadd.f32 %v264, %v566
  %v568 = vpop.f32.mrb[0].mxu0
  %569 = vmatprep.mubr.bf16.mxu0 0
  %570 = vmatmul.mubr.bf16.gmra.mrb[0].mxu0 %v430
  %v571 = vpop.f32.mrb[0].mxu0
  %v572 = vadd.f32 %v269, %v571
  %v573 = vpop.f32.mrb[0].mxu0
  %v574 = vpop.f32.mrb[0].mxu0
  %v575 = vadd.f32 %v274, %v574
  %v576 = vpop.f32.mrb[0].mxu0
  %577 = vmatprep.mubr.bf16.mxu0 0
  %578 = vmatmul.mubr.bf16.gmra.mrb[0].mxu0 %v433
  %v579 = vpop.f32.mrb[0].mxu0
  %v580 = vadd.f32 %v279, %v579
  %v581 = vpop.f32.mrb[0].mxu0
  %v582 = vpop.f32.mrb[0].mxu0
  %v583 = vadd.f32 %v284, %v582
  %v584 = vpop.f32.mrb[0].mxu0
  %585 = vmatprep.mubr.bf16.mxu0 0
  %586 = vmatmul.mubr.bf16.gmra.mrb[0].mxu0 %v436
  %v587 = vpop.f32.mrb[0].mxu0
  %v588 = vadd.f32 %v289, %v587
  %v589 = vpop.f32.mrb[0].mxu0
  %v590 = vpop.f32.mrb[0].mxu0
  %v591 = vadd.f32 %v294, %v590
  %v592 = vpop.f32.mrb[0].mxu0
  %593 = vmatprep.mubr.bf16.mxu0 0
  %594 = vmatmul.mubr.bf16.gmra.mrb[0].mxu0 %v439
  %v595 = vpop.f32.mrb[0].mxu0
  %v596 = vadd.f32 %v299, %v595
  %v597 = vpop.f32.mrb[0].mxu0
  %v598 = vpop.f32.mrb[0].mxu0
  %v599 = vadd.f32 %v304, %v598
  %v600 = vpop.f32.mrb[0].mxu0
  %601 = vdwg.mxu0
  %v602 = vpack.c.bf16 %v479, %v476
  %v603 = vpack.c.bf16 %v487, %v484
  %v604 = vpack.c.bf16 %v495, %v492
  %v605 = vpack.c.bf16 %v503, %v500
  %v606 = vpack.c.bf16 %v511, %v508
  %v607 = vpack.c.bf16 %v519, %v516
  %v608 = vpack.c.bf16 %v527, %v524
  %v609 = vpack.c.bf16 %v535, %v532
  %v610 = vpack.c.bf16 %v543, %v540
  %v611 = vpack.c.bf16 %v551, %v548
  %v612 = vpack.c.bf16 %v559, %v556
  %v613 = vpack.c.bf16 %v567, %v564
  %v614 = vpack.c.bf16 %v575, %v572
  %v615 = vpack.c.bf16 %v583, %v580
  %v616 = vpack.c.bf16 %v591, %v588
  %v617 = vpack.c.bf16 %v599, %v596
  %v618 = vld [vmem:[%s5] sm:$0x1]
  %vm619 = vcmask 15360
  %v621 = vsel %vm619, %v602, 0
  %v624 = vsel %vm619, %v603, 0
  %v627 = vsel %vm619, %v604, 0
  %v630 = vsel %vm619, %v605, 0
  %v633 = vsel %vm619, %v606, 0
  %v636 = vsel %vm619, %v607, 0
  %v639 = vsel %vm619, %v608, 0
  %v642 = vsel %vm619, %v609, 0
  %v645 = vsel %vm619, %v610, 0
  %v648 = vsel %vm619, %v611, 0
  %v651 = vsel %vm619, %v612, 0
  %v654 = vsel %vm619, %v613, 0
  %v657 = vsel %vm619, %v614, 0
  %v660 = vsel %vm619, %v615, 0
  %v663 = vsel %vm619, %v616, 0
  %v666 = vsel %vm619, %v617, 0
  %vm668 = vcmask 1040384
  %v670 = vsel %vm668, %v618, 0
  %672 = vmatprep.subr.bf16.mxu0 0
  %673 = vmatpush1.bf16.msra.mxu0 %v670
  %674 = vmatprep.subr.bf16.mxu0 0
  %675 = vmatpush1.bf16.msra.mxu0 0
  %676 = vmatprep.subr.bf16.mxu0 0
  %677 = vmatpush1.bf16.msra.mxu0 0
  %678 = vmatprep.subr.bf16.mxu0 0
  %679 = vmatpush1.bf16.msra.mxu0 0
  %680 = vmatprep.subr.bf16.mxu0 0
  %681 = vmatpush1.bf16.msra.mxu0 0
  %682 = vmatprep.subr.bf16.mxu0 0
  %683 = vmatpush1.bf16.msra.mxu0 0
  %684 = vmatprep.subr.bf16.mxu0 0
  %685 = vmatpush1.bf16.msra.mxu0 0
  %686 = vmatprep.subr.bf16.mxu0 0
  %687 = vmatpush1.bf16.msra.mxu0 0
  %688 = vmatprep.subr.bf16.mxu0 0
  %689 = vmatpush1.bf16.msra.mxu0 0
  %690 = vmatprep.subr.bf16.mxu0 0
  %691 = vmatpush1.bf16.msra.mxu0 0
  %692 = vmatprep.subr.bf16.mxu0 0
  %693 = vmatpush1.bf16.msra.mxu0 0
  %694 = vmatprep.subr.bf16.mxu0 0
  %695 = vmatpush1.bf16.msra.mxu0 0
  %696 = vmatprep.subr.bf16.mxu0 0
  %697 = vmatpush1.bf16.msra.mxu0 0
  %698 = vmatprep.subr.bf16.mxu0 0
  %699 = vmatpush1.bf16.msra.mxu0 0
  %700 = vmatprep.subr.bf16.mxu0 0
  %701 = vmatpush1.bf16.msra.mxu0 0
  %702 = vmatprep.subr.bf16.mxu0 0
  %703 = vmatpush1.bf16.msra.mxu0 0
  %704 = vmatprep.mubr.bf16.mxu0 0
  %705 = vmatmul.mubr.bf16.gmra.mrb[0].mxu0 %v621
  %v706 = vpop.f32.mrb[0].mxu0
  %v707 = vadd.f32 0.0, %v706
  %v708 = vpop.f32.mrb[0].mxu0
  %v709 = vpop.f32.mrb[0].mxu0
  %v710 = vadd.f32 0.0, %v709
  %v711 = vpop.f32.mrb[0].mxu0
  %712 = vmatprep.mubr.bf16.mxu0 0
  %713 = vmatmul.mubr.bf16.gmra.mrb[0].mxu0 %v624
  %v714 = vpop.f32.mrb[0].mxu0
  %v715 = vadd.f32 0.0, %v714
  %v716 = vpop.f32.mrb[0].mxu0
  %v717 = vpop.f32.mrb[0].mxu0
  %v718 = vadd.f32 0.0, %v717
  %v719 = vpop.f32.mrb[0].mxu0
  %720 = vmatprep.mubr.bf16.mxu0 0
  %721 = vmatmul.mubr.bf16.gmra.mrb[0].mxu0 %v627
  %v722 = vpop.f32.mrb[0].mxu0
  %v723 = vadd.f32 0.0, %v722
  %v724 = vpop.f32.mrb[0].mxu0
  %v725 = vpop.f32.mrb[0].mxu0
  %v726 = vadd.f32 0.0, %v725
  %v727 = vpop.f32.mrb[0].mxu0
  %728 = vmatprep.mubr.bf16.mxu0 0
  %729 = vmatmul.mubr.bf16.gmra.mrb[0].mxu0 %v630
  %v730 = vpop.f32.mrb[0].mxu0
  %v731 = vadd.f32 0.0, %v730
  %v732 = vpop.f32.mrb[0].mxu0
  %v733 = vpop.f32.mrb[0].mxu0
  %v734 = vadd.f32 0.0, %v733
  %v735 = vpop.f32.mrb[0].mxu0
  %736 = vmatprep.mubr.bf16.mxu0 0
  %737 = vmatmul.mubr.bf16.gmra.mrb[0].mxu0 %v633
  %v738 = vpop.f32.mrb[0].mxu0
  %v739 = vadd.f32 0.0, %v738
  %v740 = vpop.f32.mrb[0].mxu0
  %v741 = vpop.f32.mrb[0].mxu0
  %v742 = vadd.f32 0.0, %v741
  %v743 = vpop.f32.mrb[0].mxu0
  %744 = vmatprep.mubr.bf16.mxu0 0
  %745 = vmatmul.mubr.bf16.gmra.mrb[0].mxu0 %v636
  %v746 = vpop.f32.mrb[0].mxu0
  %v747 = vadd.f32 0.0, %v746
  %v748 = vpop.f32.mrb[0].mxu0
  %v749 = vpop.f32.mrb[0].mxu0
  %v750 = vadd.f32 0.0, %v749
  %v751 = vpop.f32.mrb[0].mxu0
  %752 = vmatprep.mubr.bf16.mxu0 0
  %753 = vmatmul.mubr.bf16.gmra.mrb[0].mxu0 %v639
  %v754 = vpop.f32.mrb[0].mxu0
  %v755 = vadd.f32 0.0, %v754
  %v756 = vpop.f32.mrb[0].mxu0
  %v757 = vpop.f32.mrb[0].mxu0
  %v758 = vadd.f32 0.0, %v757
  %v759 = vpop.f32.mrb[0].mxu0
  %760 = vmatprep.mubr.bf16.mxu0 0
  %761 = vmatmul.mubr.bf16.gmra.mrb[0].mxu0 %v642
  %v762 = vpop.f32.mrb[0].mxu0
  %v763 = vadd.f32 0.0, %v762
  %v764 = vpop.f32.mrb[0].mxu0
  %v765 = vpop.f32.mrb[0].mxu0
  %v766 = vadd.f32 0.0, %v765
  %v767 = vpop.f32.mrb[0].mxu0
  %768 = vmatprep.mubr.bf16.mxu0 0
  %769 = vmatmul.mubr.bf16.gmra.mrb[0].mxu0 %v645
  %v770 = vpop.f32.mrb[0].mxu0
  %v771 = vadd.f32 0.0, %v770
  %v772 = vpop.f32.mrb[0].mxu0
  %v773 = vpop.f32.mrb[0].mxu0
  %v774 = vadd.f32 0.0, %v773
  %v775 = vpop.f32.mrb[0].mxu0
  %776 = vmatprep.mubr.bf16.mxu0 0
  %777 = vmatmul.mubr.bf16.gmra.mrb[0].mxu0 %v648
  %v778 = vpop.f32.mrb[0].mxu0
  %v779 = vadd.f32 0.0, %v778
  %v780 = vpop.f32.mrb[0].mxu0
  %v781 = vpop.f32.mrb[0].mxu0
  %v782 = vadd.f32 0.0, %v781
  %v783 = vpop.f32.mrb[0].mxu0
  %784 = vmatprep.mubr.bf16.mxu0 0
  %785 = vmatmul.mubr.bf16.gmra.mrb[0].mxu0 %v651
  %v786 = vpop.f32.mrb[0].mxu0
  %v787 = vadd.f32 0.0, %v786
  %v788 = vpop.f32.mrb[0].mxu0
  %v789 = vpop.f32.mrb[0].mxu0
  %v790 = vadd.f32 0.0, %v789
  %v791 = vpop.f32.mrb[0].mxu0
  %792 = vmatprep.mubr.bf16.mxu0 0
  %793 = vmatmul.mubr.bf16.gmra.mrb[0].mxu0 %v654
  %v794 = vpop.f32.mrb[0].mxu0
  %v795 = vadd.f32 0.0, %v794
  %v796 = vpop.f32.mrb[0].mxu0
  %v797 = vpop.f32.mrb[0].mxu0
  %v798 = vadd.f32 0.0, %v797
  %v799 = vpop.f32.mrb[0].mxu0
  %800 = vmatprep.mubr.bf16.mxu0 0
  %801 = vmatmul.mubr.bf16.gmra.mrb[0].mxu0 %v657
  %v802 = vpop.f32.mrb[0].mxu0
  %v803 = vadd.f32 0.0, %v802
  %v804 = vpop.f32.mrb[0].mxu0
  %v805 = vpop.f32.mrb[0].mxu0
  %v806 = vadd.f32 0.0, %v805
  %v807 = vpop.f32.mrb[0].mxu0
  %808 = vmatprep.mubr.bf16.mxu0 0
  %809 = vmatmul.mubr.bf16.gmra.mrb[0].mxu0 %v660
  %v810 = vpop.f32.mrb[0].mxu0
  %v811 = vadd.f32 0.0, %v810
  %v812 = vpop.f32.mrb[0].mxu0
  %v813 = vpop.f32.mrb[0].mxu0
  %v814 = vadd.f32 0.0, %v813
  %v815 = vpop.f32.mrb[0].mxu0
  %816 = vmatprep.mubr.bf16.mxu0 0
  %817 = vmatmul.mubr.bf16.gmra.mrb[0].mxu0 %v663
  %v818 = vpop.f32.mrb[0].mxu0
  %v819 = vadd.f32 0.0, %v818
  %v820 = vpop.f32.mrb[0].mxu0
  %v821 = vpop.f32.mrb[0].mxu0
  %v822 = vadd.f32 0.0, %v821
  %v823 = vpop.f32.mrb[0].mxu0
  %824 = vmatprep.mubr.bf16.mxu0 0
  %825 = vmatmul.mubr.bf16.gmra.mrb[0].mxu0 %v666
  %v826 = vpop.f32.mrb[0].mxu0
  %v827 = vadd.f32 0.0, %v826
  %v828 = vpop.f32.mrb[0].mxu0
  %v829 = vpop.f32.mrb[0].mxu0
  %v830 = vadd.f32 0.0, %v829
  %v831 = vpop.f32.mrb[0].mxu0
  %832 = vdwg.mxu0
  %v833 = vld [vmem:[%s4] sm:$0xff]
  %v834 = vld [vmem:[%s4 + $0x8] sm:$0xff]
  %v835 = vld [vmem:[%s4 + $0x10] sm:$0xff]
  %v836 = vld [vmem:[%s4 + $0x18] sm:$0xff]
  %v837 = vld [vmem:[%s4 + $0x20] sm:$0xff]
  %v838 = vld [vmem:[%s4 + $0x28] sm:$0xff]
  %v839 = vld [vmem:[%s4 + $0x30] sm:$0xff]
  %v840 = vld [vmem:[%s4 + $0x38] sm:$0xff]
  %v841 = vld [vmem:[%s4 + $0x40] sm:$0xff]
  %v842 = vld [vmem:[%s4 + $0x48] sm:$0xff]
  %v843 = vld [vmem:[%s4 + $0x50] sm:$0xff]
  %v844 = vld [vmem:[%s4 + $0x58] sm:$0xff]
  %v845 = vld [vmem:[%s4 + $0x60] sm:$0xff]
  %v846 = vld [vmem:[%s4 + $0x68] sm:$0xff]
  %v847 = vld [vmem:[%s4 + $0x70] sm:$0xff]
  %v848 = vld [vmem:[%s4 + $0x78] sm:$0xff]
  %v849 = vld [vmem:[%s4 + $0x80] sm:$0xff]
  %v850 = vld [vmem:[%s4 + $0x88] sm:$0xff]
  %v851 = vld [vmem:[%s4 + $0x90] sm:$0xff]
  %v852 = vld [vmem:[%s4 + $0x98] sm:$0xff]
  %v853 = vld [vmem:[%s4 + $0xa0] sm:$0xff]
  %v854 = vld [vmem:[%s4 + $0xa8] sm:$0xff]
  %v855 = vld [vmem:[%s4 + $0xb0] sm:$0xff]
  %v856 = vld [vmem:[%s4 + $0xb8] sm:$0xff]
  %v857 = vld [vmem:[%s4 + $0xc0] sm:$0xff]
  %v858 = vld [vmem:[%s4 + $0xc8] sm:$0xff]
  %v859 = vld [vmem:[%s4 + $0xd0] sm:$0xff]
  %v860 = vld [vmem:[%s4 + $0xd8] sm:$0xff]
  %v861 = vld [vmem:[%s4 + $0xe0] sm:$0xff]
  %v862 = vld [vmem:[%s4 + $0xe8] sm:$0xff]
  %v863 = vld [vmem:[%s4 + $0xf0] sm:$0xff]
  %v864 = vld [vmem:[%s4 + $0xf8] sm:$0xff]
  %v865 = vmul.f32 %v707, %v833
  %v866 = vmul.f32 %v710, %v834
  %v867 = vmul.f32 %v715, %v835
  %v868 = vmul.f32 %v718, %v836
  %v869 = vmul.f32 %v723, %v837
  %v870 = vmul.f32 %v726, %v838
  %v871 = vmul.f32 %v731, %v839
  %v872 = vmul.f32 %v734, %v840
  %v873 = vmul.f32 %v739, %v841
  %v874 = vmul.f32 %v742, %v842
  %v875 = vmul.f32 %v747, %v843
  %v876 = vmul.f32 %v750, %v844
  %v877 = vmul.f32 %v755, %v845
  %v878 = vmul.f32 %v758, %v846
  %v879 = vmul.f32 %v763, %v847
  %v880 = vmul.f32 %v766, %v848
  %v881 = vmul.f32 %v771, %v849
  %v882 = vmul.f32 %v774, %v850
  %v883 = vmul.f32 %v779, %v851
  %v884 = vmul.f32 %v782, %v852
  %v885 = vmul.f32 %v787, %v853
  %v886 = vmul.f32 %v790, %v854
  %v887 = vmul.f32 %v795, %v855
  %v888 = vmul.f32 %v798, %v856
  %v889 = vmul.f32 %v803, %v857
  %v890 = vmul.f32 %v806, %v858
  %v891 = vmul.f32 %v811, %v859
  %v892 = vmul.f32 %v814, %v860
  %v893 = vmul.f32 %v819, %v861
  %v894 = vmul.f32 %v822, %v862
  %v895 = vmul.f32 %v827, %v863
  %v896 = vmul.f32 %v830, %v864
  %v897 = vpack.c.bf16 %v866, %v865
  %v898 = vpack.c.bf16 %v868, %v867
  %v899 = vpack.c.bf16 %v870, %v869
  %v900 = vpack.c.bf16 %v872, %v871
  %v901 = vpack.c.bf16 %v874, %v873
  %v902 = vpack.c.bf16 %v876, %v875
  %v903 = vpack.c.bf16 %v878, %v877
  %v904 = vpack.c.bf16 %v880, %v879
  %v905 = vpack.c.bf16 %v882, %v881
  %v906 = vpack.c.bf16 %v884, %v883
  %v907 = vpack.c.bf16 %v886, %v885
  %v908 = vpack.c.bf16 %v888, %v887
  %v909 = vpack.c.bf16 %v890, %v889
  %v910 = vpack.c.bf16 %v892, %v891
  %v911 = vpack.c.bf16 %v894, %v893
  %v912 = vpack.c.bf16 %v896, %v895
  %v913 = vld [vmem:[%s3] sm:$0xff]
  %v914 = vld [vmem:[%s3 + $0x8] sm:$0xff]
  %v917 = vunpack.c.l.b16 %v913
  %v918 = vunpack.c.h.b16 %v913
  %v919 = vunpack.c.l.b16 %v914
  %v920 = vunpack.c.h.b16 %v914
  %v921 = vpack.c.b16 %v919, %v917
  %v922 = vpack.c.b16 %v920, %v918
  %925 = vmatprep.subr.bf16.mxu0 0
  %926 = vmatpush1.bf16.msra.mxu0 %v897
  %927 = vmatprep.subr.bf16.mxu0 0
  %928 = vmatpush1.bf16.msra.mxu0 %v898
  %929 = vmatprep.subr.bf16.mxu0 0
  %930 = vmatpush1.bf16.msra.mxu0 %v899
  %931 = vmatprep.subr.bf16.mxu0 0
  %932 = vmatpush1.bf16.msra.mxu0 %v900
  %933 = vmatprep.subr.bf16.mxu0 0
  %934 = vmatpush1.bf16.msra.mxu0 %v901
  %935 = vmatprep.subr.bf16.mxu0 0
  %936 = vmatpush1.bf16.msra.mxu0 %v902
  %937 = vmatprep.subr.bf16.mxu0 0
  %938 = vmatpush1.bf16.msra.mxu0 %v903
  %939 = vmatprep.subr.bf16.mxu0 0
  %940 = vmatpush1.bf16.msra.mxu0 %v904
  %941 = vmatprep.subr.bf16.mxu0 0
  %942 = vmatpush1.bf16.msra.mxu0 %v905
  %943 = vmatprep.subr.bf16.mxu0 0
  %944 = vmatpush1.bf16.msra.mxu0 %v906
  %945 = vmatprep.subr.bf16.mxu0 0
  %946 = vmatpush1.bf16.msra.mxu0 %v907
  %947 = vmatprep.subr.bf16.mxu0 0
  %948 = vmatpush1.bf16.msra.mxu0 %v908
  %949 = vmatprep.subr.bf16.mxu0 0
  %950 = vmatpush1.bf16.msra.mxu0 %v909
  %951 = vmatprep.subr.bf16.mxu0 0
  %952 = vmatpush1.bf16.msra.mxu0 %v910
  %953 = vmatprep.subr.bf16.mxu0 0
  %954 = vmatpush1.bf16.msra.mxu0 %v911
  %955 = vmatprep.subr.bf16.mxu0 0
  %956 = vmatpush1.bf16.msra.mxu0 %v912
  %957 = vmatprep.mubr.bf16.mxu0 %v922
  %958 = vmatmul.mubr.bf16.gmra.mrb[0].mxu0 %v921
  %v959 = vpop.f32.mrb[0].mxu0
  %v960 = vadd.f32 0.0, %v959
  %v961 = vpop.f32.mrb[0].mxu0
  %v962 = vpop.f32.mrb[0].mxu0
  %v963 = vadd.f32 0.0, %v962
  %v964 = vpop.f32.mrb[0].mxu0
  %965 = vdwg.mxu0
  %v966 = vld [vmem:[%s6] sm:$0xff]
  %v967 = vld [vmem:[%s6 + $0x8] sm:$0xff]
  %v968 = vld [vmem:[%s7] sm:$0xff]
  %v969 = vld [vmem:[%s7 + $0x8] sm:$0xff]
  %vm970 = vcmask 261120
  %v971 = vsel %vm970, %v960, 0.0
  %972 = vadd.xlane.f32.xlu0 %v971
  %v973 = vpop.xlane.xlu0 %972
  %v974 = vsel %vm970, %v963, 0.0
  %975 = vadd.xlane.f32.xlu0 %v974
  %v976 = vpop.xlane.xlu0 %975
  %v977 = vmul.f32 %v960, %v960
  %v978 = vmul.f32 %v963, %v963
  %v979 = vsel %vm970, %v977, 0.0
  %980 = vadd.xlane.f32.xlu0 %v979
  %v981 = vpop.xlane.xlu0 %980
  %v982 = vsel %vm970, %v978, 0.0
  %983 = vadd.xlane.f32.xlu0 %v982
  %v984 = vpop.xlane.xlu0 %983
  %v985 = vmul.f32 %v973, 0.03125
  %v986 = vmul.f32 %v976, 0.03125
  %v987 = vmul.f32 %v981, 0.03125
  %v988 = vmul.f32 %v984, 0.03125
  %v989 = vmul.f32 %v985, %v985
  %v990 = vmul.f32 %v986, %v986
  %v991 = vsub.f32 %v987, %v989
  %v992 = vsub.f32 %v988, %v990
  %v993 = vadd.f32 %v991, 1e-05
  %v994 = vadd.f32 %v992, 1e-05
  %v995 = vrsqrt.pop %v993
  %v996 = vrsqrt.pop %v994
  %v997 = vmul.f32 %v966, %v995
  %v998 = vmul.f32 %v967, %v996
  %1000 = vset.pattern.permute.xlu0 0
  %1001 = vperm.xlu0 %1000, %v997
  %v1002 = vpop.permute.xlu0 %1001
  %1005 = vset.pattern.permute.xlu0 0
  %1006 = vperm.xlu0 %1005, %v998
  %v1007 = vpop.permute.xlu0 %1006
  %v1009 = vmul.f32 %v960, %v1002
  %v1010 = vmul.f32 %v963, %v1007
  %v1011 = vmul.f32 %v985, %v997
  %v1012 = vmul.f32 %v986, %v998
  %v1013 = vsub.f32 %v968, %v1011
  %v1014 = vsub.f32 %v969, %v1012
  %1016 = vset.pattern.permute.xlu0 0
  %1017 = vperm.xlu0 %1016, %v1013
  %v1018 = vpop.permute.xlu0 %1017
  %1021 = vset.pattern.permute.xlu0 0
  %1022 = vperm.xlu0 %1021, %v1014
  %v1023 = vpop.permute.xlu0 %1022
  %v1025 = vadd.f32 %v1009, %v1018
  %v1026 = vadd.f32 %v1010, %v1023
  %v1027 = vpack.c.bf16 %v1026, %v1025
  %v1028 = vld [vmem:[%s8] sm:$0xf]
  %v1029 = vld [vmem:[%s8 + $0x4] sm:$0xf]
  %v1032 = vunpack.c.l.b16 %v1028
  %v1033 = vunpack.c.l.b16 %v1029
  %v1034 = vpack.c.b16 %v1033, %v1032
  %v1037 = vsel %vm392, %v1027, 0
  %1039 = vmatprep.subr.bf16.mxu0 0
  %1040 = vmatpush1.bf16.msra.mxu0 %v1034
  %1041 = vmatprep.subr.bf16.mxu0 0
  %1042 = vmatpush1.bf16.msra.mxu0 0
  %1043 = vmatprep.subr.bf16.mxu0 0
  %1044 = vmatpush1.bf16.msra.mxu0 0
  %1045 = vmatprep.subr.bf16.mxu0 0
  %1046 = vmatpush1.bf16.msra.mxu0 0
  %1047 = vmatprep.subr.bf16.mxu0 0
  %1048 = vmatpush1.bf16.msra.mxu0 0
  %1049 = vmatprep.subr.bf16.mxu0 0
  %1050 = vmatpush1.bf16.msra.mxu0 0
  %1051 = vmatprep.subr.bf16.mxu0 0
  %1052 = vmatpush1.bf16.msra.mxu0 0
  %1053 = vmatprep.subr.bf16.mxu0 0
  %1054 = vmatpush1.bf16.msra.mxu0 0
  %1055 = vmatprep.subr.bf16.mxu0 0
  %1056 = vmatpush1.bf16.msra.mxu0 0
  %1057 = vmatprep.subr.bf16.mxu0 0
  %1058 = vmatpush1.bf16.msra.mxu0 0
  %1059 = vmatprep.subr.bf16.mxu0 0
  %1060 = vmatpush1.bf16.msra.mxu0 0
  %1061 = vmatprep.subr.bf16.mxu0 0
  %1062 = vmatpush1.bf16.msra.mxu0 0
  %1063 = vmatprep.subr.bf16.mxu0 0
  %1064 = vmatpush1.bf16.msra.mxu0 0
  %1065 = vmatprep.subr.bf16.mxu0 0
  %1066 = vmatpush1.bf16.msra.mxu0 0
  %1067 = vmatprep.subr.bf16.mxu0 0
  %1068 = vmatpush1.bf16.msra.mxu0 0
  %1069 = vmatprep.subr.bf16.mxu0 0
  %1070 = vmatpush1.bf16.msra.mxu0 0
  %1071 = vmatprep.mubr.bf16.mxu0 0
  %1072 = vmatmul.mubr.bf16.gmra.mrb[0].mxu0 %v1037
  %v1073 = vpop.f32.mrb[0].mxu0
  %v1074 = vadd.f32 0.0, %v1073
  %v1075 = vpop.f32.mrb[0].mxu0
  %v1076 = vpop.f32.mrb[0].mxu0
  %v1077 = vadd.f32 0.0, %v1076
  %v1078 = vpop.f32.mrb[0].mxu0
  %1079 = vdwg.mxu0
  %v1080 = vpack.c.bf16 %v1077, %v1074
  %1082 = vrot.lane.b32.xlu0 %v1080, 18
  %v1083 = vpop.permute.xlu0 %1082
  %vm1085 = vcmask 810128
  %1086 = vst.msk [vmem:[#allocation2] sm:$0xff] %vm1085, %v1083
  %v1087 = vld [vmem:[%s8] sm:$0xf]
  %v1088 = vld [vmem:[%s8 + $0x4] sm:$0xf]
  %1090 = vrot.lane.b32.xlu0 %v1027, 112
  %v1091 = vpop.permute.xlu0 %1090
  %v1094 = vunpack.c.l.b16 %v1087
  %v1095 = vunpack.c.l.b16 %v1088
  %v1096 = vpack.c.b16 %v1095, %v1094
  %v1099 = vsel %vm392, %v1091, 0
  %1101 = vmatprep.subr.bf16.mxu0 0
  %1102 = vmatpush1.bf16.msra.mxu0 %v1096
  %1103 = vmatprep.subr.bf16.mxu0 0
  %1104 = vmatpush1.bf16.msra.mxu0 0
  %1105 = vmatprep.subr.bf16.mxu0 0
  %1106 = vmatpush1.bf16.msra.mxu0 0
  %1107 = vmatprep.subr.bf16.mxu0 0
  %1108 = vmatpush1.bf16.msra.mxu0 0
  %1109 = vmatprep.subr.bf16.mxu0 0
  %1110 = vmatpush1.bf16.msra.mxu0 0
  %1111 = vmatprep.subr.bf16.mxu0 0
  %1112 = vmatpush1.bf16.msra.mxu0 0
  %1113 = vmatprep.subr.bf16.mxu0 0
  %1114 = vmatpush1.bf16.msra.mxu0 0
  %1115 = vmatprep.subr.bf16.mxu0 0
  %1116 = vmatpush1.bf16.msra.mxu0 0
  %1117 = vmatprep.subr.bf16.mxu0 0
  %1118 = vmatpush1.bf16.msra.mxu0 0
  %1119 = vmatprep.subr.bf16.mxu0 0
  %1120 = vmatpush1.bf16.msra.mxu0 0
  %1121 = vmatprep.subr.bf16.mxu0 0
  %1122 = vmatpush1.bf16.msra.mxu0 0
  %1123 = vmatprep.subr.bf16.mxu0 0
  %1124 = vmatpush1.bf16.msra.mxu0 0
  %1125 = vmatprep.subr.bf16.mxu0 0
  %1126 = vmatpush1.bf16.msra.mxu0 0
  %1127 = vmatprep.subr.bf16.mxu0 0
  %1128 = vmatpush1.bf16.msra.mxu0 0
  %1129 = vmatprep.subr.bf16.mxu0 0
  %1130 = vmatpush1.bf16.msra.mxu0 0
  %1131 = vmatprep.subr.bf16.mxu0 0
  %1132 = vmatpush1.bf16.msra.mxu0 0
  %1133 = vmatprep.mubr.bf16.mxu0 0
  %1134 = vmatmul.mubr.bf16.gmra.mrb[0].mxu0 %v1099
  %v1135 = vpop.f32.mrb[0].mxu0
  %v1136 = vadd.f32 0.0, %v1135
  %v1137 = vpop.f32.mrb[0].mxu0
  %v1138 = vpop.f32.mrb[0].mxu0
  %v1139 = vadd.f32 0.0, %v1138
  %v1140 = vpop.f32.mrb[0].mxu0
  %1141 = vdwg.mxu0
  %v1142 = vpack.c.bf16 %v1139, %v1136
  %1144 = vrot.lane.b32.xlu0 %v1142, 99
  %v1145 = vpop.permute.xlu0 %1144
  %vm1147 = vcmask 1048344
  %1148 = vst.msk [vmem:[#allocation2] sm:$0xff] %vm1147, %v1145
  %vm1149 = vcmask 424960
  %1150 = vst.msk [vmem:[#allocation2 + $0x8] sm:$0xff] %vm1149, %v1145
  %v1151 = vld [vmem:[#allocation2] sm:$0xff]
  %v1152 = vld [vmem:[#allocation2 + $0x8] sm:$0xff]
  %v1153 = vld [vmem:[%s9] sm:$0xf]
  %v1154 = vld [vmem:[%s9 + $0x4] sm:$0xf]
  %s1155 = scalar_lea.vmem %s9, 8
  %v1156 = vld [vmem:[%s1155] sm:$0xf]
  %v1157 = vld [vmem:[%s1155 + $0x4] sm:$0xf]
  %v1160 = vunpack.c.l.b16 %v1156
  %v1161 = vunpack.c.l.b16 %v1157
  %v1162 = vpack.c.b16 %v1161, %v1160
  %1165 = vrot.lane.b32.xlu0 %v1151, 119
  %v1166 = vpop.permute.xlu0 %1165
  %1167 = vrot.lane.b32.xlu0 %v1152, 119
  %v1168 = vpop.permute.xlu0 %1167
  %vm1169 = vcmask 973824
  %v1170 = vsel %vm1169, %v1166, %v1168
  %v1174 = vsel %vm392, %v1162, 0
  %1176 = vmatprep.subr.bf16.mxu0 %v1168
  %1177 = vmatpush1.bf16.msra.mxu0 %v1170
  %1178 = vmatprep.subr.bf16.mxu0 0
  %1179 = vmatpush1.bf16.msra.mxu0 0
  %1180 = vmatprep.subr.bf16.mxu0 0
  %1181 = vmatpush1.bf16.msra.mxu0 0
  %1182 = vmatprep.subr.bf16.mxu0 0
  %1183 = vmatpush1.bf16.msra.mxu0 0
  %1184 = vmatprep.subr.bf16.mxu0 0
  %1185 = vmatpush1.bf16.msra.mxu0 0
  %1186 = vmatprep.subr.bf16.mxu0 0
  %1187 = vmatpush1.bf16.msra.mxu0 0
  %1188 = vmatprep.subr.bf16.mxu0 0
  %1189 = vmatpush1.bf16.msra.mxu0 0
  %1190 = vmatprep.subr.bf16.mxu0 0
  %1191 = vmatpush1.bf16.msra.mxu0 0
  %1192 = vmatprep.subr.bf16.mxu0 0
  %1193 = vmatpush1.bf16.msra.mxu0 0
  %1194 = vmatprep.subr.bf16.mxu0 0
  %1195 = vmatpush1.bf16.msra.mxu0 0
  %1196 = vmatprep.subr.bf16.mxu0 0
  %1197 = vmatpush1.bf16.msra.mxu0 0
  %1198 = vmatprep.subr.bf16.mxu0 0
  %1199 = vmatpush1.bf16.msra.mxu0 0
  %1200 = vmatprep.subr.bf16.mxu0 0
  %1201 = vmatpush1.bf16.msra.mxu0 0
  %1202 = vmatprep.subr.bf16.mxu0 0
  %1203 = vmatpush1.bf16.msra.mxu0 0
  %1204 = vmatprep.subr.bf16.mxu0 0
  %1205 = vmatpush1.bf16.msra.mxu0 0
  %1206 = vmatprep.subr.bf16.mxu0 0
  %1207 = vmatpush1.bf16.msra.mxu0 0
  %1208 = vmatprep.mubr.bf16.mxu0 0
  %1209 = vmatmul.mubr.bf16.gmra.mrb[0].mxu0 %v1174
  %v1210 = vpop.f32.mrb[0].mxu0
  %v1211 = vadd.f32 0.0, %v1210
  %v1212 = vpop.f32.mrb[0].mxu0
  %v1213 = vadd.f32 0.0, %v1212
  %v1214 = vpop.f32.mrb[0].mxu0
  %v1215 = vadd.f32 0.0, %v1214
  %v1216 = vpop.f32.mrb[0].mxu0
  %v1217 = vadd.f32 0.0, %v1216
  %1218 = vdwg.mxu0
  %v1221 = vunpack.c.l.b16 %v1153
  %v1222 = vunpack.c.l.b16 %v1154
  %v1223 = vpack.c.b16 %v1222, %v1221
  %1224 = vrot.lane.b32.xlu0 %v1151, 120
  %v1225 = vpop.permute.xlu0 %1224
  %1226 = vrot.lane.b32.xlu0 %v1152, 120
  %v1227 = vpop.permute.xlu0 %1226
  %vm1228 = vcmask 982016
  %v1229 = vsel %vm1228, %v1225, %v1227
  %v1233 = vsel %vm392, %v1223, 0
  %1235 = vmatprep.subr.bf16.mxu0 %v1227
  %1236 = vmatpush1.bf16.msra.mxu0 %v1229
  %1237 = vmatprep.subr.bf16.mxu0 0
  %1238 = vmatpush1.bf16.msra.mxu0 0
  %1239 = vmatprep.subr.bf16.mxu0 0
  %1240 = vmatpush1.bf16.msra.mxu0 0
  %1241 = vmatprep.subr.bf16.mxu0 0
  %1242 = vmatpush1.bf16.msra.mxu0 0
  %1243 = vmatprep.subr.bf16.mxu0 0
  %1244 = vmatpush1.bf16.msra.mxu0 0
  %1245 = vmatprep.subr.bf16.mxu0 0
  %1246 = vmatpush1.bf16.msra.mxu0 0
  %1247 = vmatprep.subr.bf16.mxu0 0
  %1248 = vmatpush1.bf16.msra.mxu0 0
  %1249 = vmatprep.subr.bf16.mxu0 0
  %1250 = vmatpush1.bf16.msra.mxu0 0
  %1251 = vmatprep.subr.bf16.mxu0 0
  %1252 = vmatpush1.bf16.msra.mxu0 0
  %1253 = vmatprep.subr.bf16.mxu0 0
  %1254 = vmatpush1.bf16.msra.mxu0 0
  %1255 = vmatprep.subr.bf16.mxu0 0
  %1256 = vmatpush1.bf16.msra.mxu0 0
  %1257 = vmatprep.subr.bf16.mxu0 0
  %1258 = vmatpush1.bf16.msra.mxu0 0
  %1259 = vmatprep.subr.bf16.mxu0 0
  %1260 = vmatpush1.bf16.msra.mxu0 0
  %1261 = vmatprep.subr.bf16.mxu0 0
  %1262 = vmatpush1.bf16.msra.mxu0 0
  %1263 = vmatprep.subr.bf16.mxu0 0
  %1264 = vmatpush1.bf16.msra.mxu0 0
  %1265 = vmatprep.subr.bf16.mxu0 0
  %1266 = vmatpush1.bf16.msra.mxu0 0
  %1267 = vmatprep.mubr.bf16.mxu0 0
  %1268 = vmatmul.mubr.bf16.gmra.mrb[0].mxu0 %v1233
  %v1269 = vpop.f32.mrb[0].mxu0
  %v1270 = vadd.f32 %v1211, %v1269
  %v1271 = vpop.f32.mrb[0].mxu0
  %v1272 = vadd.f32 %v1213, %v1271
  %v1273 = vpop.f32.mrb[0].mxu0
  %v1274 = vadd.f32 %v1215, %v1273
  %v1275 = vpop.f32.mrb[0].mxu0
  %v1276 = vadd.f32 %v1217, %v1275
  %1277 = vdwg.mxu0
  %s1278 = scalar_lea.vmem %s9, 16
  %v1279 = vld [vmem:[%s1278] sm:$0xf]
  %v1280 = vld [vmem:[%s1278 + $0x4] sm:$0xf]
  %v1283 = vunpack.c.l.b16 %v1279
  %v1284 = vunpack.c.l.b16 %v1280
  %v1285 = vpack.c.b16 %v1284, %v1283
  %1286 = vrot.lane.b32.xlu0 %v1151, 118
  %v1287 = vpop.permute.xlu0 %1286
  %1288 = vrot.lane.b32.xlu0 %v1152, 118
  %v1289 = vpop.permute.xlu0 %1288
  %vm1290 = vcmask 965632
  %v1291 = vsel %vm1290, %v1287, %v1289
  %v1295 = vsel %vm392, %v1285, 0
  %1297 = vmatprep.subr.bf16.mxu0 %v1289
  %1298 = vmatpush1.bf16.msra.mxu0 %v1291
  %1299 = vmatprep.subr.bf16.mxu0 0
  %1300 = vmatpush1.bf16.msra.mxu0 0
  %1301 = vmatprep.subr.bf16.mxu0 0
  %1302 = vmatpush1.bf16.msra.mxu0 0
  %1303 = vmatprep.subr.bf16.mxu0 0
  %1304 = vmatpush1.bf16.msra.mxu0 0
  %1305 = vmatprep.subr.bf16.mxu0 0
  %1306 = vmatpush1.bf16.msra.mxu0 0
  %1307 = vmatprep.subr.bf16.mxu0 0
  %1308 = vmatpush1.bf16.msra.mxu0 0
  %1309 = vmatprep.subr.bf16.mxu0 0
  %1310 = vmatpush1.bf16.msra.mxu0 0
  %1311 = vmatprep.subr.bf16.mxu0 0
  %1312 = vmatpush1.bf16.msra.mxu0 0
  %1313 = vmatprep.subr.bf16.mxu0 0
  %1314 = vmatpush1.bf16.msra.mxu0 0
  %1315 = vmatprep.subr.bf16.mxu0 0
  %1316 = vmatpush1.bf16.msra.mxu0 0
  %1317 = vmatprep.subr.bf16.mxu0 0
  %1318 = vmatpush1.bf16.msra.mxu0 0
  %1319 = vmatprep.subr.bf16.mxu0 0
  %1320 = vmatpush1.bf16.msra.mxu0 0
  %1321 = vmatprep.subr.bf16.mxu0 0
  %1322 = vmatpush1.bf16.msra.mxu0 0
  %1323 = vmatprep.subr.bf16.mxu0 0
  %1324 = vmatpush1.bf16.msra.mxu0 0
  %1325 = vmatprep.subr.bf16.mxu0 0
  %1326 = vmatpush1.bf16.msra.mxu0 0
  %1327 = vmatprep.subr.bf16.mxu0 0
  %1328 = vmatpush1.bf16.msra.mxu0 0
  %1329 = vmatprep.mubr.bf16.mxu0 0
  %1330 = vmatmul.mubr.bf16.gmra.mrb[0].mxu0 %v1295
  %v1331 = vpop.f32.mrb[0].mxu0
  %v1332 = vadd.f32 0.0, %v1331
  %v1333 = vpop.f32.mrb[0].mxu0
  %v1334 = vadd.f32 0.0, %v1333
  %v1335 = vpop.f32.mrb[0].mxu0
  %v1336 = vadd.f32 0.0, %v1335
  %v1337 = vpop.f32.mrb[0].mxu0
  %v1338 = vadd.f32 0.0, %v1337
  %1339 = vdwg.mxu0
  %v1340 = vadd.f32 %v1270, %v1332
  %v1341 = vadd.f32 %v1272, %v1334
  %v1342 = vadd.f32 %v1274, %v1336
  %v1343 = vadd.f32 %v1276, %v1338
  %s1344 = scalar_lea.vmem %s9, 24
  %v1345 = vld [vmem:[%s1344] sm:$0xf]
  %v1346 = vld [vmem:[%s1344 + $0x4] sm:$0xf]
  %v1349 = vunpack.c.l.b16 %v1345
  %v1350 = vunpack.c.l.b16 %v1346
  %v1351 = vpack.c.b16 %v1350, %v1349
  %1352 = vrot.lane.b32.xlu0 %v1151, 111
  %v1353 = vpop.permute.xlu0 %1352
  %1354 = vrot.lane.b32.xlu0 %v1152, 111
  %v1355 = vpop.permute.xlu0 %1354
  %vm1356 = vcmask 908288
  %v1357 = vsel %vm1356, %v1353, %v1355
  %v1361 = vsel %vm392, %v1351, 0
  %1363 = vmatprep.subr.bf16.mxu0 %v1355
  %1364 = vmatpush1.bf16.msra.mxu0 %v1357
  %1365 = vmatprep.subr.bf16.mxu0 0
  %1366 = vmatpush1.bf16.msra.mxu0 0
  %1367 = vmatprep.subr.bf16.mxu0 0
  %1368 = vmatpush1.bf16.msra.mxu0 0
  %1369 = vmatprep.subr.bf16.mxu0 0
  %1370 = vmatpush1.bf16.msra.mxu0 0
  %1371 = vmatprep.subr.bf16.mxu0 0
  %1372 = vmatpush1.bf16.msra.mxu0 0
  %1373 = vmatprep.subr.bf16.mxu0 0
  %1374 = vmatpush1.bf16.msra.mxu0 0
  %1375 = vmatprep.subr.bf16.mxu0 0
  %1376 = vmatpush1.bf16.msra.mxu0 0
  %1377 = vmatprep.subr.bf16.mxu0 0
  %1378 = vmatpush1.bf16.msra.mxu0 0
  %1379 = vmatprep.subr.bf16.mxu0 0
  %1380 = vmatpush1.bf16.msra.mxu0 0
  %1381 = vmatprep.subr.bf16.mxu0 0
  %1382 = vmatpush1.bf16.msra.mxu0 0
  %1383 = vmatprep.subr.bf16.mxu0 0
  %1384 = vmatpush1.bf16.msra.mxu0 0
  %1385 = vmatprep.subr.bf16.mxu0 0
  %1386 = vmatpush1.bf16.msra.mxu0 0
  %1387 = vmatprep.subr.bf16.mxu0 0
  %1388 = vmatpush1.bf16.msra.mxu0 0
  %1389 = vmatprep.subr.bf16.mxu0 0
  %1390 = vmatpush1.bf16.msra.mxu0 0
  %1391 = vmatprep.subr.bf16.mxu0 0
  %1392 = vmatpush1.bf16.msra.mxu0 0
  %1393 = vmatprep.subr.bf16.mxu0 0
  %1394 = vmatpush1.bf16.msra.mxu0 0
  %1395 = vmatprep.mubr.bf16.mxu0 0
  %1396 = vmatmul.mubr.bf16.gmra.mrb[0].mxu0 %v1361
  %v1397 = vpop.f32.mrb[0].mxu0
  %v1398 = vadd.f32 0.0, %v1397
  %v1399 = vpop.f32.mrb[0].mxu0
  %v1400 = vadd.f32 0.0, %v1399
  %v1401 = vpop.f32.mrb[0].mxu0
  %v1402 = vadd.f32 0.0, %v1401
  %v1403 = vpop.f32.mrb[0].mxu0
  %v1404 = vadd.f32 0.0, %v1403
  %1405 = vdwg.mxu0
  %v1406 = vadd.f32 %v1340, %v1398
  %v1407 = vadd.f32 %v1341, %v1400
  %v1408 = vadd.f32 %v1342, %v1402
  %v1409 = vadd.f32 %v1343, %v1404
  %s1410 = scalar_lea.vmem %s9, 32
  %v1411 = vld [vmem:[%s1410] sm:$0xf]
  %v1412 = vld [vmem:[%s1410 + $0x4] sm:$0xf]
  %v1415 = vunpack.c.l.b16 %v1411
  %v1416 = vunpack.c.l.b16 %v1412
  %v1417 = vpack.c.b16 %v1416, %v1415
  %1418 = vrot.lane.b32.xlu0 %v1151, 110
  %v1419 = vpop.permute.xlu0 %1418
  %1420 = vrot.lane.b32.xlu0 %v1152, 110
  %v1421 = vpop.permute.xlu0 %1420
  %vm1422 = vcmask 900096
  %v1423 = vsel %vm1422, %v1419, %v1421
  %v1427 = vsel %vm392, %v1417, 0
  %1429 = vmatprep.subr.bf16.mxu0 %v1421
  %1430 = vmatpush1.bf16.msra.mxu0 %v1423
  %1431 = vmatprep.subr.bf16.mxu0 0
  %1432 = vmatpush1.bf16.msra.mxu0 0
  %1433 = vmatprep.subr.bf16.mxu0 0
  %1434 = vmatpush1.bf16.msra.mxu0 0
  %1435 = vmatprep.subr.bf16.mxu0 0
  %1436 = vmatpush1.bf16.msra.mxu0 0
  %1437 = vmatprep.subr.bf16.mxu0 0
  %1438 = vmatpush1.bf16.msra.mxu0 0
  %1439 = vmatprep.subr.bf16.mxu0 0
  %1440 = vmatpush1.bf16.msra.mxu0 0
  %1441 = vmatprep.subr.bf16.mxu0 0
  %1442 = vmatpush1.bf16.msra.mxu0 0
  %1443 = vmatprep.subr.bf16.mxu0 0
  %1444 = vmatpush1.bf16.msra.mxu0 0
  %1445 = vmatprep.subr.bf16.mxu0 0
  %1446 = vmatpush1.bf16.msra.mxu0 0
  %1447 = vmatprep.subr.bf16.mxu0 0
  %1448 = vmatpush1.bf16.msra.mxu0 0
  %1449 = vmatprep.subr.bf16.mxu0 0
  %1450 = vmatpush1.bf16.msra.mxu0 0
  %1451 = vmatprep.subr.bf16.mxu0 0
  %1452 = vmatpush1.bf16.msra.mxu0 0
  %1453 = vmatprep.subr.bf16.mxu0 0
  %1454 = vmatpush1.bf16.msra.mxu0 0
  %1455 = vmatprep.subr.bf16.mxu0 0
  %1456 = vmatpush1.bf16.msra.mxu0 0
  %1457 = vmatprep.subr.bf16.mxu0 0
  %1458 = vmatpush1.bf16.msra.mxu0 0
  %1459 = vmatprep.subr.bf16.mxu0 0
  %1460 = vmatpush1.bf16.msra.mxu0 0
  %1461 = vmatprep.mubr.bf16.mxu0 0
  %1462 = vmatmul.mubr.bf16.gmra.mrb[0].mxu0 %v1427
  %v1463 = vpop.f32.mrb[0].mxu0
  %v1464 = vadd.f32 0.0, %v1463
  %v1465 = vpop.f32.mrb[0].mxu0
  %v1466 = vadd.f32 0.0, %v1465
  %v1467 = vpop.f32.mrb[0].mxu0
  %v1468 = vadd.f32 0.0, %v1467
  %v1469 = vpop.f32.mrb[0].mxu0
  %v1470 = vadd.f32 0.0, %v1469
  %1471 = vdwg.mxu0
  %v1472 = vadd.f32 %v1406, %v1464
  %v1473 = vadd.f32 %v1407, %v1466
  %v1474 = vadd.f32 %v1408, %v1468
  %v1475 = vadd.f32 %v1409, %v1470
  %s1476 = scalar_lea.vmem %s9, 40
  %v1477 = vld [vmem:[%s1476] sm:$0xf]
  %v1478 = vld [vmem:[%s1476 + $0x4] sm:$0xf]
  %v1481 = vunpack.c.l.b16 %v1477
  %v1482 = vunpack.c.l.b16 %v1478
  %v1483 = vpack.c.b16 %v1482, %v1481
  %1484 = vrot.lane.b32.xlu0 %v1151, 109
  %v1485 = vpop.permute.xlu0 %1484
  %1486 = vrot.lane.b32.xlu0 %v1152, 109
  %v1487 = vpop.permute.xlu0 %1486
  %vm1488 = vcmask 891904
  %v1489 = vsel %vm1488, %v1485, %v1487
  %v1493 = vsel %vm392, %v1483, 0
  %1495 = vmatprep.subr.bf16.mxu0 %v1487
  %1496 = vmatpush1.bf16.msra.mxu0 %v1489
  %1497 = vmatprep.subr.bf16.mxu0 0
  %1498 = vmatpush1.bf16.msra.mxu0 0
  %1499 = vmatprep.subr.bf16.mxu0 0
  %1500 = vmatpush1.bf16.msra.mxu0 0
  %1501 = vmatprep.subr.bf16.mxu0 0
  %1502 = vmatpush1.bf16.msra.mxu0 0
  %1503 = vmatprep.subr.bf16.mxu0 0
  %1504 = vmatpush1.bf16.msra.mxu0 0
  %1505 = vmatprep.subr.bf16.mxu0 0
  %1506 = vmatpush1.bf16.msra.mxu0 0
  %1507 = vmatprep.subr.bf16.mxu0 0
  %1508 = vmatpush1.bf16.msra.mxu0 0
  %1509 = vmatprep.subr.bf16.mxu0 0
  %1510 = vmatpush1.bf16.msra.mxu0 0
  %1511 = vmatprep.subr.bf16.mxu0 0
  %1512 = vmatpush1.bf16.msra.mxu0 0
  %1513 = vmatprep.subr.bf16.mxu0 0
  %1514 = vmatpush1.bf16.msra.mxu0 0
  %1515 = vmatprep.subr.bf16.mxu0 0
  %1516 = vmatpush1.bf16.msra.mxu0 0
  %1517 = vmatprep.subr.bf16.mxu0 0
  %1518 = vmatpush1.bf16.msra.mxu0 0
  %1519 = vmatprep.subr.bf16.mxu0 0
  %1520 = vmatpush1.bf16.msra.mxu0 0
  %1521 = vmatprep.subr.bf16.mxu0 0
  %1522 = vmatpush1.bf16.msra.mxu0 0
  %1523 = vmatprep.subr.bf16.mxu0 0
  %1524 = vmatpush1.bf16.msra.mxu0 0
  %1525 = vmatprep.subr.bf16.mxu0 0
  %1526 = vmatpush1.bf16.msra.mxu0 0
  %1527 = vmatprep.mubr.bf16.mxu0 0
  %1528 = vmatmul.mubr.bf16.gmra.mrb[0].mxu0 %v1493
  %v1529 = vpop.f32.mrb[0].mxu0
  %v1530 = vadd.f32 0.0, %v1529
  %v1531 = vpop.f32.mrb[0].mxu0
  %v1532 = vadd.f32 0.0, %v1531
  %v1533 = vpop.f32.mrb[0].mxu0
  %v1534 = vadd.f32 0.0, %v1533
  %v1535 = vpop.f32.mrb[0].mxu0
  %v1536 = vadd.f32 0.0, %v1535
  %1537 = vdwg.mxu0
  %v1538 = vadd.f32 %v1472, %v1530
  %v1539 = vadd.f32 %v1473, %v1532
  %v1540 = vadd.f32 %v1474, %v1534
  %v1541 = vadd.f32 %v1475, %v1536
  %s1542 = scalar_lea.vmem %s9, 48
  %v1543 = vld [vmem:[%s1542] sm:$0xf]
  %v1544 = vld [vmem:[%s1542 + $0x4] sm:$0xf]
  %v1547 = vunpack.c.l.b16 %v1543
  %v1548 = vunpack.c.l.b16 %v1544
  %v1549 = vpack.c.b16 %v1548, %v1547
  %1550 = vrot.lane.b32.xlu0 %v1151, 102
  %v1551 = vpop.permute.xlu0 %1550
  %1552 = vrot.lane.b32.xlu0 %v1152, 102
  %v1553 = vpop.permute.xlu0 %1552
  %vm1554 = vcmask 834560
  %v1555 = vsel %vm1554, %v1551, %v1553
  %v1559 = vsel %vm392, %v1549, 0
  %1561 = vmatprep.subr.bf16.mxu0 %v1553
  %1562 = vmatpush1.bf16.msra.mxu0 %v1555
  %1563 = vmatprep.subr.bf16.mxu0 0
  %1564 = vmatpush1.bf16.msra.mxu0 0
  %1565 = vmatprep.subr.bf16.mxu0 0
  %1566 = vmatpush1.bf16.msra.mxu0 0
  %1567 = vmatprep.subr.bf16.mxu0 0
  %1568 = vmatpush1.bf16.msra.mxu0 0
  %1569 = vmatprep.subr.bf16.mxu0 0
  %1570 = vmatpush1.bf16.msra.mxu0 0
  %1571 = vmatprep.subr.bf16.mxu0 0
  %1572 = vmatpush1.bf16.msra.mxu0 0
  %1573 = vmatprep.subr.bf16.mxu0 0
  %1574 = vmatpush1.bf16.msra.mxu0 0
  %1575 = vmatprep.subr.bf16.mxu0 0
  %1576 = vmatpush1.bf16.msra.mxu0 0
  %1577 = vmatprep.subr.bf16.mxu0 0
  %1578 = vmatpush1.bf16.msra.mxu0 0
  %1579 = vmatprep.subr.bf16.mxu0 0
  %1580 = vmatpush1.bf16.msra.mxu0 0
  %1581 = vmatprep.subr.bf16.mxu0 0
  %1582 = vmatpush1.bf16.msra.mxu0 0
  %1583 = vmatprep.subr.bf16.mxu0 0
  %1584 = vmatpush1.bf16.msra.mxu0 0
  %1585 = vmatprep.subr.bf16.mxu0 0
  %1586 = vmatpush1.bf16.msra.mxu0 0
  %1587 = vmatprep.subr.bf16.mxu0 0
  %1588 = vmatpush1.bf16.msra.mxu0 0
  %1589 = vmatprep.subr.bf16.mxu0 0
  %1590 = vmatpush1.bf16.msra.mxu0 0
  %1591 = vmatprep.subr.bf16.mxu0 0
  %1592 = vmatpush1.bf16.msra.mxu0 0
  %1593 = vmatprep.mubr.bf16.mxu0 0
  %1594 = vmatmul.mubr.bf16.gmra.mrb[0].mxu0 %v1559
  %v1595 = vpop.f32.mrb[0].mxu0
  %v1596 = vadd.f32 0.0, %v1595
  %v1597 = vpop.f32.mrb[0].mxu0
  %v1598 = vadd.f32 0.0, %v1597
  %v1599 = vpop.f32.mrb[0].mxu0
  %v1600 = vadd.f32 0.0, %v1599
  %v1601 = vpop.f32.mrb[0].mxu0
  %v1602 = vadd.f32 0.0, %v1601
  %1603 = vdwg.mxu0
  %v1604 = vadd.f32 %v1538, %v1596
  %v1605 = vadd.f32 %v1539, %v1598
  %v1606 = vadd.f32 %v1540, %v1600
  %v1607 = vadd.f32 %v1541, %v1602
  %s1608 = scalar_lea.vmem %s9, 56
  %v1609 = vld [vmem:[%s1608] sm:$0xf]
  %v1610 = vld [vmem:[%s1608 + $0x4] sm:$0xf]
  %v1613 = vunpack.c.l.b16 %v1609
  %v1614 = vunpack.c.l.b16 %v1610
  %v1615 = vpack.c.b16 %v1614, %v1613
  %1616 = vrot.lane.b32.xlu0 %v1151, 101
  %v1617 = vpop.permute.xlu0 %1616
  %1618 = vrot.lane.b32.xlu0 %v1152, 101
  %v1619 = vpop.permute.xlu0 %1618
  %vm1620 = vcmask 826368
  %v1621 = vsel %vm1620, %v1617, %v1619
  %v1625 = vsel %vm392, %v1615, 0
  %1627 = vmatprep.subr.bf16.mxu0 %v1619
  %1628 = vmatpush1.bf16.msra.mxu0 %v1621
  %1629 = vmatprep.subr.bf16.mxu0 0
  %1630 = vmatpush1.bf16.msra.mxu0 0
  %1631 = vmatprep.subr.bf16.mxu0 0
  %1632 = vmatpush1.bf16.msra.mxu0 0
  %1633 = vmatprep.subr.bf16.mxu0 0
  %1634 = vmatpush1.bf16.msra.mxu0 0
  %1635 = vmatprep.subr.bf16.mxu0 0
  %1636 = vmatpush1.bf16.msra.mxu0 0
  %1637 = vmatprep.subr.bf16.mxu0 0
  %1638 = vmatpush1.bf16.msra.mxu0 0
  %1639 = vmatprep.subr.bf16.mxu0 0
  %1640 = vmatpush1.bf16.msra.mxu0 0
  %1641 = vmatprep.subr.bf16.mxu0 0
  %1642 = vmatpush1.bf16.msra.mxu0 0
  %1643 = vmatprep.subr.bf16.mxu0 0
  %1644 = vmatpush1.bf16.msra.mxu0 0
  %1645 = vmatprep.subr.bf16.mxu0 0
  %1646 = vmatpush1.bf16.msra.mxu0 0
  %1647 = vmatprep.subr.bf16.mxu0 0
  %1648 = vmatpush1.bf16.msra.mxu0 0
  %1649 = vmatprep.subr.bf16.mxu0 0
  %1650 = vmatpush1.bf16.msra.mxu0 0
  %1651 = vmatprep.subr.bf16.mxu0 0
  %1652 = vmatpush1.bf16.msra.mxu0 0
  %1653 = vmatprep.subr.bf16.mxu0 0
  %1654 = vmatpush1.bf16.msra.mxu0 0
  %1655 = vmatprep.subr.bf16.mxu0 0
  %1656 = vmatpush1.bf16.msra.mxu0 0
  %1657 = vmatprep.subr.bf16.mxu0 0
  %1658 = vmatpush1.bf16.msra.mxu0 0
  %1659 = vmatprep.mubr.bf16.mxu0 0
  %1660 = vmatmul.mubr.bf16.gmra.mrb[0].mxu0 %v1625
  %v1661 = vpop.f32.mrb[0].mxu0
  %v1662 = vadd.f32 0.0, %v1661
  %v1663 = vpop.f32.mrb[0].mxu0
  %v1664 = vadd.f32 0.0, %v1663
  %v1665 = vpop.f32.mrb[0].mxu0
  %v1666 = vadd.f32 0.0, %v1665
  %v1667 = vpop.f32.mrb[0].mxu0
  %v1668 = vadd.f32 0.0, %v1667
  %1669 = vdwg.mxu0
  %v1670 = vadd.f32 %v1604, %v1662
  %v1671 = vadd.f32 %v1605, %v1664
  %v1672 = vadd.f32 %v1606, %v1666
  %v1673 = vadd.f32 %v1607, %v1668
  %s1674 = scalar_lea.vmem %s9, 64
  %v1675 = vld [vmem:[%s1674] sm:$0xf]
  %v1676 = vld [vmem:[%s1674 + $0x4] sm:$0xf]
  %v1679 = vunpack.c.l.b16 %v1675
  %v1680 = vunpack.c.l.b16 %v1676
  %v1681 = vpack.c.b16 %v1680, %v1679
  %1682 = vrot.lane.b32.xlu0 %v1151, 100
  %v1683 = vpop.permute.xlu0 %1682
  %1684 = vrot.lane.b32.xlu0 %v1152, 100
  %v1685 = vpop.permute.xlu0 %1684
  %vm1686 = vcmask 818176
  %v1687 = vsel %vm1686, %v1683, %v1685
  %v1691 = vsel %vm392, %v1681, 0
  %1693 = vmatprep.subr.bf16.mxu0 %v1685
  %1694 = vmatpush1.bf16.msra.mxu0 %v1687
  %1695 = vmatprep.subr.bf16.mxu0 0
  %1696 = vmatpush1.bf16.msra.mxu0 0
  %1697 = vmatprep.subr.bf16.mxu0 0
  %1698 = vmatpush1.bf16.msra.mxu0 0
  %1699 = vmatprep.subr.bf16.mxu0 0
  %1700 = vmatpush1.bf16.msra.mxu0 0
  %1701 = vmatprep.subr.bf16.mxu0 0
  %1702 = vmatpush1.bf16.msra.mxu0 0
  %1703 = vmatprep.subr.bf16.mxu0 0
  %1704 = vmatpush1.bf16.msra.mxu0 0
  %1705 = vmatprep.subr.bf16.mxu0 0
  %1706 = vmatpush1.bf16.msra.mxu0 0
  %1707 = vmatprep.subr.bf16.mxu0 0
  %1708 = vmatpush1.bf16.msra.mxu0 0
  %1709 = vmatprep.subr.bf16.mxu0 0
  %1710 = vmatpush1.bf16.msra.mxu0 0
  %1711 = vmatprep.subr.bf16.mxu0 0
  %1712 = vmatpush1.bf16.msra.mxu0 0
  %1713 = vmatprep.subr.bf16.mxu0 0
  %1714 = vmatpush1.bf16.msra.mxu0 0
  %1715 = vmatprep.subr.bf16.mxu0 0
  %1716 = vmatpush1.bf16.msra.mxu0 0
  %1717 = vmatprep.subr.bf16.mxu0 0
  %1718 = vmatpush1.bf16.msra.mxu0 0
  %1719 = vmatprep.subr.bf16.mxu0 0
  %1720 = vmatpush1.bf16.msra.mxu0 0
  %1721 = vmatprep.subr.bf16.mxu0 0
  %1722 = vmatpush1.bf16.msra.mxu0 0
  %1723 = vmatprep.subr.bf16.mxu0 0
  %1724 = vmatpush1.bf16.msra.mxu0 0
  %1725 = vmatprep.mubr.bf16.mxu0 0
  %1726 = vmatmul.mubr.bf16.gmra.mrb[0].mxu0 %v1691
  %v1727 = vpop.f32.mrb[0].mxu0
  %v1728 = vadd.f32 0.0, %v1727
  %v1729 = vpop.f32.mrb[0].mxu0
  %v1730 = vadd.f32 0.0, %v1729
  %v1731 = vpop.f32.mrb[0].mxu0
  %v1732 = vadd.f32 0.0, %v1731
  %v1733 = vpop.f32.mrb[0].mxu0
  %v1734 = vadd.f32 0.0, %v1733
  %1735 = vdwg.mxu0
  %v1736 = vadd.f32 %v1670, %v1728
  %v1737 = vadd.f32 %v1671, %v1730
  %v1738 = vadd.f32 %v1672, %v1732
  %v1739 = vadd.f32 %v1673, %v1734
  %v1740 = vld [vmem:[%s10] sm:$0xff]
  %v1741 = vld [vmem:[%s10 + $0x8] sm:$0xff]
  %1743 = vset.pattern.permute.xlu0 0
  %1744 = vperm.xlu0 %1743, %v1740
  %v1745 = vpop.permute.xlu0 %1744
  %1748 = vset.pattern.permute.xlu0 0
  %1749 = vperm.xlu0 %1748, %v1741
  %v1750 = vpop.permute.xlu0 %1749
  %v1752 = vadd.f32 %v1736, %v1745
  %v1753 = vadd.f32 %v1737, %v1745
  %v1754 = vadd.f32 %v1738, %v1750
  %v1755 = vadd.f32 %v1739, %v1750
  %v1756 = vld [vmem:[%s11] sm:$0xff]
  %v1757 = vld [vmem:[%s11 + $0x8] sm:$0xff]
  %v1758 = vld [vmem:[%s12] sm:$0xff]
  %v1759 = vld [vmem:[%s12 + $0x8] sm:$0xff]
  %v1760 = vld [vmem:[%s20] sm:$0x3]
  %v1762 = vlaneseq
  %v1763 = vshrl.u32 %v1762, 7
  %v1764 = vsub.s32 0, %v1763
  %v1765 = vrot.slane %v1760, %v1764
  %v1766 = vlaneseq
  %v1767 = vshrl.u32 %v1766, 7
  %v1768 = vsub.s32 1, %v1767
  %v1769 = vrot.slane %v1760, %v1768
  %v1772 = vmul.f32 %v1752, %v1765
  %v1773 = vmul.f32 %v1753, %v1769
  %v1774 = vmul.f32 %v1754, %v1765
  %v1775 = vmul.f32 %v1755, %v1769
  %vm1776 = vcmask 277504
  %v1777 = vsel %vm1776, %v1773, 0.0
  %v1778 = vadd.f32 %v1772, %v1777
  %1779 = vadd.xlane.f32.xlu0 %v1778
  %v1780 = vpop.xlane.xlu0 %1779
  %v1781 = vsel %vm1776, %v1775, 0.0
  %v1782 = vadd.f32 %v1774, %v1781
  %1783 = vadd.xlane.f32.xlu0 %v1782
  %v1784 = vpop.xlane.xlu0 %1783
  %v1785 = vmul.f32 %v1772, %v1772
  %v1786 = vmul.f32 %v1773, %v1773
  %v1787 = vmul.f32 %v1774, %v1774
  %v1788 = vmul.f32 %v1775, %v1775
  %v1789 = vsel %vm1776, %v1786, 0.0
  %v1790 = vadd.f32 %v1785, %v1789
  %1791 = vadd.xlane.f32.xlu0 %v1790
  %v1792 = vpop.xlane.xlu0 %1791
  %v1793 = vsel %vm1776, %v1788, 0.0
  %v1794 = vadd.f32 %v1787, %v1793
  %1795 = vadd.xlane.f32.xlu0 %v1794
  %v1796 = vpop.xlane.xlu0 %1795
  %v1797 = vmul.f32 %v1780, 0.0078125
  %v1798 = vmul.f32 %v1784, 0.0078125
  %v1799 = vmul.f32 %v1792, 0.0078125
  %v1800 = vmul.f32 %v1796, 0.0078125
  %v1801 = vmul.f32 %v1797, %v1797
  %v1802 = vmul.f32 %v1798, %v1798
  %v1803 = vsub.f32 %v1799, %v1801
  %v1804 = vsub.f32 %v1800, %v1802
  %v1805 = vadd.f32 %v1803, 1e-05
  %v1806 = vadd.f32 %v1804, 1e-05
  %v1807 = vrsqrt.pop %v1805
  %v1808 = vrsqrt.pop %v1806
  %v1809 = vmul.f32 %v1756, %v1807
  %v1810 = vmul.f32 %v1757, %v1808
  %1812 = vset.pattern.permute.xlu0 0
  %1813 = vperm.xlu0 %1812, %v1809
  %v1814 = vpop.permute.xlu0 %1813
  %1817 = vset.pattern.permute.xlu0 0
  %1818 = vperm.xlu0 %1817, %v1810
  %v1819 = vpop.permute.xlu0 %1818
  %v1821 = vmul.f32 %v1752, %v1814
  %v1822 = vmul.f32 %v1753, %v1814
  %v1823 = vmul.f32 %v1754, %v1819
  %v1824 = vmul.f32 %v1755, %v1819
  %v1825 = vmul.f32 %v1797, %v1809
  %v1826 = vmul.f32 %v1798, %v1810
  %v1827 = vsub.f32 %v1758, %v1825
  %v1828 = vsub.f32 %v1759, %v1826
  %1830 = vset.pattern.permute.xlu0 0
  %1831 = vperm.xlu0 %1830, %v1827
  %v1832 = vpop.permute.xlu0 %1831
  %1835 = vset.pattern.permute.xlu0 0
  %1836 = vperm.xlu0 %1835, %v1828
  %v1837 = vpop.permute.xlu0 %1836
  %v1839 = vadd.f32 %v1821, %v1832
  %v1840 = vadd.f32 %v1822, %v1832
  %v1841 = vadd.f32 %v1823, %v1837
  %v1842 = vadd.f32 %v1824, %v1837
  %v1843 = vmul.f32 %v1839, 0.2
  %v1844 = vmul.f32 %v1840, 0.2
  %v1845 = vmul.f32 %v1841, 0.2
  %v1846 = vmul.f32 %v1842, 0.2
  %v1847 = vmax.f32 %v1839, %v1843
  %v1848 = vmax.f32 %v1840, %v1844
  %v1849 = vmax.f32 %v1841, %v1845
  %v1850 = vmax.f32 %v1842, %v1846
  %v1851 = vpack.c.bf16 %v1849, %v1847
  %v1852 = vld [vmem:[%s13] sm:$0xff]
  %v1853 = vld [vmem:[%s13 + $0x8] sm:$0xf]
  %v1854 = vld [vmem:[%s13 + $0xc] sm:$0xff]
  %v1855 = vld [vmem:[%s13 + $0x14] sm:$0xf]
  %v1856 = vld [vmem:[%s13 + $0x18] sm:$0xff]
  %v1857 = vld [vmem:[%s13 + $0x20] sm:$0xf]
  %v1858 = vld [vmem:[%s13 + $0x24] sm:$0xff]
  %v1859 = vld [vmem:[%s13 + $0x2c] sm:$0xf]
  %v1860 = vld [vmem:[%s13 + $0x30] sm:$0xff]
  %v1861 = vld [vmem:[%s13 + $0x38] sm:$0xf]
  %v1862 = vld [vmem:[%s13 + $0x3c] sm:$0xff]
  %v1863 = vld [vmem:[%s13 + $0x44] sm:$0xf]
  %v1864 = vld [vmem:[%s13 + $0x48] sm:$0xff]
  %v1865 = vld [vmem:[%s13 + $0x50] sm:$0xf]
  %v1866 = vld [vmem:[%s13 + $0x54] sm:$0xff]
  %v1867 = vld [vmem:[%s13 + $0x5c] sm:$0xf]
  %v1868 = vld [vmem:[%s13 + $0x60] sm:$0xff]
  %v1869 = vld [vmem:[%s13 + $0x68] sm:$0xf]
  %v1870 = vld [vmem:[%s13 + $0x6c] sm:$0xff]
  %v1871 = vld [vmem:[%s13 + $0x74] sm:$0xf]
  %v1872 = vld [vmem:[%s13 + $0x78] sm:$0x11]
  %v1873 = vld [vmem:[%s13 + $0x80] sm:$0x1]
  %v1896 = vunpack.c.l.b16 %v1852
  %v1897 = vunpack.c.h.b16 %v1852
  %v1898 = vunpack.c.l.b16 %v1853
  %v1899 = vunpack.c.l.b16 %v1854
  %v1900 = vunpack.c.h.b16 %v1854
  %v1901 = vunpack.c.l.b16 %v1855
  %v1902 = vunpack.c.l.b16 %v1856
  %v1903 = vunpack.c.h.b16 %v1856
  %v1904 = vunpack.c.l.b16 %v1857
  %v1905 = vunpack.c.l.b16 %v1858
  %v1906 = vunpack.c.h.b16 %v1858
  %v1907 = vunpack.c.l.b16 %v1859
  %v1908 = vunpack.c.l.b16 %v1860
  %v1909 = vunpack.c.h.b16 %v1860
  %v1910 = vunpack.c.l.b16 %v1861
  %v1911 = vunpack.c.l.b16 %v1862
  %v1912 = vunpack.c.h.b16 %v1862
  %v1913 = vunpack.c.l.b16 %v1863
  %v1914 = vunpack.c.l.b16 %v1864
  %v1915 = vunpack.c.h.b16 %v1864
  %v1916 = vunpack.c.l.b16 %v1865
  %v1917 = vunpack.c.l.b16 %v1866
  %v1918 = vunpack.c.h.b16 %v1866
  %v1919 = vunpack.c.l.b16 %v1867
  %v1920 = vunpack.c.l.b16 %v1868
  %v1921 = vunpack.c.h.b16 %v1868
  %v1922 = vunpack.c.l.b16 %v1869
  %v1923 = vunpack.c.l.b16 %v1870
  %v1924 = vunpack.c.h.b16 %v1870
  %v1925 = vunpack.c.l.b16 %v1871
  %v1926 = vunpack.c.l.b16 %v1872
  %v1927 = vunpack.c.h.b16 %v1872
  %v1928 = vunpack.c.l.b16 %v1873
  %v1929 = vpack.c.b16 %v1899, %v1896
  %v1930 = vpack.c.b16 %v1900, %v1897
  %v1931 = vpack.c.b16 %v1901, %v1898
  %v1932 = vpack.c.b16 %v1905, %v1902
  %v1933 = vpack.c.b16 %v1906, %v1903
  %v1934 = vpack.c.b16 %v1907, %v1904
  %v1935 = vpack.c.b16 %v1911, %v1908
  %v1936 = vpack.c.b16 %v1912, %v1909
  %v1937 = vpack.c.b16 %v1913, %v1910
  %v1938 = vpack.c.b16 %v1917, %v1914
  %v1939 = vpack.c.b16 %v1918, %v1915
  %v1940 = vpack.c.b16 %v1919, %v1916
  %v1941 = vpack.c.b16 %v1923, %v1920
  %v1942 = vpack.c.b16 %v1924, %v1921
  %v1943 = vpack.c.b16 %v1925, %v1922
  %v1944 = vpack.c.b16 %v1926, %v1926
  %v1945 = vpack.c.b16 %v1927, %v1927
  %v1946 = vpack.c.b16 %v1928, %v1928
  %vm1962 = vcmask 662528
  %v1964 = vsel %vm1962, %v1851, 0
  %v1966 = vsel 0, 4294967295, 65535
  %v1967 = vsel %vm668, %v1966, 0
  %v1969 = vand.u32 %v1944, %v1967
  %v1972 = vand.u32 %v1945, %v1967
  %v1975 = vand.u32 %v1946, %v1967
  %1977 = vmatprep.subr.bf16.mxu0 %v1930
  %1978 = vmatpush1.bf16.msra.mxu0 %v1929
  %1979 = vmatprep.subr.bf16.mxu0 %v1933
  %1980 = vmatpush1.bf16.msra.mxu0 %v1932
  %1981 = vmatprep.subr.bf16.mxu0 %v1936
  %1982 = vmatpush1.bf16.msra.mxu0 %v1935
  %1983 = vmatprep.subr.bf16.mxu0 %v1939
  %1984 = vmatpush1.bf16.msra.mxu0 %v1938
  %1985 = vmatprep.subr.bf16.mxu0 %v1942
  %1986 = vmatpush1.bf16.msra.mxu0 %v1941
  %1987 = vmatprep.subr.bf16.mxu0 %v1972
  %1988 = vmatpush1.bf16.msra.mxu0 %v1969
  %1989 = vmatprep.subr.bf16.mxu0 0
  %1990 = vmatpush1.bf16.msra.mxu0 0
  %1991 = vmatprep.subr.bf16.mxu0 0
  %1992 = vmatpush1.bf16.msra.mxu0 0
  %1993 = vmatprep.subr.bf16.mxu0 0
  %1994 = vmatpush1.bf16.msra.mxu0 0
  %1995 = vmatprep.subr.bf16.mxu0 0
  %1996 = vmatpush1.bf16.msra.mxu0 0
  %1997 = vmatprep.subr.bf16.mxu0 0
  %1998 = vmatpush1.bf16.msra.mxu0 0
  %1999 = vmatprep.subr.bf16.mxu0 0
  %2000 = vmatpush1.bf16.msra.mxu0 0
  %2001 = vmatprep.subr.bf16.mxu0 0
  %2002 = vmatpush1.bf16.msra.mxu0 0
  %2003 = vmatprep.subr.bf16.mxu0 0
  %2004 = vmatpush1.bf16.msra.mxu0 0
  %2005 = vmatprep.subr.bf16.mxu0 0
  %2006 = vmatpush1.bf16.msra.mxu0 0
  %2007 = vmatprep.subr.bf16.mxu0 0
  %2008 = vmatpush1.bf16.msra.mxu0 0
  %2009 = vmatprep.mubr.bf16.mxu0 0
  %2010 = vmatmul.mubr.bf16.gmra.mrb[0].mxu0 %v1964
  %v2011 = vpop.f32.mrb[0].mxu0
  %v2012 = vadd.f32 0.0, %v2011
  %v2013 = vpop.f32.mrb[0].mxu0
  %v2014 = vadd.f32 0.0, %v2013
  %v2015 = vpop.f32.mrb[0].mxu0
  %v2016 = vadd.f32 0.0, %v2015
  %v2017 = vpop.f32.mrb[0].mxu0
  %v2018 = vadd.f32 0.0, %v2017
  %2019 = vdwg.mxu0
  %2020 = vmatprep.subr.bf16.mxu0 0
  %2021 = vmatpush1.bf16.msra.mxu0 %v1931
  %2022 = vmatprep.subr.bf16.mxu0 0
  %2023 = vmatpush1.bf16.msra.mxu0 %v1934
  %2024 = vmatprep.subr.bf16.mxu0 0
  %2025 = vmatpush1.bf16.msra.mxu0 %v1937
  %2026 = vmatprep.subr.bf16.mxu0 0
  %2027 = vmatpush1.bf16.msra.mxu0 %v1940
  %2028 = vmatprep.subr.bf16.mxu0 0
  %2029 = vmatpush1.bf16.msra.mxu0 %v1943
  %2030 = vmatprep.subr.bf16.mxu0 0
  %2031 = vmatpush1.bf16.msra.mxu0 %v1975
  %2032 = vmatprep.subr.bf16.mxu0 0
  %2033 = vmatpush1.bf16.msra.mxu0 0
  %2034 = vmatprep.subr.bf16.mxu0 0
  %2035 = vmatpush1.bf16.msra.mxu0 0
  %2036 = vmatprep.subr.bf16.mxu0 0
  %2037 = vmatpush1.bf16.msra.mxu0 0
  %2038 = vmatprep.subr.bf16.mxu0 0
  %2039 = vmatpush1.bf16.msra.mxu0 0
  %2040 = vmatprep.subr.bf16.mxu0 0
  %2041 = vmatpush1.bf16.msra.mxu0 0
  %2042 = vmatprep.subr.bf16.mxu0 0
  %2043 = vmatpush1.bf16.msra.mxu0 0
  %2044 = vmatprep.subr.bf16.mxu0 0
  %2045 = vmatpush1.bf16.msra.mxu0 0
  %2046 = vmatprep.subr.bf16.mxu0 0
  %2047 = vmatpush1.bf16.msra.mxu0 0
  %2048 = vmatprep.subr.bf16.mxu0 0
  %2049 = vmatpush1.bf16.msra.mxu0 0
  %2050 = vmatprep.subr.bf16.mxu0 0
  %2051 = vmatpush1.bf16.msra.mxu0 0
  %2052 = vmatprep.mubr.bf16.mxu0 0
  %2053 = vmatmul.mubr.bf16.gmra.mrb[0].mxu0 %v1964
  %v2054 = vpop.f32.mrb[0].mxu0
  %v2055 = vadd.f32 0.0, %v2054
  %v2056 = vpop.f32.mrb[0].mxu0
  %v2057 = vpop.f32.mrb[0].mxu0
  %v2058 = vadd.f32 0.0, %v2057
  %v2059 = vpop.f32.mrb[0].mxu0
  %2060 = vdwg.mxu0
  %v2061 = vpack.c.bf16 %v2016, %v2012
  %v2062 = vpack.c.bf16 %v2018, %v2014
  %v2063 = vpack.c.bf16 %v2058, %v2055
  %2067 = vrot.lane.b32.xlu0 %v2061, 18
  %v2068 = vpop.permute.xlu0 %2067
  %2069 = vrot.lane.b32.xlu0 %v2062, 18
  %v2070 = vpop.permute.xlu0 %2069
  %2071 = vrot.lane.b32.xlu0 %v2063, 18
  %v2072 = vpop.permute.xlu0 %2071
  %vm2073 = vcmask 146432
  %v2074 = vsel %vm2073, %v2068, %v2070
  %v2075 = vsel %vm2073, %v2070, %v2072
  %vm2079 = vcmask 1047696
  %2080 = vst.msk [vmem:[#allocation2] sm:$0xff] %vm2079, %v2068
  %2081 = vst [vmem:[#allocation2 + $0x8] sm:$0xff] %v2074
  %vm2082 = vcmask 416768
  %2083 = vst.msk [vmem:[#allocation2 + $0x10] sm:$0xff] %vm2082, %v2075
  %v2084 = vpack.c.bf16 %v1850, %v1848
  %v2085 = vld [vmem:[%s13] sm:$0xff]
  %v2086 = vld [vmem:[%s13 + $0x8] sm:$0xf]
  %v2087 = vld [vmem:[%s13 + $0xc] sm:$0xff]
  %v2088 = vld [vmem:[%s13 + $0x14] sm:$0xf]
  %v2089 = vld [vmem:[%s13 + $0x18] sm:$0xff]
  %v2090 = vld [vmem:[%s13 + $0x20] sm:$0xf]
  %v2091 = vld [vmem:[%s13 + $0x24] sm:$0xff]
  %v2092 = vld [vmem:[%s13 + $0x2c] sm:$0xf]
  %v2093 = vld [vmem:[%s13 + $0x30] sm:$0xff]
  %v2094 = vld [vmem:[%s13 + $0x38] sm:$0xf]
  %v2095 = vld [vmem:[%s13 + $0x3c] sm:$0xff]
  %v2096 = vld [vmem:[%s13 + $0x44] sm:$0xf]
  %v2097 = vld [vmem:[%s13 + $0x48] sm:$0xff]
  %v2098 = vld [vmem:[%s13 + $0x50] sm:$0xf]
  %v2099 = vld [vmem:[%s13 + $0x54] sm:$0xff]
  %v2100 = vld [vmem:[%s13 + $0x5c] sm:$0xf]
  %v2101 = vld [vmem:[%s13 + $0x60] sm:$0xff]
  %v2102 = vld [vmem:[%s13 + $0x68] sm:$0xf]
  %v2103 = vld [vmem:[%s13 + $0x6c] sm:$0xff]
  %v2104 = vld [vmem:[%s13 + $0x74] sm:$0xf]
  %v2105 = vld [vmem:[%s13 + $0x78] sm:$0x11]
  %v2106 = vld [vmem:[%s13 + $0x80] sm:$0x1]
  %2109 = vrot.lane.b32.xlu0 %v1851, 47
  %v2110 = vpop.permute.xlu0 %2109
  %2111 = vrot.lane.b32.xlu0 %v2084, 47
  %v2112 = vpop.permute.xlu0 %2111
  %vm2113 = vcmask 384000
  %v2114 = vsel %vm2113, %v2110, %v2112
  %v2137 = vunpack.c.l.b16 %v2085
  %v2138 = vunpack.c.h.b16 %v2085
  %v2139 = vunpack.c.l.b16 %v2086
  %v2140 = vunpack.c.l.b16 %v2087
  %v2141 = vunpack.c.h.b16 %v2087
  %v2142 = vunpack.c.l.b16 %v2088
  %v2143 = vunpack.c.l.b16 %v2089
  %v2144 = vunpack.c.h.b16 %v2089
  %v2145 = vunpack.c.l.b16 %v2090
  %v2146 = vunpack.c.l.b16 %v2091
  %v2147 = vunpack.c.h.b16 %v2091
  %v2148 = vunpack.c.l.b16 %v2092
  %v2149 = vunpack.c.l.b16 %v2093
  %v2150 = vunpack.c.h.b16 %v2093
  %v2151 = vunpack.c.l.b16 %v2094
  %v2152 = vunpack.c.l.b16 %v2095
  %v2153 = vunpack.c.h.b16 %v2095
  %v2154 = vunpack.c.l.b16 %v2096
  %v2155 = vunpack.c.l.b16 %v2097
  %v2156 = vunpack.c.h.b16 %v2097
  %v2157 = vunpack.c.l.b16 %v2098
  %v2158 = vunpack.c.l.b16 %v2099
  %v2159 = vunpack.c.h.b16 %v2099
  %v2160 = vunpack.c.l.b16 %v2100
  %v2161 = vunpack.c.l.b16 %v2101
  %v2162 = vunpack.c.h.b16 %v2101
  %v2163 = vunpack.c.l.b16 %v2102
  %v2164 = vunpack.c.l.b16 %v2103
  %v2165 = vunpack.c.h.b16 %v2103
  %v2166 = vunpack.c.l.b16 %v2104
  %v2167 = vunpack.c.l.b16 %v2105
  %v2168 = vunpack.c.h.b16 %v2105
  %v2169 = vunpack.c.l.b16 %v2106
  %v2170 = vpack.c.b16 %v2140, %v2137
  %v2171 = vpack.c.b16 %v2141, %v2138
  %v2172 = vpack.c.b16 %v2142, %v2139
  %v2173 = vpack.c.b16 %v2146, %v2143
  %v2174 = vpack.c.b16 %v2147, %v2144
  %v2175 = vpack.c.b16 %v2148, %v2145
  %v2176 = vpack.c.b16 %v2152, %v2149
  %v2177 = vpack.c.b16 %v2153, %v2150
  %v2178 = vpack.c.b16 %v2154, %v2151
  %v2179 = vpack.c.b16 %v2158, %v2155
  %v2180 = vpack.c.b16 %v2159, %v2156
  %v2181 = vpack.c.b16 %v2160, %v2157
  %v2182 = vpack.c.b16 %v2164, %v2161
  %v2183 = vpack.c.b16 %v2165, %v2162
  %v2184 = vpack.c.b16 %v2166, %v2163
  %v2185 = vpack.c.b16 %v2167, %v2167
  %v2186 = vpack.c.b16 %v2168, %v2168
  %v2187 = vpack.c.b16 %v2169, %v2169
  %v2204 = vsel %vm1962, %v2114, 0
  %v2207 = vand.u32 %v2185, %v1967
  %v2210 = vand.u32 %v2186, %v1967
  %v2213 = vand.u32 %v2187, %v1967
  %2215 = vmatprep.subr.bf16.mxu0 %v2171
  %2216 = vmatpush1.bf16.msra.mxu0 %v2170
  %2217 = vmatprep.subr.bf16.mxu0 %v2174
  %2218 = vmatpush1.bf16.msra.mxu0 %v2173
  %2219 = vmatprep.subr.bf16.mxu0 %v2177
  %2220 = vmatpush1.bf16.msra.mxu0 %v2176
  %2221 = vmatprep.subr.bf16.mxu0 %v2180
  %2222 = vmatpush1.bf16.msra.mxu0 %v2179
  %2223 = vmatprep.subr.bf16.mxu0 %v2183
  %2224 = vmatpush1.bf16.msra.mxu0 %v2182
  %2225 = vmatprep.subr.bf16.mxu0 %v2210
  %2226 = vmatpush1.bf16.msra.mxu0 %v2207
  %2227 = vmatprep.subr.bf16.mxu0 0
  %2228 = vmatpush1.bf16.msra.mxu0 0
  %2229 = vmatprep.subr.bf16.mxu0 0
  %2230 = vmatpush1.bf16.msra.mxu0 0
  %2231 = vmatprep.subr.bf16.mxu0 0
  %2232 = vmatpush1.bf16.msra.mxu0 0
  %2233 = vmatprep.subr.bf16.mxu0 0
  %2234 = vmatpush1.bf16.msra.mxu0 0
  %2235 = vmatprep.subr.bf16.mxu0 0
  %2236 = vmatpush1.bf16.msra.mxu0 0
  %2237 = vmatprep.subr.bf16.mxu0 0
  %2238 = vmatpush1.bf16.msra.mxu0 0
  %2239 = vmatprep.subr.bf16.mxu0 0
  %2240 = vmatpush1.bf16.msra.mxu0 0
  %2241 = vmatprep.subr.bf16.mxu0 0
  %2242 = vmatpush1.bf16.msra.mxu0 0
  %2243 = vmatprep.subr.bf16.mxu0 0
  %2244 = vmatpush1.bf16.msra.mxu0 0
  %2245 = vmatprep.subr.bf16.mxu0 0
  %2246 = vmatpush1.bf16.msra.mxu0 0
  %2247 = vmatprep.mubr.bf16.mxu0 0
  %2248 = vmatmul.mubr.bf16.gmra.mrb[0].mxu0 %v2204
  %v2249 = vpop.f32.mrb[0].mxu0
  %v2250 = vadd.f32 0.0, %v2249
  %v2251 = vpop.f32.mrb[0].mxu0
  %v2252 = vadd.f32 0.0, %v2251
  %v2253 = vpop.f32.mrb[0].mxu0
  %v2254 = vadd.f32 0.0, %v2253
  %v2255 = vpop.f32.mrb[0].mxu0
  %v2256 = vadd.f32 0.0, %v2255
  %2257 = vdwg.mxu0
  %2258 = vmatprep.subr.bf16.mxu0 0
  %2259 = vmatpush1.bf16.msra.mxu0 %v2172
  %2260 = vmatprep.subr.bf16.mxu0 0
  %2261 = vmatpush1.bf16.msra.mxu0 %v2175
  %2262 = vmatprep.subr.bf16.mxu0 0
  %2263 = vmatpush1.bf16.msra.mxu0 %v2178
  %2264 = vmatprep.subr.bf16.mxu0 0
  %2265 = vmatpush1.bf16.msra.mxu0 %v2181
  %2266 = vmatprep.subr.bf16.mxu0 0
  %2267 = vmatpush1.bf16.msra.mxu0 %v2184
  %2268 = vmatprep.subr.bf16.mxu0 0
  %2269 = vmatpush1.bf16.msra.mxu0 %v2213
  %2270 = vmatprep.subr.bf16.mxu0 0
  %2271 = vmatpush1.bf16.msra.mxu0 0
  %2272 = vmatprep.subr.bf16.mxu0 0
  %2273 = vmatpush1.bf16.msra.mxu0 0
  %2274 = vmatprep.subr.bf16.mxu0 0
  %2275 = vmatpush1.bf16.msra.mxu0 0
  %2276 = vmatprep.subr.bf16.mxu0 0
  %2277 = vmatpush1.bf16.msra.mxu0 0
  %2278 = vmatprep.subr.bf16.mxu0 0
  %2279 = vmatpush1.bf16.msra.mxu0 0
  %2280 = vmatprep.subr.bf16.mxu0 0
  %2281 = vmatpush1.bf16.msra.mxu0 0
  %2282 = vmatprep.subr.bf16.mxu0 0
  %2283 = vmatpush1.bf16.msra.mxu0 0
  %2284 = vmatprep.subr.bf16.mxu0 0
  %2285 = vmatpush1.bf16.msra.mxu0 0
  %2286 = vmatprep.subr.bf16.mxu0 0
  %2287 = vmatpush1.bf16.msra.mxu0 0
  %2288 = vmatprep.subr.bf16.mxu0 0
  %2289 = vmatpush1.bf16.msra.mxu0 0
  %2290 = vmatprep.mubr.bf16.mxu0 0
  %2291 = vmatmul.mubr.bf16.gmra.mrb[0].mxu0 %v2204
  %v2292 = vpop.f32.mrb[0].mxu0
  %v2293 = vadd.f32 0.0, %v2292
  %v2294 = vpop.f32.mrb[0].mxu0
  %v2295 = vpop.f32.mrb[0].mxu0
  %v2296 = vadd.f32 0.0, %v2295
  %v2297 = vpop.f32.mrb[0].mxu0
  %2298 = vdwg.mxu0
  %v2299 = vpack.c.bf16 %v2254, %v2250
  %v2300 = vpack.c.bf16 %v2256, %v2252
  %v2301 = vpack.c.bf16 %v2296, %v2293
  %2305 = vrot.lane.b32.xlu0 %v2299, 51
  %v2306 = vpop.permute.xlu0 %2305
  %2307 = vrot.lane.b32.xlu0 %v2300, 51
  %v2308 = vpop.permute.xlu0 %2307
  %2309 = vrot.lane.b32.xlu0 %v2301, 51
  %v2310 = vpop.permute.xlu0 %2309
  %vm2311 = vcmask 416768
  %v2312 = vsel %vm2311, %v2306, %v2308
  %v2313 = vsel %vm2311, %v2308, %v2310
  %vm2317 = vcmask 1047960
  %2318 = vst.msk [vmem:[#allocation2 + $0x10] sm:$0xff] %vm2317, %v2306
  %2319 = vst [vmem:[#allocation2 + $0x18] sm:$0xff] %v2312
  %vm2320 = vcmask 687104
  %2321 = vst.msk [vmem:[#allocation2 + $0x20] sm:$0xff] %vm2320, %v2313
  %v2322 = vld [vmem:[#allocation2] sm:$0xff]
  %v2323 = vld [vmem:[#allocation2 + $0x8] sm:$0xff]
  %v2324 = vld [vmem:[#allocation2 + $0x10] sm:$0xff]
  %v2325 = vld [vmem:[#allocation2 + $0x18] sm:$0xff]
  %v2326 = vld [vmem:[#allocation2 + $0x20] sm:$0xff]
  %v2327 = vld [vmem:[%s14] sm:$0xf]
  %s2328 = scalar_lea.vmem %s14, 4
  %v2329 = vld [vmem:[%s2328] sm:$0xf]
  %2335 = vrot.lane.b32.xlu0 %v2322, 127
  %v2336 = vpop.permute.xlu0 %2335
  %2337 = vrot.lane.b32.xlu0 %v2323, 127
  %v2338 = vpop.permute.xlu0 %2337
  %2339 = vrot.lane.b32.xlu0 %v2324, 127
  %v2340 = vpop.permute.xlu0 %2339
  %2341 = vrot.lane.b32.xlu0 %v2325, 127
  %v2342 = vpop.permute.xlu0 %2341
  %2343 = vrot.lane.b32.xlu0 %v2326, 127
  %v2344 = vpop.permute.xlu0 %2343
  %vm2345 = vcmask 1039360
  %v2346 = vsel %vm2345, %v2336, %v2338
  %v2347 = vsel %vm2345, %v2338, %v2340
  %v2348 = vsel %vm2345, %v2340, %v2342
  %v2349 = vsel %vm2345, %v2342, %v2344
  %v2356 = vsel %vm392, %v2329, 0
  %2358 = vmatprep.subr.bf16.mxu0 %v2347
  %2359 = vmatpush1.bf16.msra.mxu0 %v2346
  %2360 = vmatprep.subr.bf16.mxu0 0
  %2361 = vmatpush1.bf16.msra.mxu0 0
  %2362 = vmatprep.subr.bf16.mxu0 0
  %2363 = vmatpush1.bf16.msra.mxu0 0
  %2364 = vmatprep.subr.bf16.mxu0 0
  %2365 = vmatpush1.bf16.msra.mxu0 0
  %2366 = vmatprep.subr.bf16.mxu0 0
  %2367 = vmatpush1.bf16.msra.mxu0 0
  %2368 = vmatprep.subr.bf16.mxu0 0
  %2369 = vmatpush1.bf16.msra.mxu0 0
  %2370 = vmatprep.subr.bf16.mxu0 0
  %2371 = vmatpush1.bf16.msra.mxu0 0
  %2372 = vmatprep.subr.bf16.mxu0 0
  %2373 = vmatpush1.bf16.msra.mxu0 0
  %2374 = vmatprep.subr.bf16.mxu0 0
  %2375 = vmatpush1.bf16.msra.mxu0 0
  %2376 = vmatprep.subr.bf16.mxu0 0
  %2377 = vmatpush1.bf16.msra.mxu0 0
  %2378 = vmatprep.subr.bf16.mxu0 0
  %2379 = vmatpush1.bf16.msra.mxu0 0
  %2380 = vmatprep.subr.bf16.mxu0 0
  %2381 = vmatpush1.bf16.msra.mxu0 0
  %2382 = vmatprep.subr.bf16.mxu0 0
  %2383 = vmatpush1.bf16.msra.mxu0 0
  %2384 = vmatprep.subr.bf16.mxu0 0
  %2385 = vmatpush1.bf16.msra.mxu0 0
  %2386 = vmatprep.subr.bf16.mxu0 0
  %2387 = vmatpush1.bf16.msra.mxu0 0
  %2388 = vmatprep.subr.bf16.mxu0 0
  %2389 = vmatpush1.bf16.msra.mxu0 0
  %2390 = vmatprep.mubr.bf16.mxu0 0
  %2391 = vmatmul.mubr.bf16.gmra.mrb[0].mxu0 %v2356
  %v2392 = vpop.f32.mrb[0].mxu0
  %v2393 = vadd.f32 0.0, %v2392
  %v2394 = vpop.f32.mrb[0].mxu0
  %v2395 = vadd.f32 0.0, %v2394
  %v2396 = vpop.f32.mrb[0].mxu0
  %v2397 = vpop.f32.mrb[0].mxu0
  %2398 = vdwg.mxu0
  %2399 = vmatprep.subr.bf16.mxu0 %v2349
  %2400 = vmatpush1.bf16.msra.mxu0 %v2348
  %2401 = vmatprep.subr.bf16.mxu0 0
  %2402 = vmatpush1.bf16.msra.mxu0 0
  %2403 = vmatprep.subr.bf16.mxu0 0
  %2404 = vmatpush1.bf16.msra.mxu0 0
  %2405 = vmatprep.subr.bf16.mxu0 0
  %2406 = vmatpush1.bf16.msra.mxu0 0
  %2407 = vmatprep.subr.bf16.mxu0 0
  %2408 = vmatpush1.bf16.msra.mxu0 0
  %2409 = vmatprep.subr.bf16.mxu0 0
  %2410 = vmatpush1.bf16.msra.mxu0 0
  %2411 = vmatprep.subr.bf16.mxu0 0
  %2412 = vmatpush1.bf16.msra.mxu0 0
  %2413 = vmatprep.subr.bf16.mxu0 0
  %2414 = vmatpush1.bf16.msra.mxu0 0
  %2415 = vmatprep.subr.bf16.mxu0 0
  %2416 = vmatpush1.bf16.msra.mxu0 0
  %2417 = vmatprep.subr.bf16.mxu0 0
  %2418 = vmatpush1.bf16.msra.mxu0 0
  %2419 = vmatprep.subr.bf16.mxu0 0
  %2420 = vmatpush1.bf16.msra.mxu0 0
  %2421 = vmatprep.subr.bf16.mxu0 0
  %2422 = vmatpush1.bf16.msra.mxu0 0
  %2423 = vmatprep.subr.bf16.mxu0 0
  %2424 = vmatpush1.bf16.msra.mxu0 0
  %2425 = vmatprep.subr.bf16.mxu0 0
  %2426 = vmatpush1.bf16.msra.mxu0 0
  %2427 = vmatprep.subr.bf16.mxu0 0
  %2428 = vmatpush1.bf16.msra.mxu0 0
  %2429 = vmatprep.subr.bf16.mxu0 0
  %2430 = vmatpush1.bf16.msra.mxu0 0
  %2431 = vmatprep.mubr.bf16.mxu0 0
  %2432 = vmatmul.mubr.bf16.gmra.mrb[0].mxu0 %v2356
  %v2433 = vpop.f32.mrb[0].mxu0
  %v2434 = vadd.f32 0.0, %v2433
  %v2435 = vpop.f32.mrb[0].mxu0
  %v2436 = vadd.f32 0.0, %v2435
  %v2437 = vpop.f32.mrb[0].mxu0
  %v2438 = vpop.f32.mrb[0].mxu0
  %2439 = vdwg.mxu0
  %2440 = vmatprep.subr.bf16.mxu0 0
  %2441 = vmatpush1.bf16.msra.mxu0 %v2344
  %2442 = vmatprep.subr.bf16.mxu0 0
  %2443 = vmatpush1.bf16.msra.mxu0 0
  %2444 = vmatprep.subr.bf16.mxu0 0
  %2445 = vmatpush1.bf16.msra.mxu0 0
  %2446 = vmatprep.subr.bf16.mxu0 0
  %2447 = vmatpush1.bf16.msra.mxu0 0
  %2448 = vmatprep.subr.bf16.mxu0 0
  %2449 = vmatpush1.bf16.msra.mxu0 0
  %2450 = vmatprep.subr.bf16.mxu0 0
  %2451 = vmatpush1.bf16.msra.mxu0 0
  %2452 = vmatprep.subr.bf16.mxu0 0
  %2453 = vmatpush1.bf16.msra.mxu0 0
  %2454 = vmatprep.subr.bf16.mxu0 0
  %2455 = vmatpush1.bf16.msra.mxu0 0
  %2456 = vmatprep.subr.bf16.mxu0 0
  %2457 = vmatpush1.bf16.msra.mxu0 0
  %2458 = vmatprep.subr.bf16.mxu0 0
  %2459 = vmatpush1.bf16.msra.mxu0 0
  %2460 = vmatprep.subr.bf16.mxu0 0
  %2461 = vmatpush1.bf16.msra.mxu0 0
  %2462 = vmatprep.subr.bf16.mxu0 0
  %2463 = vmatpush1.bf16.msra.mxu0 0
  %2464 = vmatprep.subr.bf16.mxu0 0
  %2465 = vmatpush1.bf16.msra.mxu0 0
  %2466 = vmatprep.subr.bf16.mxu0 0
  %2467 = vmatpush1.bf16.msra.mxu0 0
  %2468 = vmatprep.subr.bf16.mxu0 0
  %2469 = vmatpush1.bf16.msra.mxu0 0
  %2470 = vmatprep.subr.bf16.mxu0 0
  %2471 = vmatpush1.bf16.msra.mxu0 0
  %2472 = vmatprep.mubr.bf16.mxu0 0
  %2473 = vmatmul.mubr.bf16.gmra.mrb[0].mxu0 %v2356
  %v2474 = vpop.f32.mrb[0].mxu0
  %v2475 = vadd.f32 0.0, %v2474
  %v2476 = vpop.f32.mrb[0].mxu0
  %v2477 = vpop.f32.mrb[0].mxu0
  %v2478 = vpop.f32.mrb[0].mxu0
  %2479 = vdwg.mxu0
  %v2481 = vsel %vm392, %v2327, 0
  %2483 = vmatprep.subr.bf16.mxu0 %v2323
  %2484 = vmatpush1.bf16.msra.mxu0 %v2322
  %2485 = vmatprep.subr.bf16.mxu0 0
  %2486 = vmatpush1.bf16.msra.mxu0 0
  %2487 = vmatprep.subr.bf16.mxu0 0
  %2488 = vmatpush1.bf16.msra.mxu0 0
  %2489 = vmatprep.subr.bf16.mxu0 0
  %2490 = vmatpush1.bf16.msra.mxu0 0
  %2491 = vmatprep.subr.bf16.mxu0 0
  %2492 = vmatpush1.bf16.msra.mxu0 0
  %2493 = vmatprep.subr.bf16.mxu0 0
  %2494 = vmatpush1.bf16.msra.mxu0 0
  %2495 = vmatprep.subr.bf16.mxu0 0
  %2496 = vmatpush1.bf16.msra.mxu0 0
  %2497 = vmatprep.subr.bf16.mxu0 0
  %2498 = vmatpush1.bf16.msra.mxu0 0
  %2499 = vmatprep.subr.bf16.mxu0 0
  %2500 = vmatpush1.bf16.msra.mxu0 0
  %2501 = vmatprep.subr.bf16.mxu0 0
  %2502 = vmatpush1.bf16.msra.mxu0 0
  %2503 = vmatprep.subr.bf16.mxu0 0
  %2504 = vmatpush1.bf16.msra.mxu0 0
  %2505 = vmatprep.subr.bf16.mxu0 0
  %2506 = vmatpush1.bf16.msra.mxu0 0
  %2507 = vmatprep.subr.bf16.mxu0 0
  %2508 = vmatpush1.bf16.msra.mxu0 0
  %2509 = vmatprep.subr.bf16.mxu0 0
  %2510 = vmatpush1.bf16.msra.mxu0 0
  %2511 = vmatprep.subr.bf16.mxu0 0
  %2512 = vmatpush1.bf16.msra.mxu0 0
  %2513 = vmatprep.subr.bf16.mxu0 0
  %2514 = vmatpush1.bf16.msra.mxu0 0
  %2515 = vmatprep.mubr.bf16.mxu0 0
  %2516 = vmatmul.mubr.bf16.gmra.mrb[0].mxu0 %v2481
  %v2517 = vpop.f32.mrb[0].mxu0
  %v2518 = vadd.f32 %v2393, %v2517
  %v2519 = vpop.f32.mrb[0].mxu0
  %v2520 = vadd.f32 %v2395, %v2519
  %v2521 = vpop.f32.mrb[0].mxu0
  %v2522 = vpop.f32.mrb[0].mxu0
  %2523 = vdwg.mxu0
  %2524 = vmatprep.subr.bf16.mxu0 %v2325
  %2525 = vmatpush1.bf16.msra.mxu0 %v2324
  %2526 = vmatprep.subr.bf16.mxu0 0
  %2527 = vmatpush1.bf16.msra.mxu0 0
  %2528 = vmatprep.subr.bf16.mxu0 0
  %2529 = vmatpush1.bf16.msra.mxu0 0
  %2530 = vmatprep.subr.bf16.mxu0 0
  %2531 = vmatpush1.bf16.msra.mxu0 0
  %2532 = vmatprep.subr.bf16.mxu0 0
  %2533 = vmatpush1.bf16.msra.mxu0 0
  %2534 = vmatprep.subr.bf16.mxu0 0
  %2535 = vmatpush1.bf16.msra.mxu0 0
  %2536 = vmatprep.subr.bf16.mxu0 0
  %2537 = vmatpush1.bf16.msra.mxu0 0
  %2538 = vmatprep.subr.bf16.mxu0 0
  %2539 = vmatpush1.bf16.msra.mxu0 0
  %2540 = vmatprep.subr.bf16.mxu0 0
  %2541 = vmatpush1.bf16.msra.mxu0 0
  %2542 = vmatprep.subr.bf16.mxu0 0
  %2543 = vmatpush1.bf16.msra.mxu0 0
  %2544 = vmatprep.subr.bf16.mxu0 0
  %2545 = vmatpush1.bf16.msra.mxu0 0
  %2546 = vmatprep.subr.bf16.mxu0 0
  %2547 = vmatpush1.bf16.msra.mxu0 0
  %2548 = vmatprep.subr.bf16.mxu0 0
  %2549 = vmatpush1.bf16.msra.mxu0 0
  %2550 = vmatprep.subr.bf16.mxu0 0
  %2551 = vmatpush1.bf16.msra.mxu0 0
  %2552 = vmatprep.subr.bf16.mxu0 0
  %2553 = vmatpush1.bf16.msra.mxu0 0
  %2554 = vmatprep.subr.bf16.mxu0 0
  %2555 = vmatpush1.bf16.msra.mxu0 0
  %2556 = vmatprep.mubr.bf16.mxu0 0
  %2557 = vmatmul.mubr.bf16.gmra.mrb[0].mxu0 %v2481
  %v2558 = vpop.f32.mrb[0].mxu0
  %v2559 = vadd.f32 %v2434, %v2558
  %v2560 = vpop.f32.mrb[0].mxu0
  %v2561 = vadd.f32 %v2436, %v2560
  %v2562 = vpop.f32.mrb[0].mxu0
  %v2563 = vpop.f32.mrb[0].mxu0
  %2564 = vdwg.mxu0
  %2565 = vmatprep.subr.bf16.mxu0 0
  %2566 = vmatpush1.bf16.msra.mxu0 %v2326
  %2567 = vmatprep.subr.bf16.mxu0 0
  %2568 = vmatpush1.bf16.msra.mxu0 0
  %2569 = vmatprep.subr.bf16.mxu0 0
  %2570 = vmatpush1.bf16.msra.mxu0 0
  %2571 = vmatprep.subr.bf16.mxu0 0
  %2572 = vmatpush1.bf16.msra.mxu0 0
  %2573 = vmatprep.subr.bf16.mxu0 0
  %2574 = vmatpush1.bf16.msra.mxu0 0
  %2575 = vmatprep.subr.bf16.mxu0 0
  %2576 = vmatpush1.bf16.msra.mxu0 0
  %2577 = vmatprep.subr.bf16.mxu0 0
  %2578 = vmatpush1.bf16.msra.mxu0 0
  %2579 = vmatprep.subr.bf16.mxu0 0
  %2580 = vmatpush1.bf16.msra.mxu0 0
  %2581 = vmatprep.subr.bf16.mxu0 0
  %2582 = vmatpush1.bf16.msra.mxu0 0
  %2583 = vmatprep.subr.bf16.mxu0 0
  %2584 = vmatpush1.bf16.msra.mxu0 0
  %2585 = vmatprep.subr.bf16.mxu0 0
  %2586 = vmatpush1.bf16.msra.mxu0 0
  %2587 = vmatprep.subr.bf16.mxu0 0
  %2588 = vmatpush1.bf16.msra.mxu0 0
  %2589 = vmatprep.subr.bf16.mxu0 0
  %2590 = vmatpush1.bf16.msra.mxu0 0
  %2591 = vmatprep.subr.bf16.mxu0 0
  %2592 = vmatpush1.bf16.msra.mxu0 0
  %2593 = vmatprep.subr.bf16.mxu0 0
  %2594 = vmatpush1.bf16.msra.mxu0 0
  %2595 = vmatprep.subr.bf16.mxu0 0
  %2596 = vmatpush1.bf16.msra.mxu0 0
  %2597 = vmatprep.mubr.bf16.mxu0 0
  %2598 = vmatmul.mubr.bf16.gmra.mrb[0].mxu0 %v2481
  %v2599 = vpop.f32.mrb[0].mxu0
  %v2600 = vadd.f32 %v2475, %v2599
  %v2601 = vpop.f32.mrb[0].mxu0
  %v2602 = vpop.f32.mrb[0].mxu0
  %v2603 = vpop.f32.mrb[0].mxu0
  %2604 = vdwg.mxu0
  %s2605 = scalar_lea.vmem %s14, 8
  %v2606 = vld [vmem:[%s2605] sm:$0xf]
  %2607 = vrot.lane.b32.xlu0 %v2322, 126
  %v2608 = vpop.permute.xlu0 %2607
  %2609 = vrot.lane.b32.xlu0 %v2323, 126
  %v2610 = vpop.permute.xlu0 %2609
  %2611 = vrot.lane.b32.xlu0 %v2324, 126
  %v2612 = vpop.permute.xlu0 %2611
  %2613 = vrot.lane.b32.xlu0 %v2325, 126
  %v2614 = vpop.permute.xlu0 %2613
  %2615 = vrot.lane.b32.xlu0 %v2326, 126
  %v2616 = vpop.permute.xlu0 %2615
  %vm2617 = vcmask 1031168
  %v2618 = vsel %vm2617, %v2608, %v2610
  %v2619 = vsel %vm2617, %v2610, %v2612
  %v2620 = vsel %vm2617, %v2612, %v2614
  %v2621 = vsel %vm2617, %v2614, %v2616
  %v2628 = vsel %vm392, %v2606, 0
  %2630 = vmatprep.subr.bf16.mxu0 %v2619
  %2631 = vmatpush1.bf16.msra.mxu0 %v2618
  %2632 = vmatprep.subr.bf16.mxu0 0
  %2633 = vmatpush1.bf16.msra.mxu0 0
  %2634 = vmatprep.subr.bf16.mxu0 0
  %2635 = vmatpush1.bf16.msra.mxu0 0
  %2636 = vmatprep.subr.bf16.mxu0 0
  %2637 = vmatpush1.bf16.msra.mxu0 0
  %2638 = vmatprep.subr.bf16.mxu0 0
  %2639 = vmatpush1.bf16.msra.mxu0 0
  %2640 = vmatprep.subr.bf16.mxu0 0
  %2641 = vmatpush1.bf16.msra.mxu0 0
  %2642 = vmatprep.subr.bf16.mxu0 0
  %2643 = vmatpush1.bf16.msra.mxu0 0
  %2644 = vmatprep.subr.bf16.mxu0 0
  %2645 = vmatpush1.bf16.msra.mxu0 0
  %2646 = vmatprep.subr.bf16.mxu0 0
  %2647 = vmatpush1.bf16.msra.mxu0 0
  %2648 = vmatprep.subr.bf16.mxu0 0
  %2649 = vmatpush1.bf16.msra.mxu0 0
  %2650 = vmatprep.subr.bf16.mxu0 0
  %2651 = vmatpush1.bf16.msra.mxu0 0
  %2652 = vmatprep.subr.bf16.mxu0 0
  %2653 = vmatpush1.bf16.msra.mxu0 0
  %2654 = vmatprep.subr.bf16.mxu0 0
  %2655 = vmatpush1.bf16.msra.mxu0 0
  %2656 = vmatprep.subr.bf16.mxu0 0
  %2657 = vmatpush1.bf16.msra.mxu0 0
  %2658 = vmatprep.subr.bf16.mxu0 0
  %2659 = vmatpush1.bf16.msra.mxu0 0
  %2660 = vmatprep.subr.bf16.mxu0 0
  %2661 = vmatpush1.bf16.msra.mxu0 0
  %2662 = vmatprep.mubr.bf16.mxu0 0
  %2663 = vmatmul.mubr.bf16.gmra.mrb[0].mxu0 %v2628
  %v2664 = vpop.f32.mrb[0].mxu0
  %v2665 = vadd.f32 0.0, %v2664
  %v2666 = vpop.f32.mrb[0].mxu0
  %v2667 = vadd.f32 0.0, %v2666
  %v2668 = vpop.f32.mrb[0].mxu0
  %v2669 = vpop.f32.mrb[0].mxu0
  %2670 = vdwg.mxu0
  %2671 = vmatprep.subr.bf16.mxu0 %v2621
  %2672 = vmatpush1.bf16.msra.mxu0 %v2620
  %2673 = vmatprep.subr.bf16.mxu0 0
  %2674 = vmatpush1.bf16.msra.mxu0 0
  %2675 = vmatprep.subr.bf16.mxu0 0
  %2676 = vmatpush1.bf16.msra.mxu0 0
  %2677 = vmatprep.subr.bf16.mxu0 0
  %2678 = vmatpush1.bf16.msra.mxu0 0
  %2679 = vmatprep.subr.bf16.mxu0 0
  %2680 = vmatpush1.bf16.msra.mxu0 0
  %2681 = vmatprep.subr.bf16.mxu0 0
  %2682 = vmatpush1.bf16.msra.mxu0 0
  %2683 = vmatprep.subr.bf16.mxu0 0
  %2684 = vmatpush1.bf16.msra.mxu0 0
  %2685 = vmatprep.subr.bf16.mxu0 0
  %2686 = vmatpush1.bf16.msra.mxu0 0
  %2687 = vmatprep.subr.bf16.mxu0 0
  %2688 = vmatpush1.bf16.msra.mxu0 0
  %2689 = vmatprep.subr.bf16.mxu0 0
  %2690 = vmatpush1.bf16.msra.mxu0 0
  %2691 = vmatprep.subr.bf16.mxu0 0
  %2692 = vmatpush1.bf16.msra.mxu0 0
  %2693 = vmatprep.subr.bf16.mxu0 0
  %2694 = vmatpush1.bf16.msra.mxu0 0
  %2695 = vmatprep.subr.bf16.mxu0 0
  %2696 = vmatpush1.bf16.msra.mxu0 0
  %2697 = vmatprep.subr.bf16.mxu0 0
  %2698 = vmatpush1.bf16.msra.mxu0 0
  %2699 = vmatprep.subr.bf16.mxu0 0
  %2700 = vmatpush1.bf16.msra.mxu0 0
  %2701 = vmatprep.subr.bf16.mxu0 0
  %2702 = vmatpush1.bf16.msra.mxu0 0
  %2703 = vmatprep.mubr.bf16.mxu0 0
  %2704 = vmatmul.mubr.bf16.gmra.mrb[0].mxu0 %v2628
  %v2705 = vpop.f32.mrb[0].mxu0
  %v2706 = vadd.f32 0.0, %v2705
  %v2707 = vpop.f32.mrb[0].mxu0
  %v2708 = vadd.f32 0.0, %v2707
  %v2709 = vpop.f32.mrb[0].mxu0
  %v2710 = vpop.f32.mrb[0].mxu0
  %2711 = vdwg.mxu0
  %2712 = vmatprep.subr.bf16.mxu0 0
  %2713 = vmatpush1.bf16.msra.mxu0 %v2616
  %2714 = vmatprep.subr.bf16.mxu0 0
  %2715 = vmatpush1.bf16.msra.mxu0 0
  %2716 = vmatprep.subr.bf16.mxu0 0
  %2717 = vmatpush1.bf16.msra.mxu0 0
  %2718 = vmatprep.subr.bf16.mxu0 0
  %2719 = vmatpush1.bf16.msra.mxu0 0
  %2720 = vmatprep.subr.bf16.mxu0 0
  %2721 = vmatpush1.bf16.msra.mxu0 0
  %2722 = vmatprep.subr.bf16.mxu0 0
  %2723 = vmatpush1.bf16.msra.mxu0 0
  %2724 = vmatprep.subr.bf16.mxu0 0
  %2725 = vmatpush1.bf16.msra.mxu0 0
  %2726 = vmatprep.subr.bf16.mxu0 0
  %2727 = vmatpush1.bf16.msra.mxu0 0
  %2728 = vmatprep.subr.bf16.mxu0 0
  %2729 = vmatpush1.bf16.msra.mxu0 0
  %2730 = vmatprep.subr.bf16.mxu0 0
  %2731 = vmatpush1.bf16.msra.mxu0 0
  %2732 = vmatprep.subr.bf16.mxu0 0
  %2733 = vmatpush1.bf16.msra.mxu0 0
  %2734 = vmatprep.subr.bf16.mxu0 0
  %2735 = vmatpush1.bf16.msra.mxu0 0
  %2736 = vmatprep.subr.bf16.mxu0 0
  %2737 = vmatpush1.bf16.msra.mxu0 0
  %2738 = vmatprep.subr.bf16.mxu0 0
  %2739 = vmatpush1.bf16.msra.mxu0 0
  %2740 = vmatprep.subr.bf16.mxu0 0
  %2741 = vmatpush1.bf16.msra.mxu0 0
  %2742 = vmatprep.subr.bf16.mxu0 0
  %2743 = vmatpush1.bf16.msra.mxu0 0
  %2744 = vmatprep.mubr.bf16.mxu0 0
  %2745 = vmatmul.mubr.bf16.gmra.mrb[0].mxu0 %v2628
  %v2746 = vpop.f32.mrb[0].mxu0
  %v2747 = vadd.f32 0.0, %v2746
  %v2748 = vpop.f32.mrb[0].mxu0
  %v2749 = vpop.f32.mrb[0].mxu0
  %v2750 = vpop.f32.mrb[0].mxu0
  %2751 = vdwg.mxu0
  %v2752 = vadd.f32 %v2518, %v2665
  %v2753 = vadd.f32 %v2520, %v2667
  %v2754 = vadd.f32 %v2559, %v2706
  %v2755 = vadd.f32 %v2561, %v2708
  %v2756 = vadd.f32 %v2600, %v2747
  %s2757 = scalar_lea.vmem %s14, 12
  %v2758 = vld [vmem:[%s2757] sm:$0xf]
  %2759 = vrot.lane.b32.xlu0 %v2322, 111
  %v2760 = vpop.permute.xlu0 %2759
  %2761 = vrot.lane.b32.xlu0 %v2323, 111
  %v2762 = vpop.permute.xlu0 %2761
  %2763 = vrot.lane.b32.xlu0 %v2324, 111
  %v2764 = vpop.permute.xlu0 %2763
  %2765 = vrot.lane.b32.xlu0 %v2325, 111
  %v2766 = vpop.permute.xlu0 %2765
  %2767 = vrot.lane.b32.xlu0 %v2326, 111
  %v2768 = vpop.permute.xlu0 %2767
  %v2769 = vsel %vm1356, %v2760, %v2762
  %v2770 = vsel %vm1356, %v2762, %v2764
  %v2771 = vsel %vm1356, %v2764, %v2766
  %v2772 = vsel %vm1356, %v2766, %v2768
  %v2779 = vsel %vm392, %v2758, 0
  %2781 = vmatprep.subr.bf16.mxu0 %v2770
  %2782 = vmatpush1.bf16.msra.mxu0 %v2769
  %2783 = vmatprep.subr.bf16.mxu0 0
  %2784 = vmatpush1.bf16.msra.mxu0 0
  %2785 = vmatprep.subr.bf16.mxu0 0
  %2786 = vmatpush1.bf16.msra.mxu0 0
  %2787 = vmatprep.subr.bf16.mxu0 0
  %2788 = vmatpush1.bf16.msra.mxu0 0
  %2789 = vmatprep.subr.bf16.mxu0 0
  %2790 = vmatpush1.bf16.msra.mxu0 0
  %2791 = vmatprep.subr.bf16.mxu0 0
  %2792 = vmatpush1.bf16.msra.mxu0 0
  %2793 = vmatprep.subr.bf16.mxu0 0
  %2794 = vmatpush1.bf16.msra.mxu0 0
  %2795 = vmatprep.subr.bf16.mxu0 0
  %2796 = vmatpush1.bf16.msra.mxu0 0
  %2797 = vmatprep.subr.bf16.mxu0 0
  %2798 = vmatpush1.bf16.msra.mxu0 0
  %2799 = vmatprep.subr.bf16.mxu0 0
  %2800 = vmatpush1.bf16.msra.mxu0 0
  %2801 = vmatprep.subr.bf16.mxu0 0
  %2802 = vmatpush1.bf16.msra.mxu0 0
  %2803 = vmatprep.subr.bf16.mxu0 0
  %2804 = vmatpush1.bf16.msra.mxu0 0
  %2805 = vmatprep.subr.bf16.mxu0 0
  %2806 = vmatpush1.bf16.msra.mxu0 0
  %2807 = vmatprep.subr.bf16.mxu0 0
  %2808 = vmatpush1.bf16.msra.mxu0 0
  %2809 = vmatprep.subr.bf16.mxu0 0
  %2810 = vmatpush1.bf16.msra.mxu0 0
  %2811 = vmatprep.subr.bf16.mxu0 0
  %2812 = vmatpush1.bf16.msra.mxu0 0
  %2813 = vmatprep.mubr.bf16.mxu0 0
  %2814 = vmatmul.mubr.bf16.gmra.mrb[0].mxu0 %v2779
  %v2815 = vpop.f32.mrb[0].mxu0
  %v2816 = vadd.f32 0.0, %v2815
  %v2817 = vpop.f32.mrb[0].mxu0
  %v2818 = vadd.f32 0.0, %v2817
  %v2819 = vpop.f32.mrb[0].mxu0
  %v2820 = vpop.f32.mrb[0].mxu0
  %2821 = vdwg.mxu0
  %2822 = vmatprep.subr.bf16.mxu0 %v2772
  %2823 = vmatpush1.bf16.msra.mxu0 %v2771
  %2824 = vmatprep.subr.bf16.mxu0 0
  %2825 = vmatpush1.bf16.msra.mxu0 0
  %2826 = vmatprep.subr.bf16.mxu0 0
  %2827 = vmatpush1.bf16.msra.mxu0 0
  %2828 = vmatprep.subr.bf16.mxu0 0
  %2829 = vmatpush1.bf16.msra.mxu0 0
  %2830 = vmatprep.subr.bf16.mxu0 0
  %2831 = vmatpush1.bf16.msra.mxu0 0
  %2832 = vmatprep.subr.bf16.mxu0 0
  %2833 = vmatpush1.bf16.msra.mxu0 0
  %2834 = vmatprep.subr.bf16.mxu0 0
  %2835 = vmatpush1.bf16.msra.mxu0 0
  %2836 = vmatprep.subr.bf16.mxu0 0
  %2837 = vmatpush1.bf16.msra.mxu0 0
  %2838 = vmatprep.subr.bf16.mxu0 0
  %2839 = vmatpush1.bf16.msra.mxu0 0
  %2840 = vmatprep.subr.bf16.mxu0 0
  %2841 = vmatpush1.bf16.msra.mxu0 0
  %2842 = vmatprep.subr.bf16.mxu0 0
  %2843 = vmatpush1.bf16.msra.mxu0 0
  %2844 = vmatprep.subr.bf16.mxu0 0
  %2845 = vmatpush1.bf16.msra.mxu0 0
  %2846 = vmatprep.subr.bf16.mxu0 0
  %2847 = vmatpush1.bf16.msra.mxu0 0
  %2848 = vmatprep.subr.bf16.mxu0 0
  %2849 = vmatpush1.bf16.msra.mxu0 0
  %2850 = vmatprep.subr.bf16.mxu0 0
  %2851 = vmatpush1.bf16.msra.mxu0 0
  %2852 = vmatprep.subr.bf16.mxu0 0
  %2853 = vmatpush1.bf16.msra.mxu0 0
  %2854 = vmatprep.mubr.bf16.mxu0 0
  %2855 = vmatmul.mubr.bf16.gmra.mrb[0].mxu0 %v2779
  %v2856 = vpop.f32.mrb[0].mxu0
  %v2857 = vadd.f32 0.0, %v2856
  %v2858 = vpop.f32.mrb[0].mxu0
  %v2859 = vadd.f32 0.0, %v2858
  %v2860 = vpop.f32.mrb[0].mxu0
  %v2861 = vpop.f32.mrb[0].mxu0
  %2862 = vdwg.mxu0
  %2863 = vmatprep.subr.bf16.mxu0 0
  %2864 = vmatpush1.bf16.msra.mxu0 %v2768
  %2865 = vmatprep.subr.bf16.mxu0 0
  %2866 = vmatpush1.bf16.msra.mxu0 0
  %2867 = vmatprep.subr.bf16.mxu0 0
  %2868 = vmatpush1.bf16.msra.mxu0 0
  %2869 = vmatprep.subr.bf16.mxu0 0
  %2870 = vmatpush1.bf16.msra.mxu0 0
  %2871 = vmatprep.subr.bf16.mxu0 0
  %2872 = vmatpush1.bf16.msra.mxu0 0
  %2873 = vmatprep.subr.bf16.mxu0 0
  %2874 = vmatpush1.bf16.msra.mxu0 0
  %2875 = vmatprep.subr.bf16.mxu0 0
  %2876 = vmatpush1.bf16.msra.mxu0 0
  %2877 = vmatprep.subr.bf16.mxu0 0
  %2878 = vmatpush1.bf16.msra.mxu0 0
  %2879 = vmatprep.subr.bf16.mxu0 0
  %2880 = vmatpush1.bf16.msra.mxu0 0
  %2881 = vmatprep.subr.bf16.mxu0 0
  %2882 = vmatpush1.bf16.msra.mxu0 0
  %2883 = vmatprep.subr.bf16.mxu0 0
  %2884 = vmatpush1.bf16.msra.mxu0 0
  %2885 = vmatprep.subr.bf16.mxu0 0
  %2886 = vmatpush1.bf16.msra.mxu0 0
  %2887 = vmatprep.subr.bf16.mxu0 0
  %2888 = vmatpush1.bf16.msra.mxu0 0
  %2889 = vmatprep.subr.bf16.mxu0 0
  %2890 = vmatpush1.bf16.msra.mxu0 0
  %2891 = vmatprep.subr.bf16.mxu0 0
  %2892 = vmatpush1.bf16.msra.mxu0 0
  %2893 = vmatprep.subr.bf16.mxu0 0
  %2894 = vmatpush1.bf16.msra.mxu0 0
  %2895 = vmatprep.mubr.bf16.mxu0 0
  %2896 = vmatmul.mubr.bf16.gmra.mrb[0].mxu0 %v2779
  %v2897 = vpop.f32.mrb[0].mxu0
  %v2898 = vadd.f32 0.0, %v2897
  %v2899 = vpop.f32.mrb[0].mxu0
  %v2900 = vpop.f32.mrb[0].mxu0
  %v2901 = vpop.f32.mrb[0].mxu0
  %2902 = vdwg.mxu0
  %v2903 = vadd.f32 %v2752, %v2816
  %v2904 = vadd.f32 %v2753, %v2818
  %v2905 = vadd.f32 %v2754, %v2857
  %v2906 = vadd.f32 %v2755, %v2859
  %v2907 = vadd.f32 %v2756, %v2898
  %s2908 = scalar_lea.vmem %s14, 16
  %v2909 = vld [vmem:[%s2908] sm:$0xf]
  %2910 = vrot.lane.b32.xlu0 %v2322, 110
  %v2911 = vpop.permute.xlu0 %2910
  %2912 = vrot.lane.b32.xlu0 %v2323, 110
  %v2913 = vpop.permute.xlu0 %2912
  %2914 = vrot.lane.b32.xlu0 %v2324, 110
  %v2915 = vpop.permute.xlu0 %2914
  %2916 = vrot.lane.b32.xlu0 %v2325, 110
  %v2917 = vpop.permute.xlu0 %2916
  %2918 = vrot.lane.b32.xlu0 %v2326, 110
  %v2919 = vpop.permute.xlu0 %2918
  %v2920 = vsel %vm1422, %v2911, %v2913
  %v2921 = vsel %vm1422, %v2913, %v2915
  %v2922 = vsel %vm1422, %v2915, %v2917
  %v2923 = vsel %vm1422, %v2917, %v2919
  %v2930 = vsel %vm392, %v2909, 0
  %2932 = vmatprep.subr.bf16.mxu0 %v2921
  %2933 = vmatpush1.bf16.msra.mxu0 %v2920
  %2934 = vmatprep.subr.bf16.mxu0 0
  %2935 = vmatpush1.bf16.msra.mxu0 0
  %2936 = vmatprep.subr.bf16.mxu0 0
  %2937 = vmatpush1.bf16.msra.mxu0 0
  %2938 = vmatprep.subr.bf16.mxu0 0
  %2939 = vmatpush1.bf16.msra.mxu0 0
  %2940 = vmatprep.subr.bf16.mxu0 0
  %2941 = vmatpush1.bf16.msra.mxu0 0
  %2942 = vmatprep.subr.bf16.mxu0 0
  %2943 = vmatpush1.bf16.msra.mxu0 0
  %2944 = vmatprep.subr.bf16.mxu0 0
  %2945 = vmatpush1.bf16.msra.mxu0 0
  %2946 = vmatprep.subr.bf16.mxu0 0
  %2947 = vmatpush1.bf16.msra.mxu0 0
  %2948 = vmatprep.subr.bf16.mxu0 0
  %2949 = vmatpush1.bf16.msra.mxu0 0
  %2950 = vmatprep.subr.bf16.mxu0 0
  %2951 = vmatpush1.bf16.msra.mxu0 0
  %2952 = vmatprep.subr.bf16.mxu0 0
  %2953 = vmatpush1.bf16.msra.mxu0 0
  %2954 = vmatprep.subr.bf16.mxu0 0
  %2955 = vmatpush1.bf16.msra.mxu0 0
  %2956 = vmatprep.subr.bf16.mxu0 0
  %2957 = vmatpush1.bf16.msra.mxu0 0
  %2958 = vmatprep.subr.bf16.mxu0 0
  %2959 = vmatpush1.bf16.msra.mxu0 0
  %2960 = vmatprep.subr.bf16.mxu0 0
  %2961 = vmatpush1.bf16.msra.mxu0 0
  %2962 = vmatprep.subr.bf16.mxu0 0
  %2963 = vmatpush1.bf16.msra.mxu0 0
  %2964 = vmatprep.mubr.bf16.mxu0 0
  %2965 = vmatmul.mubr.bf16.gmra.mrb[0].mxu0 %v2930
  %v2966 = vpop.f32.mrb[0].mxu0
  %v2967 = vadd.f32 0.0, %v2966
  %v2968 = vpop.f32.mrb[0].mxu0
  %v2969 = vadd.f32 0.0, %v2968
  %v2970 = vpop.f32.mrb[0].mxu0
  %v2971 = vpop.f32.mrb[0].mxu0
  %2972 = vdwg.mxu0
  %2973 = vmatprep.subr.bf16.mxu0 %v2923
  %2974 = vmatpush1.bf16.msra.mxu0 %v2922
  %2975 = vmatprep.subr.bf16.mxu0 0
  %2976 = vmatpush1.bf16.msra.mxu0 0
  %2977 = vmatprep.subr.bf16.mxu0 0
  %2978 = vmatpush1.bf16.msra.mxu0 0
  %2979 = vmatprep.subr.bf16.mxu0 0
  %2980 = vmatpush1.bf16.msra.mxu0 0
  %2981 = vmatprep.subr.bf16.mxu0 0
  %2982 = vmatpush1.bf16.msra.mxu0 0
  %2983 = vmatprep.subr.bf16.mxu0 0
  %2984 = vmatpush1.bf16.msra.mxu0 0
  %2985 = vmatprep.subr.bf16.mxu0 0
  %2986 = vmatpush1.bf16.msra.mxu0 0
  %2987 = vmatprep.subr.bf16.mxu0 0
  %2988 = vmatpush1.bf16.msra.mxu0 0
  %2989 = vmatprep.subr.bf16.mxu0 0
  %2990 = vmatpush1.bf16.msra.mxu0 0
  %2991 = vmatprep.subr.bf16.mxu0 0
  %2992 = vmatpush1.bf16.msra.mxu0 0
  %2993 = vmatprep.subr.bf16.mxu0 0
  %2994 = vmatpush1.bf16.msra.mxu0 0
  %2995 = vmatprep.subr.bf16.mxu0 0
  %2996 = vmatpush1.bf16.msra.mxu0 0
  %2997 = vmatprep.subr.bf16.mxu0 0
  %2998 = vmatpush1.bf16.msra.mxu0 0
  %2999 = vmatprep.subr.bf16.mxu0 0
  %3000 = vmatpush1.bf16.msra.mxu0 0
  %3001 = vmatprep.subr.bf16.mxu0 0
  %3002 = vmatpush1.bf16.msra.mxu0 0
  %3003 = vmatprep.subr.bf16.mxu0 0
  %3004 = vmatpush1.bf16.msra.mxu0 0
  %3005 = vmatprep.mubr.bf16.mxu0 0
  %3006 = vmatmul.mubr.bf16.gmra.mrb[0].mxu0 %v2930
  %v3007 = vpop.f32.mrb[0].mxu0
  %v3008 = vadd.f32 0.0, %v3007
  %v3009 = vpop.f32.mrb[0].mxu0
  %v3010 = vadd.f32 0.0, %v3009
  %v3011 = vpop.f32.mrb[0].mxu0
  %v3012 = vpop.f32.mrb[0].mxu0
  %3013 = vdwg.mxu0
  %3014 = vmatprep.subr.bf16.mxu0 0
  %3015 = vmatpush1.bf16.msra.mxu0 %v2919
  %3016 = vmatprep.subr.bf16.mxu0 0
  %3017 = vmatpush1.bf16.msra.mxu0 0
  %3018 = vmatprep.subr.bf16.mxu0 0
  %3019 = vmatpush1.bf16.msra.mxu0 0
  %3020 = vmatprep.subr.bf16.mxu0 0
  %3021 = vmatpush1.bf16.msra.mxu0 0
  %3022 = vmatprep.subr.bf16.mxu0 0
  %3023 = vmatpush1.bf16.msra.mxu0 0
  %3024 = vmatprep.subr.bf16.mxu0 0
  %3025 = vmatpush1.bf16.msra.mxu0 0
  %3026 = vmatprep.subr.bf16.mxu0 0
  %3027 = vmatpush1.bf16.msra.mxu0 0
  %3028 = vmatprep.subr.bf16.mxu0 0
  %3029 = vmatpush1.bf16.msra.mxu0 0
  %3030 = vmatprep.subr.bf16.mxu0 0
  %3031 = vmatpush1.bf16.msra.mxu0 0
  %3032 = vmatprep.subr.bf16.mxu0 0
  %3033 = vmatpush1.bf16.msra.mxu0 0
  %3034 = vmatprep.subr.bf16.mxu0 0
  %3035 = vmatpush1.bf16.msra.mxu0 0
  %3036 = vmatprep.subr.bf16.mxu0 0
  %3037 = vmatpush1.bf16.msra.mxu0 0
  %3038 = vmatprep.subr.bf16.mxu0 0
  %3039 = vmatpush1.bf16.msra.mxu0 0
  %3040 = vmatprep.subr.bf16.mxu0 0
  %3041 = vmatpush1.bf16.msra.mxu0 0
  %3042 = vmatprep.subr.bf16.mxu0 0
  %3043 = vmatpush1.bf16.msra.mxu0 0
  %3044 = vmatprep.subr.bf16.mxu0 0
  %3045 = vmatpush1.bf16.msra.mxu0 0
  %3046 = vmatprep.mubr.bf16.mxu0 0
  %3047 = vmatmul.mubr.bf16.gmra.mrb[0].mxu0 %v2930
  %v3048 = vpop.f32.mrb[0].mxu0
  %v3049 = vadd.f32 0.0, %v3048
  %v3050 = vpop.f32.mrb[0].mxu0
  %v3051 = vpop.f32.mrb[0].mxu0
  %v3052 = vpop.f32.mrb[0].mxu0
  %3053 = vdwg.mxu0
  %v3054 = vadd.f32 %v2903, %v2967
  %v3055 = vadd.f32 %v2904, %v2969
  %v3056 = vadd.f32 %v2905, %v3008
  %v3057 = vadd.f32 %v2906, %v3010
  %v3058 = vadd.f32 %v2907, %v3049
  %s3059 = scalar_lea.vmem %s14, 20
  %v3060 = vld [vmem:[%s3059] sm:$0xf]
  %3061 = vrot.lane.b32.xlu0 %v2322, 109
  %v3062 = vpop.permute.xlu0 %3061
  %3063 = vrot.lane.b32.xlu0 %v2323, 109
  %v3064 = vpop.permute.xlu0 %3063
  %3065 = vrot.lane.b32.xlu0 %v2324, 109
  %v3066 = vpop.permute.xlu0 %3065
  %3067 = vrot.lane.b32.xlu0 %v2325, 109
  %v3068 = vpop.permute.xlu0 %3067
  %3069 = vrot.lane.b32.xlu0 %v2326, 109
  %v3070 = vpop.permute.xlu0 %3069
  %v3071 = vsel %vm1488, %v3062, %v3064
  %v3072 = vsel %vm1488, %v3064, %v3066
  %v3073 = vsel %vm1488, %v3066, %v3068
  %v3074 = vsel %vm1488, %v3068, %v3070
  %v3081 = vsel %vm392, %v3060, 0
  %3083 = vmatprep.subr.bf16.mxu0 %v3072
  %3084 = vmatpush1.bf16.msra.mxu0 %v3071
  %3085 = vmatprep.subr.bf16.mxu0 0
  %3086 = vmatpush1.bf16.msra.mxu0 0
  %3087 = vmatprep.subr.bf16.mxu0 0
  %3088 = vmatpush1.bf16.msra.mxu0 0
  %3089 = vmatprep.subr.bf16.mxu0 0
  %3090 = vmatpush1.bf16.msra.mxu0 0
  %3091 = vmatprep.subr.bf16.mxu0 0
  %3092 = vmatpush1.bf16.msra.mxu0 0
  %3093 = vmatprep.subr.bf16.mxu0 0
  %3094 = vmatpush1.bf16.msra.mxu0 0
  %3095 = vmatprep.subr.bf16.mxu0 0
  %3096 = vmatpush1.bf16.msra.mxu0 0
  %3097 = vmatprep.subr.bf16.mxu0 0
  %3098 = vmatpush1.bf16.msra.mxu0 0
  %3099 = vmatprep.subr.bf16.mxu0 0
  %3100 = vmatpush1.bf16.msra.mxu0 0
  %3101 = vmatprep.subr.bf16.mxu0 0
  %3102 = vmatpush1.bf16.msra.mxu0 0
  %3103 = vmatprep.subr.bf16.mxu0 0
  %3104 = vmatpush1.bf16.msra.mxu0 0
  %3105 = vmatprep.subr.bf16.mxu0 0
  %3106 = vmatpush1.bf16.msra.mxu0 0
  %3107 = vmatprep.subr.bf16.mxu0 0
  %3108 = vmatpush1.bf16.msra.mxu0 0
  %3109 = vmatprep.subr.bf16.mxu0 0
  %3110 = vmatpush1.bf16.msra.mxu0 0
  %3111 = vmatprep.subr.bf16.mxu0 0
  %3112 = vmatpush1.bf16.msra.mxu0 0
  %3113 = vmatprep.subr.bf16.mxu0 0
  %3114 = vmatpush1.bf16.msra.mxu0 0
  %3115 = vmatprep.mubr.bf16.mxu0 0
  %3116 = vmatmul.mubr.bf16.gmra.mrb[0].mxu0 %v3081
  %v3117 = vpop.f32.mrb[0].mxu0
  %v3118 = vadd.f32 0.0, %v3117
  %v3119 = vpop.f32.mrb[0].mxu0
  %v3120 = vadd.f32 0.0, %v3119
  %v3121 = vpop.f32.mrb[0].mxu0
  %v3122 = vpop.f32.mrb[0].mxu0
  %3123 = vdwg.mxu0
  %3124 = vmatprep.subr.bf16.mxu0 %v3074
  %3125 = vmatpush1.bf16.msra.mxu0 %v3073
  %3126 = vmatprep.subr.bf16.mxu0 0
  %3127 = vmatpush1.bf16.msra.mxu0 0
  %3128 = vmatprep.subr.bf16.mxu0 0
  %3129 = vmatpush1.bf16.msra.mxu0 0
  %3130 = vmatprep.subr.bf16.mxu0 0
  %3131 = vmatpush1.bf16.msra.mxu0 0
  %3132 = vmatprep.subr.bf16.mxu0 0
  %3133 = vmatpush1.bf16.msra.mxu0 0
  %3134 = vmatprep.subr.bf16.mxu0 0
  %3135 = vmatpush1.bf16.msra.mxu0 0
  %3136 = vmatprep.subr.bf16.mxu0 0
  %3137 = vmatpush1.bf16.msra.mxu0 0
  %3138 = vmatprep.subr.bf16.mxu0 0
  %3139 = vmatpush1.bf16.msra.mxu0 0
  %3140 = vmatprep.subr.bf16.mxu0 0
  %3141 = vmatpush1.bf16.msra.mxu0 0
  %3142 = vmatprep.subr.bf16.mxu0 0
  %3143 = vmatpush1.bf16.msra.mxu0 0
  %3144 = vmatprep.subr.bf16.mxu0 0
  %3145 = vmatpush1.bf16.msra.mxu0 0
  %3146 = vmatprep.subr.bf16.mxu0 0
  %3147 = vmatpush1.bf16.msra.mxu0 0
  %3148 = vmatprep.subr.bf16.mxu0 0
  %3149 = vmatpush1.bf16.msra.mxu0 0
  %3150 = vmatprep.subr.bf16.mxu0 0
  %3151 = vmatpush1.bf16.msra.mxu0 0
  %3152 = vmatprep.subr.bf16.mxu0 0
  %3153 = vmatpush1.bf16.msra.mxu0 0
  %3154 = vmatprep.subr.bf16.mxu0 0
  %3155 = vmatpush1.bf16.msra.mxu0 0
  %3156 = vmatprep.mubr.bf16.mxu0 0
  %3157 = vmatmul.mubr.bf16.gmra.mrb[0].mxu0 %v3081
  %v3158 = vpop.f32.mrb[0].mxu0
  %v3159 = vadd.f32 0.0, %v3158
  %v3160 = vpop.f32.mrb[0].mxu0
  %v3161 = vadd.f32 0.0, %v3160
  %v3162 = vpop.f32.mrb[0].mxu0
  %v3163 = vpop.f32.mrb[0].mxu0
  %3164 = vdwg.mxu0
  %3165 = vmatprep.subr.bf16.mxu0 0
  %3166 = vmatpush1.bf16.msra.mxu0 %v3070
  %3167 = vmatprep.subr.bf16.mxu0 0
  %3168 = vmatpush1.bf16.msra.mxu0 0
  %3169 = vmatprep.subr.bf16.mxu0 0
  %3170 = vmatpush1.bf16.msra.mxu0 0
  %3171 = vmatprep.subr.bf16.mxu0 0
  %3172 = vmatpush1.bf16.msra.mxu0 0
  %3173 = vmatprep.subr.bf16.mxu0 0
  %3174 = vmatpush1.bf16.msra.mxu0 0
  %3175 = vmatprep.subr.bf16.mxu0 0
  %3176 = vmatpush1.bf16.msra.mxu0 0
  %3177 = vmatprep.subr.bf16.mxu0 0
  %3178 = vmatpush1.bf16.msra.mxu0 0
  %3179 = vmatprep.subr.bf16.mxu0 0
  %3180 = vmatpush1.bf16.msra.mxu0 0
  %3181 = vmatprep.subr.bf16.mxu0 0
  %3182 = vmatpush1.bf16.msra.mxu0 0
  %3183 = vmatprep.subr.bf16.mxu0 0
  %3184 = vmatpush1.bf16.msra.mxu0 0
  %3185 = vmatprep.subr.bf16.mxu0 0
  %3186 = vmatpush1.bf16.msra.mxu0 0
  %3187 = vmatprep.subr.bf16.mxu0 0
  %3188 = vmatpush1.bf16.msra.mxu0 0
  %3189 = vmatprep.subr.bf16.mxu0 0
  %3190 = vmatpush1.bf16.msra.mxu0 0
  %3191 = vmatprep.subr.bf16.mxu0 0
  %3192 = vmatpush1.bf16.msra.mxu0 0
  %3193 = vmatprep.subr.bf16.mxu0 0
  %3194 = vmatpush1.bf16.msra.mxu0 0
  %3195 = vmatprep.subr.bf16.mxu0 0
  %3196 = vmatpush1.bf16.msra.mxu0 0
  %3197 = vmatprep.mubr.bf16.mxu0 0
  %3198 = vmatmul.mubr.bf16.gmra.mrb[0].mxu0 %v3081
  %v3199 = vpop.f32.mrb[0].mxu0
  %v3200 = vadd.f32 0.0, %v3199
  %v3201 = vpop.f32.mrb[0].mxu0
  %v3202 = vpop.f32.mrb[0].mxu0
  %v3203 = vpop.f32.mrb[0].mxu0
  %3204 = vdwg.mxu0
  %v3205 = vadd.f32 %v3054, %v3118
  %v3206 = vadd.f32 %v3055, %v3120
  %v3207 = vadd.f32 %v3056, %v3159
  %v3208 = vadd.f32 %v3057, %v3161
  %v3209 = vadd.f32 %v3058, %v3200
  %s3210 = scalar_lea.vmem %s14, 24
  %v3211 = vld [vmem:[%s3210] sm:$0xf]
  %3212 = vrot.lane.b32.xlu0 %v2322, 94
  %v3213 = vpop.permute.xlu0 %3212
  %3214 = vrot.lane.b32.xlu0 %v2323, 94
  %v3215 = vpop.permute.xlu0 %3214
  %3216 = vrot.lane.b32.xlu0 %v2324, 94
  %v3217 = vpop.permute.xlu0 %3216
  %3218 = vrot.lane.b32.xlu0 %v2325, 94
  %v3219 = vpop.permute.xlu0 %3218
  %3220 = vrot.lane.b32.xlu0 %v2326, 94
  %v3221 = vpop.permute.xlu0 %3220
  %vm3222 = vcmask 769024
  %v3223 = vsel %vm3222, %v3213, %v3215
  %v3224 = vsel %vm3222, %v3215, %v3217
  %v3225 = vsel %vm3222, %v3217, %v3219
  %v3226 = vsel %vm3222, %v3219, %v3221
  %v3233 = vsel %vm392, %v3211, 0
  %3235 = vmatprep.subr.bf16.mxu0 %v3224
  %3236 = vmatpush1.bf16.msra.mxu0 %v3223
  %3237 = vmatprep.subr.bf16.mxu0 0
  %3238 = vmatpush1.bf16.msra.mxu0 0
  %3239 = vmatprep.subr.bf16.mxu0 0
  %3240 = vmatpush1.bf16.msra.mxu0 0
  %3241 = vmatprep.subr.bf16.mxu0 0
  %3242 = vmatpush1.bf16.msra.mxu0 0
  %3243 = vmatprep.subr.bf16.mxu0 0
  %3244 = vmatpush1.bf16.msra.mxu0 0
  %3245 = vmatprep.subr.bf16.mxu0 0
  %3246 = vmatpush1.bf16.msra.mxu0 0
  %3247 = vmatprep.subr.bf16.mxu0 0
  %3248 = vmatpush1.bf16.msra.mxu0 0
  %3249 = vmatprep.subr.bf16.mxu0 0
  %3250 = vmatpush1.bf16.msra.mxu0 0
  %3251 = vmatprep.subr.bf16.mxu0 0
  %3252 = vmatpush1.bf16.msra.mxu0 0
  %3253 = vmatprep.subr.bf16.mxu0 0
  %3254 = vmatpush1.bf16.msra.mxu0 0
  %3255 = vmatprep.subr.bf16.mxu0 0
  %3256 = vmatpush1.bf16.msra.mxu0 0
  %3257 = vmatprep.subr.bf16.mxu0 0
  %3258 = vmatpush1.bf16.msra.mxu0 0
  %3259 = vmatprep.subr.bf16.mxu0 0
  %3260 = vmatpush1.bf16.msra.mxu0 0
  %3261 = vmatprep.subr.bf16.mxu0 0
  %3262 = vmatpush1.bf16.msra.mxu0 0
  %3263 = vmatprep.subr.bf16.mxu0 0
  %3264 = vmatpush1.bf16.msra.mxu0 0
  %3265 = vmatprep.subr.bf16.mxu0 0
  %3266 = vmatpush1.bf16.msra.mxu0 0
  %3267 = vmatprep.mubr.bf16.mxu0 0
  %3268 = vmatmul.mubr.bf16.gmra.mrb[0].mxu0 %v3233
  %v3269 = vpop.f32.mrb[0].mxu0
  %v3270 = vadd.f32 0.0, %v3269
  %v3271 = vpop.f32.mrb[0].mxu0
  %v3272 = vadd.f32 0.0, %v3271
  %v3273 = vpop.f32.mrb[0].mxu0
  %v3274 = vpop.f32.mrb[0].mxu0
  %3275 = vdwg.mxu0
  %3276 = vmatprep.subr.bf16.mxu0 %v3226
  %3277 = vmatpush1.bf16.msra.mxu0 %v3225
  %3278 = vmatprep.subr.bf16.mxu0 0
  %3279 = vmatpush1.bf16.msra.mxu0 0
  %3280 = vmatprep.subr.bf16.mxu0 0
  %3281 = vmatpush1.bf16.msra.mxu0 0
  %3282 = vmatprep.subr.bf16.mxu0 0
  %3283 = vmatpush1.bf16.msra.mxu0 0
  %3284 = vmatprep.subr.bf16.mxu0 0
  %3285 = vmatpush1.bf16.msra.mxu0 0
  %3286 = vmatprep.subr.bf16.mxu0 0
  %3287 = vmatpush1.bf16.msra.mxu0 0
  %3288 = vmatprep.subr.bf16.mxu0 0
  %3289 = vmatpush1.bf16.msra.mxu0 0
  %3290 = vmatprep.subr.bf16.mxu0 0
  %3291 = vmatpush1.bf16.msra.mxu0 0
  %3292 = vmatprep.subr.bf16.mxu0 0
  %3293 = vmatpush1.bf16.msra.mxu0 0
  %3294 = vmatprep.subr.bf16.mxu0 0
  %3295 = vmatpush1.bf16.msra.mxu0 0
  %3296 = vmatprep.subr.bf16.mxu0 0
  %3297 = vmatpush1.bf16.msra.mxu0 0
  %3298 = vmatprep.subr.bf16.mxu0 0
  %3299 = vmatpush1.bf16.msra.mxu0 0
  %3300 = vmatprep.subr.bf16.mxu0 0
  %3301 = vmatpush1.bf16.msra.mxu0 0
  %3302 = vmatprep.subr.bf16.mxu0 0
  %3303 = vmatpush1.bf16.msra.mxu0 0
  %3304 = vmatprep.subr.bf16.mxu0 0
  %3305 = vmatpush1.bf16.msra.mxu0 0
  %3306 = vmatprep.subr.bf16.mxu0 0
  %3307 = vmatpush1.bf16.msra.mxu0 0
  %3308 = vmatprep.mubr.bf16.mxu0 0
  %3309 = vmatmul.mubr.bf16.gmra.mrb[0].mxu0 %v3233
  %v3310 = vpop.f32.mrb[0].mxu0
  %v3311 = vadd.f32 0.0, %v3310
  %v3312 = vpop.f32.mrb[0].mxu0
  %v3313 = vadd.f32 0.0, %v3312
  %v3314 = vpop.f32.mrb[0].mxu0
  %v3315 = vpop.f32.mrb[0].mxu0
  %3316 = vdwg.mxu0
  %3317 = vmatprep.subr.bf16.mxu0 0
  %3318 = vmatpush1.bf16.msra.mxu0 %v3221
  %3319 = vmatprep.subr.bf16.mxu0 0
  %3320 = vmatpush1.bf16.msra.mxu0 0
  %3321 = vmatprep.subr.bf16.mxu0 0
  %3322 = vmatpush1.bf16.msra.mxu0 0
  %3323 = vmatprep.subr.bf16.mxu0 0
  %3324 = vmatpush1.bf16.msra.mxu0 0
  %3325 = vmatprep.subr.bf16.mxu0 0
  %3326 = vmatpush1.bf16.msra.mxu0 0
  %3327 = vmatprep.subr.bf16.mxu0 0
  %3328 = vmatpush1.bf16.msra.mxu0 0
  %3329 = vmatprep.subr.bf16.mxu0 0
  %3330 = vmatpush1.bf16.msra.mxu0 0
  %3331 = vmatprep.subr.bf16.mxu0 0
  %3332 = vmatpush1.bf16.msra.mxu0 0
  %3333 = vmatprep.subr.bf16.mxu0 0
  %3334 = vmatpush1.bf16.msra.mxu0 0
  %3335 = vmatprep.subr.bf16.mxu0 0
  %3336 = vmatpush1.bf16.msra.mxu0 0
  %3337 = vmatprep.subr.bf16.mxu0 0
  %3338 = vmatpush1.bf16.msra.mxu0 0
  %3339 = vmatprep.subr.bf16.mxu0 0
  %3340 = vmatpush1.bf16.msra.mxu0 0
  %3341 = vmatprep.subr.bf16.mxu0 0
  %3342 = vmatpush1.bf16.msra.mxu0 0
  %3343 = vmatprep.subr.bf16.mxu0 0
  %3344 = vmatpush1.bf16.msra.mxu0 0
  %3345 = vmatprep.subr.bf16.mxu0 0
  %3346 = vmatpush1.bf16.msra.mxu0 0
  %3347 = vmatprep.subr.bf16.mxu0 0
  %3348 = vmatpush1.bf16.msra.mxu0 0
  %3349 = vmatprep.mubr.bf16.mxu0 0
  %3350 = vmatmul.mubr.bf16.gmra.mrb[0].mxu0 %v3233
  %v3351 = vpop.f32.mrb[0].mxu0
  %v3352 = vadd.f32 0.0, %v3351
  %v3353 = vpop.f32.mrb[0].mxu0
  %v3354 = vpop.f32.mrb[0].mxu0
  %v3355 = vpop.f32.mrb[0].mxu0
  %3356 = vdwg.mxu0
  %v3357 = vadd.f32 %v3205, %v3270
  %v3358 = vadd.f32 %v3206, %v3272
  %v3359 = vadd.f32 %v3207, %v3311
  %v3360 = vadd.f32 %v3208, %v3313
  %v3361 = vadd.f32 %v3209, %v3352
  %s3362 = scalar_lea.vmem %s14, 28
  %v3363 = vld [vmem:[%s3362] sm:$0xf]
  %3364 = vrot.lane.b32.xlu0 %v2322, 93
  %v3365 = vpop.permute.xlu0 %3364
  %3366 = vrot.lane.b32.xlu0 %v2323, 93
  %v3367 = vpop.permute.xlu0 %3366
  %3368 = vrot.lane.b32.xlu0 %v2324, 93
  %v3369 = vpop.permute.xlu0 %3368
  %3370 = vrot.lane.b32.xlu0 %v2325, 93
  %v3371 = vpop.permute.xlu0 %3370
  %3372 = vrot.lane.b32.xlu0 %v2326, 93
  %v3373 = vpop.permute.xlu0 %3372
  %vm3374 = vcmask 760832
  %v3375 = vsel %vm3374, %v3365, %v3367
  %v3376 = vsel %vm3374, %v3367, %v3369
  %v3377 = vsel %vm3374, %v3369, %v3371
  %v3378 = vsel %vm3374, %v3371, %v3373
  %v3385 = vsel %vm392, %v3363, 0
  %3387 = vmatprep.subr.bf16.mxu0 %v3376
  %3388 = vmatpush1.bf16.msra.mxu0 %v3375
  %3389 = vmatprep.subr.bf16.mxu0 0
  %3390 = vmatpush1.bf16.msra.mxu0 0
  %3391 = vmatprep.subr.bf16.mxu0 0
  %3392 = vmatpush1.bf16.msra.mxu0 0
  %3393 = vmatprep.subr.bf16.mxu0 0
  %3394 = vmatpush1.bf16.msra.mxu0 0
  %3395 = vmatprep.subr.bf16.mxu0 0
  %3396 = vmatpush1.bf16.msra.mxu0 0
  %3397 = vmatprep.subr.bf16.mxu0 0
  %3398 = vmatpush1.bf16.msra.mxu0 0
  %3399 = vmatprep.subr.bf16.mxu0 0
  %3400 = vmatpush1.bf16.msra.mxu0 0
  %3401 = vmatprep.subr.bf16.mxu0 0
  %3402 = vmatpush1.bf16.msra.mxu0 0
  %3403 = vmatprep.subr.bf16.mxu0 0
  %3404 = vmatpush1.bf16.msra.mxu0 0
  %3405 = vmatprep.subr.bf16.mxu0 0
  %3406 = vmatpush1.bf16.msra.mxu0 0
  %3407 = vmatprep.subr.bf16.mxu0 0
  %3408 = vmatpush1.bf16.msra.mxu0 0
  %3409 = vmatprep.subr.bf16.mxu0 0
  %3410 = vmatpush1.bf16.msra.mxu0 0
  %3411 = vmatprep.subr.bf16.mxu0 0
  %3412 = vmatpush1.bf16.msra.mxu0 0
  %3413 = vmatprep.subr.bf16.mxu0 0
  %3414 = vmatpush1.bf16.msra.mxu0 0
  %3415 = vmatprep.subr.bf16.mxu0 0
  %3416 = vmatpush1.bf16.msra.mxu0 0
  %3417 = vmatprep.subr.bf16.mxu0 0
  %3418 = vmatpush1.bf16.msra.mxu0 0
  %3419 = vmatprep.mubr.bf16.mxu0 0
  %3420 = vmatmul.mubr.bf16.gmra.mrb[0].mxu0 %v3385
  %v3421 = vpop.f32.mrb[0].mxu0
  %v3422 = vadd.f32 0.0, %v3421
  %v3423 = vpop.f32.mrb[0].mxu0
  %v3424 = vadd.f32 0.0, %v3423
  %v3425 = vpop.f32.mrb[0].mxu0
  %v3426 = vpop.f32.mrb[0].mxu0
  %3427 = vdwg.mxu0
  %3428 = vmatprep.subr.bf16.mxu0 %v3378
  %3429 = vmatpush1.bf16.msra.mxu0 %v3377
  %3430 = vmatprep.subr.bf16.mxu0 0
  %3431 = vmatpush1.bf16.msra.mxu0 0
  %3432 = vmatprep.subr.bf16.mxu0 0
  %3433 = vmatpush1.bf16.msra.mxu0 0
  %3434 = vmatprep.subr.bf16.mxu0 0
  %3435 = vmatpush1.bf16.msra.mxu0 0
  %3436 = vmatprep.subr.bf16.mxu0 0
  %3437 = vmatpush1.bf16.msra.mxu0 0
  %3438 = vmatprep.subr.bf16.mxu0 0
  %3439 = vmatpush1.bf16.msra.mxu0 0
  %3440 = vmatprep.subr.bf16.mxu0 0
  %3441 = vmatpush1.bf16.msra.mxu0 0
  %3442 = vmatprep.subr.bf16.mxu0 0
  %3443 = vmatpush1.bf16.msra.mxu0 0
  %3444 = vmatprep.subr.bf16.mxu0 0
  %3445 = vmatpush1.bf16.msra.mxu0 0
  %3446 = vmatprep.subr.bf16.mxu0 0
  %3447 = vmatpush1.bf16.msra.mxu0 0
  %3448 = vmatprep.subr.bf16.mxu0 0
  %3449 = vmatpush1.bf16.msra.mxu0 0
  %3450 = vmatprep.subr.bf16.mxu0 0
  %3451 = vmatpush1.bf16.msra.mxu0 0
  %3452 = vmatprep.subr.bf16.mxu0 0
  %3453 = vmatpush1.bf16.msra.mxu0 0
  %3454 = vmatprep.subr.bf16.mxu0 0
  %3455 = vmatpush1.bf16.msra.mxu0 0
  %3456 = vmatprep.subr.bf16.mxu0 0
  %3457 = vmatpush1.bf16.msra.mxu0 0
  %3458 = vmatprep.subr.bf16.mxu0 0
  %3459 = vmatpush1.bf16.msra.mxu0 0
  %3460 = vmatprep.mubr.bf16.mxu0 0
  %3461 = vmatmul.mubr.bf16.gmra.mrb[0].mxu0 %v3385
  %v3462 = vpop.f32.mrb[0].mxu0
  %v3463 = vadd.f32 0.0, %v3462
  %v3464 = vpop.f32.mrb[0].mxu0
  %v3465 = vadd.f32 0.0, %v3464
  %v3466 = vpop.f32.mrb[0].mxu0
  %v3467 = vpop.f32.mrb[0].mxu0
  %3468 = vdwg.mxu0
  %3469 = vmatprep.subr.bf16.mxu0 0
  %3470 = vmatpush1.bf16.msra.mxu0 %v3373
  %3471 = vmatprep.subr.bf16.mxu0 0
  %3472 = vmatpush1.bf16.msra.mxu0 0
  %3473 = vmatprep.subr.bf16.mxu0 0
  %3474 = vmatpush1.bf16.msra.mxu0 0
  %3475 = vmatprep.subr.bf16.mxu0 0
  %3476 = vmatpush1.bf16.msra.mxu0 0
  %3477 = vmatprep.subr.bf16.mxu0 0
  %3478 = vmatpush1.bf16.msra.mxu0 0
  %3479 = vmatprep.subr.bf16.mxu0 0
  %3480 = vmatpush1.bf16.msra.mxu0 0
  %3481 = vmatprep.subr.bf16.mxu0 0
  %3482 = vmatpush1.bf16.msra.mxu0 0
  %3483 = vmatprep.subr.bf16.mxu0 0
  %3484 = vmatpush1.bf16.msra.mxu0 0
  %3485 = vmatprep.subr.bf16.mxu0 0
  %3486 = vmatpush1.bf16.msra.mxu0 0
  %3487 = vmatprep.subr.bf16.mxu0 0
  %3488 = vmatpush1.bf16.msra.mxu0 0
  %3489 = vmatprep.subr.bf16.mxu0 0
  %3490 = vmatpush1.bf16.msra.mxu0 0
  %3491 = vmatprep.subr.bf16.mxu0 0
  %3492 = vmatpush1.bf16.msra.mxu0 0
  %3493 = vmatprep.subr.bf16.mxu0 0
  %3494 = vmatpush1.bf16.msra.mxu0 0
  %3495 = vmatprep.subr.bf16.mxu0 0
  %3496 = vmatpush1.bf16.msra.mxu0 0
  %3497 = vmatprep.subr.bf16.mxu0 0
  %3498 = vmatpush1.bf16.msra.mxu0 0
  %3499 = vmatprep.subr.bf16.mxu0 0
  %3500 = vmatpush1.bf16.msra.mxu0 0
  %3501 = vmatprep.mubr.bf16.mxu0 0
  %3502 = vmatmul.mubr.bf16.gmra.mrb[0].mxu0 %v3385
  %v3503 = vpop.f32.mrb[0].mxu0
  %v3504 = vadd.f32 0.0, %v3503
  %v3505 = vpop.f32.mrb[0].mxu0
  %v3506 = vpop.f32.mrb[0].mxu0
  %v3507 = vpop.f32.mrb[0].mxu0
  %3508 = vdwg.mxu0
  %v3509 = vadd.f32 %v3357, %v3422
  %v3510 = vadd.f32 %v3358, %v3424
  %v3511 = vadd.f32 %v3359, %v3463
  %v3512 = vadd.f32 %v3360, %v3465
  %v3513 = vadd.f32 %v3361, %v3504
  %s3514 = scalar_lea.vmem %s14, 32
  %v3515 = vld [vmem:[%s3514] sm:$0xf]
  %3516 = vrot.lane.b32.xlu0 %v2322, 92
  %v3517 = vpop.permute.xlu0 %3516
  %3518 = vrot.lane.b32.xlu0 %v2323, 92
  %v3519 = vpop.permute.xlu0 %3518
  %3520 = vrot.lane.b32.xlu0 %v2324, 92
  %v3521 = vpop.permute.xlu0 %3520
  %3522 = vrot.lane.b32.xlu0 %v2325, 92
  %v3523 = vpop.permute.xlu0 %3522
  %3524 = vrot.lane.b32.xlu0 %v2326, 92
  %v3525 = vpop.permute.xlu0 %3524
  %vm3526 = vcmask 752640
  %v3527 = vsel %vm3526, %v3517, %v3519
  %v3528 = vsel %vm3526, %v3519, %v3521
  %v3529 = vsel %vm3526, %v3521, %v3523
  %v3530 = vsel %vm3526, %v3523, %v3525
  %v3537 = vsel %vm392, %v3515, 0
  %3539 = vmatprep.subr.bf16.mxu0 %v3528
  %3540 = vmatpush1.bf16.msra.mxu0 %v3527
  %3541 = vmatprep.subr.bf16.mxu0 0
  %3542 = vmatpush1.bf16.msra.mxu0 0
  %3543 = vmatprep.subr.bf16.mxu0 0
  %3544 = vmatpush1.bf16.msra.mxu0 0
  %3545 = vmatprep.subr.bf16.mxu0 0
  %3546 = vmatpush1.bf16.msra.mxu0 0
  %3547 = vmatprep.subr.bf16.mxu0 0
  %3548 = vmatpush1.bf16.msra.mxu0 0
  %3549 = vmatprep.subr.bf16.mxu0 0
  %3550 = vmatpush1.bf16.msra.mxu0 0
  %3551 = vmatprep.subr.bf16.mxu0 0
  %3552 = vmatpush1.bf16.msra.mxu0 0
  %3553 = vmatprep.subr.bf16.mxu0 0
  %3554 = vmatpush1.bf16.msra.mxu0 0
  %3555 = vmatprep.subr.bf16.mxu0 0
  %3556 = vmatpush1.bf16.msra.mxu0 0
  %3557 = vmatprep.subr.bf16.mxu0 0
  %3558 = vmatpush1.bf16.msra.mxu0 0
  %3559 = vmatprep.subr.bf16.mxu0 0
  %3560 = vmatpush1.bf16.msra.mxu0 0
  %3561 = vmatprep.subr.bf16.mxu0 0
  %3562 = vmatpush1.bf16.msra.mxu0 0
  %3563 = vmatprep.subr.bf16.mxu0 0
  %3564 = vmatpush1.bf16.msra.mxu0 0
  %3565 = vmatprep.subr.bf16.mxu0 0
  %3566 = vmatpush1.bf16.msra.mxu0 0
  %3567 = vmatprep.subr.bf16.mxu0 0
  %3568 = vmatpush1.bf16.msra.mxu0 0
  %3569 = vmatprep.subr.bf16.mxu0 0
  %3570 = vmatpush1.bf16.msra.mxu0 0
  %3571 = vmatprep.mubr.bf16.mxu0 0
  %3572 = vmatmul.mubr.bf16.gmra.mrb[0].mxu0 %v3537
  %v3573 = vpop.f32.mrb[0].mxu0
  %v3574 = vadd.f32 0.0, %v3573
  %v3575 = vpop.f32.mrb[0].mxu0
  %v3576 = vadd.f32 0.0, %v3575
  %v3577 = vpop.f32.mrb[0].mxu0
  %v3578 = vpop.f32.mrb[0].mxu0
  %3579 = vdwg.mxu0
  %3580 = vmatprep.subr.bf16.mxu0 %v3530
  %3581 = vmatpush1.bf16.msra.mxu0 %v3529
  %3582 = vmatprep.subr.bf16.mxu0 0
  %3583 = vmatpush1.bf16.msra.mxu0 0
  %3584 = vmatprep.subr.bf16.mxu0 0
  %3585 = vmatpush1.bf16.msra.mxu0 0
  %3586 = vmatprep.subr.bf16.mxu0 0
  %3587 = vmatpush1.bf16.msra.mxu0 0
  %3588 = vmatprep.subr.bf16.mxu0 0
  %3589 = vmatpush1.bf16.msra.mxu0 0
  %3590 = vmatprep.subr.bf16.mxu0 0
  %3591 = vmatpush1.bf16.msra.mxu0 0
  %3592 = vmatprep.subr.bf16.mxu0 0
  %3593 = vmatpush1.bf16.msra.mxu0 0
  %3594 = vmatprep.subr.bf16.mxu0 0
  %3595 = vmatpush1.bf16.msra.mxu0 0
  %3596 = vmatprep.subr.bf16.mxu0 0
  %3597 = vmatpush1.bf16.msra.mxu0 0
  %3598 = vmatprep.subr.bf16.mxu0 0
  %3599 = vmatpush1.bf16.msra.mxu0 0
  %3600 = vmatprep.subr.bf16.mxu0 0
  %3601 = vmatpush1.bf16.msra.mxu0 0
  %3602 = vmatprep.subr.bf16.mxu0 0
  %3603 = vmatpush1.bf16.msra.mxu0 0
  %3604 = vmatprep.subr.bf16.mxu0 0
  %3605 = vmatpush1.bf16.msra.mxu0 0
  %3606 = vmatprep.subr.bf16.mxu0 0
  %3607 = vmatpush1.bf16.msra.mxu0 0
  %3608 = vmatprep.subr.bf16.mxu0 0
  %3609 = vmatpush1.bf16.msra.mxu0 0
  %3610 = vmatprep.subr.bf16.mxu0 0
  %3611 = vmatpush1.bf16.msra.mxu0 0
  %3612 = vmatprep.mubr.bf16.mxu0 0
  %3613 = vmatmul.mubr.bf16.gmra.mrb[0].mxu0 %v3537
  %v3614 = vpop.f32.mrb[0].mxu0
  %v3615 = vadd.f32 0.0, %v3614
  %v3616 = vpop.f32.mrb[0].mxu0
  %v3617 = vadd.f32 0.0, %v3616
  %v3618 = vpop.f32.mrb[0].mxu0
  %v3619 = vpop.f32.mrb[0].mxu0
  %3620 = vdwg.mxu0
  %3621 = vmatprep.subr.bf16.mxu0 0
  %3622 = vmatpush1.bf16.msra.mxu0 %v3525
  %3623 = vmatprep.subr.bf16.mxu0 0
  %3624 = vmatpush1.bf16.msra.mxu0 0
  %3625 = vmatprep.subr.bf16.mxu0 0
  %3626 = vmatpush1.bf16.msra.mxu0 0
  %3627 = vmatprep.subr.bf16.mxu0 0
  %3628 = vmatpush1.bf16.msra.mxu0 0
  %3629 = vmatprep.subr.bf16.mxu0 0
  %3630 = vmatpush1.bf16.msra.mxu0 0
  %3631 = vmatprep.subr.bf16.mxu0 0
  %3632 = vmatpush1.bf16.msra.mxu0 0
  %3633 = vmatprep.subr.bf16.mxu0 0
  %3634 = vmatpush1.bf16.msra.mxu0 0
  %3635 = vmatprep.subr.bf16.mxu0 0
  %3636 = vmatpush1.bf16.msra.mxu0 0
  %3637 = vmatprep.subr.bf16.mxu0 0
  %3638 = vmatpush1.bf16.msra.mxu0 0
  %3639 = vmatprep.subr.bf16.mxu0 0
  %3640 = vmatpush1.bf16.msra.mxu0 0
  %3641 = vmatprep.subr.bf16.mxu0 0
  %3642 = vmatpush1.bf16.msra.mxu0 0
  %3643 = vmatprep.subr.bf16.mxu0 0
  %3644 = vmatpush1.bf16.msra.mxu0 0
  %3645 = vmatprep.subr.bf16.mxu0 0
  %3646 = vmatpush1.bf16.msra.mxu0 0
  %3647 = vmatprep.subr.bf16.mxu0 0
  %3648 = vmatpush1.bf16.msra.mxu0 0
  %3649 = vmatprep.subr.bf16.mxu0 0
  %3650 = vmatpush1.bf16.msra.mxu0 0
  %3651 = vmatprep.subr.bf16.mxu0 0
  %3652 = vmatpush1.bf16.msra.mxu0 0
  %3653 = vmatprep.mubr.bf16.mxu0 0
  %3654 = vmatmul.mubr.bf16.gmra.mrb[0].mxu0 %v3537
  %v3655 = vpop.f32.mrb[0].mxu0
  %v3656 = vadd.f32 0.0, %v3655
  %v3657 = vpop.f32.mrb[0].mxu0
  %v3658 = vpop.f32.mrb[0].mxu0
  %v3659 = vpop.f32.mrb[0].mxu0
  %3660 = vdwg.mxu0
  %v3661 = vadd.f32 %v3509, %v3574
  %v3662 = vadd.f32 %v3510, %v3576
  %v3663 = vadd.f32 %v3511, %v3615
  %v3664 = vadd.f32 %v3512, %v3617
  %v3665 = vadd.f32 %v3513, %v3656
  %v3666 = vld [vmem:[%s15] sm:$0xff]
  %3668 = vset.pattern.permute.xlu0 0
  %3669 = vperm.xlu0 %3668, %v3666
  %v3670 = vpop.permute.xlu0 %3669
  %v3672 = vadd.f32 %v3661, %v3670
  %v3673 = vadd.f32 %v3662, %v3670
  %v3674 = vadd.f32 %v3663, %v3670
  %v3675 = vadd.f32 %v3664, %v3670
  %v3676 = vadd.f32 %v3665, %v3670
  %v3677 = vld [vmem:[%s16] sm:$0xff]
  %v3678 = vld [vmem:[%s17] sm:$0xff]
  %v3679 = vld [vmem:[%s21] sm:$0x1f]
  %v3681 = vlaneseq
  %v3682 = vshrl.u32 %v3681, 7
  %v3683 = vsub.s32 0, %v3682
  %v3684 = vrot.slane %v3679, %v3683
  %v3685 = vlaneseq
  %v3686 = vshrl.u32 %v3685, 7
  %v3687 = vsub.s32 1, %v3686
  %v3688 = vrot.slane %v3679, %v3687
  %v3689 = vlaneseq
  %v3690 = vshrl.u32 %v3689, 7
  %v3691 = vsub.s32 2, %v3690
  %v3692 = vrot.slane %v3679, %v3691
  %v3693 = vlaneseq
  %v3694 = vshrl.u32 %v3693, 7
  %v3695 = vsub.s32 3, %v3694
  %v3696 = vrot.slane %v3679, %v3695
  %v3697 = vlaneseq
  %v3698 = vshrl.u32 %v3697, 7
  %v3699 = vsub.s32 4, %v3698
  %v3700 = vrot.slane %v3679, %v3699
  %v3706 = vmul.f32 %v3672, %v3684
  %v3707 = vmul.f32 %v3673, %v3688
  %v3708 = vmul.f32 %v3674, %v3692
  %v3709 = vmul.f32 %v3675, %v3696
  %v3710 = vmul.f32 %v3676, %v3700
  %v3711 = vadd.f32 %v3706, %v3707
  %v3712 = vadd.f32 %v3711, %v3708
  %v3713 = vadd.f32 %v3712, %v3709
  %vm3714 = vcmask 539648
  %v3715 = vsel %vm3714, %v3710, 0.0
  %v3716 = vadd.f32 %v3713, %v3715
  %3717 = vadd.xlane.f32.xlu0 %v3716
  %v3718 = vpop.xlane.xlu0 %3717
  %v3719 = vmul.f32 %v3706, %v3706
  %v3720 = vmul.f32 %v3707, %v3707
  %v3721 = vmul.f32 %v3708, %v3708
  %v3722 = vmul.f32 %v3709, %v3709
  %v3723 = vmul.f32 %v3710, %v3710
  %v3724 = vadd.f32 %v3719, %v3720
  %v3725 = vadd.f32 %v3724, %v3721
  %v3726 = vadd.f32 %v3725, %v3722
  %v3727 = vsel %vm3714, %v3723, 0.0
  %v3728 = vadd.f32 %v3726, %v3727
  %3729 = vadd.xlane.f32.xlu0 %v3728
  %v3730 = vpop.xlane.xlu0 %3729
  %v3731 = vmul.f32 %v3718, 0.001953125
  %v3732 = vmul.f32 %v3730, 0.001953125
  %v3733 = vmul.f32 %v3731, %v3731
  %v3734 = vsub.f32 %v3732, %v3733
  %v3735 = vadd.f32 %v3734, 1e-05
  %v3736 = vrsqrt.pop %v3735
  %v3737 = vmul.f32 %v3677, %v3736
  %3739 = vset.pattern.permute.xlu0 0
  %3740 = vperm.xlu0 %3739, %v3737
  %v3741 = vpop.permute.xlu0 %3740
  %v3743 = vmul.f32 %v3672, %v3741
  %v3744 = vmul.f32 %v3673, %v3741
  %v3745 = vmul.f32 %v3674, %v3741
  %v3746 = vmul.f32 %v3675, %v3741
  %v3747 = vmul.f32 %v3676, %v3741
  %v3748 = vmul.f32 %v3731, %v3737
  %v3749 = vsub.f32 %v3678, %v3748
  %3751 = vset.pattern.permute.xlu0 0
  %3752 = vperm.xlu0 %3751, %v3749
  %v3753 = vpop.permute.xlu0 %3752
  %v3755 = vadd.f32 %v3743, %v3753
  %v3756 = vadd.f32 %v3744, %v3753
  %v3757 = vadd.f32 %v3745, %v3753
  %v3758 = vadd.f32 %v3746, %v3753
  %v3759 = vadd.f32 %v3747, %v3753
  %v3760 = vmul.f32 %v3755, 0.2
  %v3761 = vmul.f32 %v3756, 0.2
  %v3762 = vmul.f32 %v3757, 0.2
  %v3763 = vmul.f32 %v3758, 0.2
  %v3764 = vmul.f32 %v3759, 0.2
  %v3765 = vmax.f32 %v3755, %v3760
  %v3766 = vmax.f32 %v3756, %v3761
  %v3767 = vmax.f32 %v3757, %v3762
  %v3768 = vmax.f32 %v3758, %v3763
  %v3769 = vmax.f32 %v3759, %v3764
  %v3770 = vmul.f32 %v3765, %v3684
  %v3771 = vmul.f32 %v3766, %v3688
  %v3772 = vmul.f32 %v3767, %v3692
  %v3773 = vmul.f32 %v3768, %v3696
  %v3774 = vmul.f32 %v3769, %v3700
  %v3775 = vpack.c.bf16 %v3770, %v3770
  %v3776 = vpack.c.bf16 %v3771, %v3771
  %v3777 = vpack.c.bf16 %v3772, %v3772
  %v3778 = vpack.c.bf16 %v3773, %v3773
  %v3779 = vpack.c.bf16 %v3774, %v3774
  %3785 = vrot.lane.b32.xlu0 %v3775, 18
  %v3786 = vpop.permute.xlu0 %3785
  %3787 = vrot.lane.b32.xlu0 %v3776, 18
  %v3788 = vpop.permute.xlu0 %3787
  %3789 = vrot.lane.b32.xlu0 %v3777, 18
  %v3790 = vpop.permute.xlu0 %3789
  %3791 = vrot.lane.b32.xlu0 %v3778, 18
  %v3792 = vpop.permute.xlu0 %3791
  %3793 = vrot.lane.b32.xlu0 %v3779, 18
  %v3794 = vpop.permute.xlu0 %3793
  %v3795 = vsel %vm2073, %v3786, %v3788
  %v3796 = vsel %vm2073, %v3788, %v3790
  %v3797 = vsel %vm2073, %v3790, %v3792
  %v3798 = vsel %vm2073, %v3792, %v3794
  %vm3804 = vcmask 1043600
  %3805 = vst.msk [vmem:[#allocation2] sm:$0xf] %vm3804, %v3786
  %3806 = vst [vmem:[#allocation2 + $0x8] sm:$0xf] %v3795
  %3807 = vst [vmem:[#allocation2 + $0x10] sm:$0xf] %v3796
  %3808 = vst [vmem:[#allocation2 + $0x18] sm:$0xf] %v3797
  %vm3809 = vcmask 683008
  %3810 = vst.msk [vmem:[#allocation2 + $0x20] sm:$0xf] %vm3809, %v3798
  %v3811 = vld [vmem:[#allocation2] sm:$0xf]
  %v3812 = vld [vmem:[#allocation2 + $0x8] sm:$0xf]
  %v3813 = vld [vmem:[#allocation2 + $0x10] sm:$0xf]
  %v3814 = vld [vmem:[#allocation2 + $0x18] sm:$0xf]
  %v3815 = vld [vmem:[#allocation2 + $0x20] sm:$0xf]
  %v3816 = vld [vmem:[%s18] sm:$0x1]
  %s3817 = scalar_lea.vmem %s18, 1
  %v3818 = vld [vmem:[%s3817] sm:$0x1]
  %3824 = vrot.lane.b32.xlu0 %v3811, 127
  %v3825 = vpop.permute.xlu0 %3824
  %3826 = vrot.lane.b32.xlu0 %v3812, 127
  %v3827 = vpop.permute.xlu0 %3826
  %3828 = vrot.lane.b32.xlu0 %v3813, 127
  %v3829 = vpop.permute.xlu0 %3828
  %3830 = vrot.lane.b32.xlu0 %v3814, 127
  %v3831 = vpop.permute.xlu0 %3830
  %3832 = vrot.lane.b32.xlu0 %v3815, 127
  %v3833 = vpop.permute.xlu0 %3832
  %v3834 = vsel %vm2345, %v3825, %v3827
  %v3835 = vsel %vm2345, %v3827, %v3829
  %v3836 = vsel %vm2345, %v3829, %v3831
  %v3837 = vsel %vm2345, %v3831, %v3833
  %vm3838 = vcmask 64512
  %v3840 = vsel %vm3838, %v3818, 0
  %vm3842 = vcmask 1043456
  %v3844 = vsel %vm3842, %v3834, 0
  %v3847 = vsel %vm3842, %v3835, 0
  %v3850 = vsel %vm3842, %v3836, 0
  %v3853 = vsel %vm3842, %v3837, 0
  %v3856 = vsel %vm3842, %v3833, 0
  %3858 = vmatprep.subr.bf16.mxu0 %v3847
  %3859 = vmatpush1.bf16.msra.mxu0 %v3844
  %3860 = vmatprep.subr.bf16.mxu0 0
  %3861 = vmatpush1.bf16.msra.mxu0 0
  %3862 = vmatprep.subr.bf16.mxu0 0
  %3863 = vmatpush1.bf16.msra.mxu0 0
  %3864 = vmatprep.subr.bf16.mxu0 0
  %3865 = vmatpush1.bf16.msra.mxu0 0
  %3866 = vmatprep.subr.bf16.mxu0 0
  %3867 = vmatpush1.bf16.msra.mxu0 0
  %3868 = vmatprep.subr.bf16.mxu0 0
  %3869 = vmatpush1.bf16.msra.mxu0 0
  %3870 = vmatprep.subr.bf16.mxu0 0
  %3871 = vmatpush1.bf16.msra.mxu0 0
  %3872 = vmatprep.subr.bf16.mxu0 0
  %3873 = vmatpush1.bf16.msra.mxu0 0
  %3874 = vmatprep.subr.bf16.mxu0 0
  %3875 = vmatpush1.bf16.msra.mxu0 0
  %3876 = vmatprep.subr.bf16.mxu0 0
  %3877 = vmatpush1.bf16.msra.mxu0 0
  %3878 = vmatprep.subr.bf16.mxu0 0
  %3879 = vmatpush1.bf16.msra.mxu0 0
  %3880 = vmatprep.subr.bf16.mxu0 0
  %3881 = vmatpush1.bf16.msra.mxu0 0
  %3882 = vmatprep.subr.bf16.mxu0 0
  %3883 = vmatpush1.bf16.msra.mxu0 0
  %3884 = vmatprep.subr.bf16.mxu0 0
  %3885 = vmatpush1.bf16.msra.mxu0 0
  %3886 = vmatprep.subr.bf16.mxu0 0
  %3887 = vmatpush1.bf16.msra.mxu0 0
  %3888 = vmatprep.subr.bf16.mxu0 0
  %3889 = vmatpush1.bf16.msra.mxu0 0
  %3890 = vmatprep.mubr.bf16.mxu0 0
  %3891 = vmatmul.mubr.bf16.gmra.mrb[0].mxu0 %v3840
  %v3892 = vpop.f32.mrb[0].mxu0
  %v3893 = vadd.f32 0.0, %v3892
  %v3894 = vpop.f32.mrb[0].mxu0
  %v3895 = vadd.f32 0.0, %v3894
  %v3896 = vpop.f32.mrb[0].mxu0
  %v3897 = vpop.f32.mrb[0].mxu0
  %3898 = vdwg.mxu0
  %3899 = vmatprep.subr.bf16.mxu0 %v3853
  %3900 = vmatpush1.bf16.msra.mxu0 %v3850
  %3901 = vmatprep.subr.bf16.mxu0 0
  %3902 = vmatpush1.bf16.msra.mxu0 0
  %3903 = vmatprep.subr.bf16.mxu0 0
  %3904 = vmatpush1.bf16.msra.mxu0 0
  %3905 = vmatprep.subr.bf16.mxu0 0
  %3906 = vmatpush1.bf16.msra.mxu0 0
  %3907 = vmatprep.subr.bf16.mxu0 0
  %3908 = vmatpush1.bf16.msra.mxu0 0
  %3909 = vmatprep.subr.bf16.mxu0 0
  %3910 = vmatpush1.bf16.msra.mxu0 0
  %3911 = vmatprep.subr.bf16.mxu0 0
  %3912 = vmatpush1.bf16.msra.mxu0 0
  %3913 = vmatprep.subr.bf16.mxu0 0
  %3914 = vmatpush1.bf16.msra.mxu0 0
  %3915 = vmatprep.subr.bf16.mxu0 0
  %3916 = vmatpush1.bf16.msra.mxu0 0
  %3917 = vmatprep.subr.bf16.mxu0 0
  %3918 = vmatpush1.bf16.msra.mxu0 0
  %3919 = vmatprep.subr.bf16.mxu0 0
  %3920 = vmatpush1.bf16.msra.mxu0 0
  %3921 = vmatprep.subr.bf16.mxu0 0
  %3922 = vmatpush1.bf16.msra.mxu0 0
  %3923 = vmatprep.subr.bf16.mxu0 0
  %3924 = vmatpush1.bf16.msra.mxu0 0
  %3925 = vmatprep.subr.bf16.mxu0 0
  %3926 = vmatpush1.bf16.msra.mxu0 0
  %3927 = vmatprep.subr.bf16.mxu0 0
  %3928 = vmatpush1.bf16.msra.mxu0 0
  %3929 = vmatprep.subr.bf16.mxu0 0
  %3930 = vmatpush1.bf16.msra.mxu0 0
  %3931 = vmatprep.mubr.bf16.mxu0 0
  %3932 = vmatmul.mubr.bf16.gmra.mrb[0].mxu0 %v3840
  %v3933 = vpop.f32.mrb[0].mxu0
  %v3934 = vadd.f32 0.0, %v3933
  %v3935 = vpop.f32.mrb[0].mxu0
  %v3936 = vadd.f32 0.0, %v3935
  %v3937 = vpop.f32.mrb[0].mxu0
  %v3938 = vpop.f32.mrb[0].mxu0
  %3939 = vdwg.mxu0
  %3940 = vmatprep.subr.bf16.mxu0 0
  %3941 = vmatpush1.bf16.msra.mxu0 %v3856
  %3942 = vmatprep.subr.bf16.mxu0 0
  %3943 = vmatpush1.bf16.msra.mxu0 0
  %3944 = vmatprep.subr.bf16.mxu0 0
  %3945 = vmatpush1.bf16.msra.mxu0 0
  %3946 = vmatprep.subr.bf16.mxu0 0
  %3947 = vmatpush1.bf16.msra.mxu0 0
  %3948 = vmatprep.subr.bf16.mxu0 0
  %3949 = vmatpush1.bf16.msra.mxu0 0
  %3950 = vmatprep.subr.bf16.mxu0 0
  %3951 = vmatpush1.bf16.msra.mxu0 0
  %3952 = vmatprep.subr.bf16.mxu0 0
  %3953 = vmatpush1.bf16.msra.mxu0 0
  %3954 = vmatprep.subr.bf16.mxu0 0
  %3955 = vmatpush1.bf16.msra.mxu0 0
  %3956 = vmatprep.subr.bf16.mxu0 0
  %3957 = vmatpush1.bf16.msra.mxu0 0
  %3958 = vmatprep.subr.bf16.mxu0 0
  %3959 = vmatpush1.bf16.msra.mxu0 0
  %3960 = vmatprep.subr.bf16.mxu0 0
  %3961 = vmatpush1.bf16.msra.mxu0 0
  %3962 = vmatprep.subr.bf16.mxu0 0
  %3963 = vmatpush1.bf16.msra.mxu0 0
  %3964 = vmatprep.subr.bf16.mxu0 0
  %3965 = vmatpush1.bf16.msra.mxu0 0
  %3966 = vmatprep.subr.bf16.mxu0 0
  %3967 = vmatpush1.bf16.msra.mxu0 0
  %3968 = vmatprep.subr.bf16.mxu0 0
  %3969 = vmatpush1.bf16.msra.mxu0 0
  %3970 = vmatprep.subr.bf16.mxu0 0
  %3971 = vmatpush1.bf16.msra.mxu0 0
  %3972 = vmatprep.mubr.bf16.mxu0 0
  %3973 = vmatmul.mubr.bf16.gmra.mrb[0].mxu0 %v3840
  %v3974 = vpop.f32.mrb[0].mxu0
  %v3975 = vadd.f32 0.0, %v3974
  %v3976 = vpop.f32.mrb[0].mxu0
  %v3977 = vpop.f32.mrb[0].mxu0
  %v3978 = vpop.f32.mrb[0].mxu0
  %3979 = vdwg.mxu0
  %v3981 = vsel %vm3838, %v3816, 0
  %v3984 = vsel %vm3842, %v3811, 0
  %v3987 = vsel %vm3842, %v3812, 0
  %v3990 = vsel %vm3842, %v3813, 0
  %v3993 = vsel %vm3842, %v3814, 0
  %v3996 = vsel %vm3842, %v3815, 0
  %3998 = vmatprep.subr.bf16.mxu0 %v3987
  %3999 = vmatpush1.bf16.msra.mxu0 %v3984
  %4000 = vmatprep.subr.bf16.mxu0 0
  %4001 = vmatpush1.bf16.msra.mxu0 0
  %4002 = vmatprep.subr.bf16.mxu0 0
  %4003 = vmatpush1.bf16.msra.mxu0 0
  %4004 = vmatprep.subr.bf16.mxu0 0
  %4005 = vmatpush1.bf16.msra.mxu0 0
  %4006 = vmatprep.subr.bf16.mxu0 0
  %4007 = vmatpush1.bf16.msra.mxu0 0
  %4008 = vmatprep.subr.bf16.mxu0 0
  %4009 = vmatpush1.bf16.msra.mxu0 0
  %4010 = vmatprep.subr.bf16.mxu0 0
  %4011 = vmatpush1.bf16.msra.mxu0 0
  %4012 = vmatprep.subr.bf16.mxu0 0
  %4013 = vmatpush1.bf16.msra.mxu0 0
  %4014 = vmatprep.subr.bf16.mxu0 0
  %4015 = vmatpush1.bf16.msra.mxu0 0
  %4016 = vmatprep.subr.bf16.mxu0 0
  %4017 = vmatpush1.bf16.msra.mxu0 0
  %4018 = vmatprep.subr.bf16.mxu0 0
  %4019 = vmatpush1.bf16.msra.mxu0 0
  %4020 = vmatprep.subr.bf16.mxu0 0
  %4021 = vmatpush1.bf16.msra.mxu0 0
  %4022 = vmatprep.subr.bf16.mxu0 0
  %4023 = vmatpush1.bf16.msra.mxu0 0
  %4024 = vmatprep.subr.bf16.mxu0 0
  %4025 = vmatpush1.bf16.msra.mxu0 0
  %4026 = vmatprep.subr.bf16.mxu0 0
  %4027 = vmatpush1.bf16.msra.mxu0 0
  %4028 = vmatprep.subr.bf16.mxu0 0
  %4029 = vmatpush1.bf16.msra.mxu0 0
  %4030 = vmatprep.mubr.bf16.mxu0 0
  %4031 = vmatmul.mubr.bf16.gmra.mrb[0].mxu0 %v3981
  %v4032 = vpop.f32.mrb[0].mxu0
  %v4033 = vadd.f32 %v3893, %v4032
  %v4034 = vpop.f32.mrb[0].mxu0
  %v4035 = vadd.f32 %v3895, %v4034
  %v4036 = vpop.f32.mrb[0].mxu0
  %v4037 = vpop.f32.mrb[0].mxu0
  %4038 = vdwg.mxu0
  %4039 = vmatprep.subr.bf16.mxu0 %v3993
  %4040 = vmatpush1.bf16.msra.mxu0 %v3990
  %4041 = vmatprep.subr.bf16.mxu0 0
  %4042 = vmatpush1.bf16.msra.mxu0 0
  %4043 = vmatprep.subr.bf16.mxu0 0
  %4044 = vmatpush1.bf16.msra.mxu0 0
  %4045 = vmatprep.subr.bf16.mxu0 0
  %4046 = vmatpush1.bf16.msra.mxu0 0
  %4047 = vmatprep.subr.bf16.mxu0 0
  %4048 = vmatpush1.bf16.msra.mxu0 0
  %4049 = vmatprep.subr.bf16.mxu0 0
  %4050 = vmatpush1.bf16.msra.mxu0 0
  %4051 = vmatprep.subr.bf16.mxu0 0
  %4052 = vmatpush1.bf16.msra.mxu0 0
  %4053 = vmatprep.subr.bf16.mxu0 0
  %4054 = vmatpush1.bf16.msra.mxu0 0
  %4055 = vmatprep.subr.bf16.mxu0 0
  %4056 = vmatpush1.bf16.msra.mxu0 0
  %4057 = vmatprep.subr.bf16.mxu0 0
  %4058 = vmatpush1.bf16.msra.mxu0 0
  %4059 = vmatprep.subr.bf16.mxu0 0
  %4060 = vmatpush1.bf16.msra.mxu0 0
  %4061 = vmatprep.subr.bf16.mxu0 0
  %4062 = vmatpush1.bf16.msra.mxu0 0
  %4063 = vmatprep.subr.bf16.mxu0 0
  %4064 = vmatpush1.bf16.msra.mxu0 0
  %4065 = vmatprep.subr.bf16.mxu0 0
  %4066 = vmatpush1.bf16.msra.mxu0 0
  %4067 = vmatprep.subr.bf16.mxu0 0
  %4068 = vmatpush1.bf16.msra.mxu0 0
  %4069 = vmatprep.subr.bf16.mxu0 0
  %4070 = vmatpush1.bf16.msra.mxu0 0
  %4071 = vmatprep.mubr.bf16.mxu0 0
  %4072 = vmatmul.mubr.bf16.gmra.mrb[0].mxu0 %v3981
  %v4073 = vpop.f32.mrb[0].mxu0
  %v4074 = vadd.f32 %v3934, %v4073
  %v4075 = vpop.f32.mrb[0].mxu0
  %v4076 = vadd.f32 %v3936, %v4075
  %v4077 = vpop.f32.mrb[0].mxu0
  %v4078 = vpop.f32.mrb[0].mxu0
  %4079 = vdwg.mxu0
  %4080 = vmatprep.subr.bf16.mxu0 0
  %4081 = vmatpush1.bf16.msra.mxu0 %v3996
  %4082 = vmatprep.subr.bf16.mxu0 0
  %4083 = vmatpush1.bf16.msra.mxu0 0
  %4084 = vmatprep.subr.bf16.mxu0 0
  %4085 = vmatpush1.bf16.msra.mxu0 0
  %4086 = vmatprep.subr.bf16.mxu0 0
  %4087 = vmatpush1.bf16.msra.mxu0 0
  %4088 = vmatprep.subr.bf16.mxu0 0
  %4089 = vmatpush1.bf16.msra.mxu0 0
  %4090 = vmatprep.subr.bf16.mxu0 0
  %4091 = vmatpush1.bf16.msra.mxu0 0
  %4092 = vmatprep.subr.bf16.mxu0 0
  %4093 = vmatpush1.bf16.msra.mxu0 0
  %4094 = vmatprep.subr.bf16.mxu0 0
  %4095 = vmatpush1.bf16.msra.mxu0 0
  %4096 = vmatprep.subr.bf16.mxu0 0
  %4097 = vmatpush1.bf16.msra.mxu0 0
  %4098 = vmatprep.subr.bf16.mxu0 0
  %4099 = vmatpush1.bf16.msra.mxu0 0
  %4100 = vmatprep.subr.bf16.mxu0 0
  %4101 = vmatpush1.bf16.msra.mxu0 0
  %4102 = vmatprep.subr.bf16.mxu0 0
  %4103 = vmatpush1.bf16.msra.mxu0 0
  %4104 = vmatprep.subr.bf16.mxu0 0
  %4105 = vmatpush1.bf16.msra.mxu0 0
  %4106 = vmatprep.subr.bf16.mxu0 0
  %4107 = vmatpush1.bf16.msra.mxu0 0
  %4108 = vmatprep.subr.bf16.mxu0 0
  %4109 = vmatpush1.bf16.msra.mxu0 0
  %4110 = vmatprep.subr.bf16.mxu0 0
  %4111 = vmatpush1.bf16.msra.mxu0 0
  %4112 = vmatprep.mubr.bf16.mxu0 0
  %4113 = vmatmul.mubr.bf16.gmra.mrb[0].mxu0 %v3981
  %v4114 = vpop.f32.mrb[0].mxu0
  %v4115 = vadd.f32 %v3975, %v4114
  %v4116 = vpop.f32.mrb[0].mxu0
  %v4117 = vpop.f32.mrb[0].mxu0
  %v4118 = vpop.f32.mrb[0].mxu0
  %4119 = vdwg.mxu0
  %s4120 = scalar_lea.vmem %s18, 2
  %v4121 = vld [vmem:[%s4120] sm:$0x1]
  %4122 = vrot.lane.b32.xlu0 %v3811, 126
  %v4123 = vpop.permute.xlu0 %4122
  %4124 = vrot.lane.b32.xlu0 %v3812, 126
  %v4125 = vpop.permute.xlu0 %4124
  %4126 = vrot.lane.b32.xlu0 %v3813, 126
  %v4127 = vpop.permute.xlu0 %4126
  %4128 = vrot.lane.b32.xlu0 %v3814, 126
  %v4129 = vpop.permute.xlu0 %4128
  %4130 = vrot.lane.b32.xlu0 %v3815, 126
  %v4131 = vpop.permute.xlu0 %4130
  %v4132 = vsel %vm2617, %v4123, %v4125
  %v4133 = vsel %vm2617, %v4125, %v4127
  %v4134 = vsel %vm2617, %v4127, %v4129
  %v4135 = vsel %vm2617, %v4129, %v4131
  %v4137 = vsel %vm3838, %v4121, 0
  %v4140 = vsel %vm3842, %v4132, 0
  %v4143 = vsel %vm3842, %v4133, 0
  %v4146 = vsel %vm3842, %v4134, 0
  %v4149 = vsel %vm3842, %v4135, 0
  %v4152 = vsel %vm3842, %v4131, 0
  %4154 = vmatprep.subr.bf16.mxu0 %v4143
  %4155 = vmatpush1.bf16.msra.mxu0 %v4140
  %4156 = vmatprep.subr.bf16.mxu0 0
  %4157 = vmatpush1.bf16.msra.mxu0 0
  %4158 = vmatprep.subr.bf16.mxu0 0
  %4159 = vmatpush1.bf16.msra.mxu0 0
  %4160 = vmatprep.subr.bf16.mxu0 0
  %4161 = vmatpush1.bf16.msra.mxu0 0
  %4162 = vmatprep.subr.bf16.mxu0 0
  %4163 = vmatpush1.bf16.msra.mxu0 0
  %4164 = vmatprep.subr.bf16.mxu0 0
  %4165 = vmatpush1.bf16.msra.mxu0 0
  %4166 = vmatprep.subr.bf16.mxu0 0
  %4167 = vmatpush1.bf16.msra.mxu0 0
  %4168 = vmatprep.subr.bf16.mxu0 0
  %4169 = vmatpush1.bf16.msra.mxu0 0
  %4170 = vmatprep.subr.bf16.mxu0 0
  %4171 = vmatpush1.bf16.msra.mxu0 0
  %4172 = vmatprep.subr.bf16.mxu0 0
  %4173 = vmatpush1.bf16.msra.mxu0 0
  %4174 = vmatprep.subr.bf16.mxu0 0
  %4175 = vmatpush1.bf16.msra.mxu0 0
  %4176 = vmatprep.subr.bf16.mxu0 0
  %4177 = vmatpush1.bf16.msra.mxu0 0
  %4178 = vmatprep.subr.bf16.mxu0 0
  %4179 = vmatpush1.bf16.msra.mxu0 0
  %4180 = vmatprep.subr.bf16.mxu0 0
  %4181 = vmatpush1.bf16.msra.mxu0 0
  %4182 = vmatprep.subr.bf16.mxu0 0
  %4183 = vmatpush1.bf16.msra.mxu0 0
  %4184 = vmatprep.subr.bf16.mxu0 0
  %4185 = vmatpush1.bf16.msra.mxu0 0
  %4186 = vmatprep.mubr.bf16.mxu0 0
  %4187 = vmatmul.mubr.bf16.gmra.mrb[0].mxu0 %v4137
  %v4188 = vpop.f32.mrb[0].mxu0
  %v4189 = vadd.f32 0.0, %v4188
  %v4190 = vpop.f32.mrb[0].mxu0
  %v4191 = vadd.f32 0.0, %v4190
  %v4192 = vpop.f32.mrb[0].mxu0
  %v4193 = vpop.f32.mrb[0].mxu0
  %4194 = vdwg.mxu0
  %4195 = vmatprep.subr.bf16.mxu0 %v4149
  %4196 = vmatpush1.bf16.msra.mxu0 %v4146
  %4197 = vmatprep.subr.bf16.mxu0 0
  %4198 = vmatpush1.bf16.msra.mxu0 0
  %4199 = vmatprep.subr.bf16.mxu0 0
  %4200 = vmatpush1.bf16.msra.mxu0 0
  %4201 = vmatprep.subr.bf16.mxu0 0
  %4202 = vmatpush1.bf16.msra.mxu0 0
  %4203 = vmatprep.subr.bf16.mxu0 0
  %4204 = vmatpush1.bf16.msra.mxu0 0
  %4205 = vmatprep.subr.bf16.mxu0 0
  %4206 = vmatpush1.bf16.msra.mxu0 0
  %4207 = vmatprep.subr.bf16.mxu0 0
  %4208 = vmatpush1.bf16.msra.mxu0 0
  %4209 = vmatprep.subr.bf16.mxu0 0
  %4210 = vmatpush1.bf16.msra.mxu0 0
  %4211 = vmatprep.subr.bf16.mxu0 0
  %4212 = vmatpush1.bf16.msra.mxu0 0
  %4213 = vmatprep.subr.bf16.mxu0 0
  %4214 = vmatpush1.bf16.msra.mxu0 0
  %4215 = vmatprep.subr.bf16.mxu0 0
  %4216 = vmatpush1.bf16.msra.mxu0 0
  %4217 = vmatprep.subr.bf16.mxu0 0
  %4218 = vmatpush1.bf16.msra.mxu0 0
  %4219 = vmatprep.subr.bf16.mxu0 0
  %4220 = vmatpush1.bf16.msra.mxu0 0
  %4221 = vmatprep.subr.bf16.mxu0 0
  %4222 = vmatpush1.bf16.msra.mxu0 0
  %4223 = vmatprep.subr.bf16.mxu0 0
  %4224 = vmatpush1.bf16.msra.mxu0 0
  %4225 = vmatprep.subr.bf16.mxu0 0
  %4226 = vmatpush1.bf16.msra.mxu0 0
  %4227 = vmatprep.mubr.bf16.mxu0 0
  %4228 = vmatmul.mubr.bf16.gmra.mrb[0].mxu0 %v4137
  %v4229 = vpop.f32.mrb[0].mxu0
  %v4230 = vadd.f32 0.0, %v4229
  %v4231 = vpop.f32.mrb[0].mxu0
  %v4232 = vadd.f32 0.0, %v4231
  %v4233 = vpop.f32.mrb[0].mxu0
  %v4234 = vpop.f32.mrb[0].mxu0
  %4235 = vdwg.mxu0
  %4236 = vmatprep.subr.bf16.mxu0 0
  %4237 = vmatpush1.bf16.msra.mxu0 %v4152
  %4238 = vmatprep.subr.bf16.mxu0 0
  %4239 = vmatpush1.bf16.msra.mxu0 0
  %4240 = vmatprep.subr.bf16.mxu0 0
  %4241 = vmatpush1.bf16.msra.mxu0 0
  %4242 = vmatprep.subr.bf16.mxu0 0
  %4243 = vmatpush1.bf16.msra.mxu0 0
  %4244 = vmatprep.subr.bf16.mxu0 0
  %4245 = vmatpush1.bf16.msra.mxu0 0
  %4246 = vmatprep.subr.bf16.mxu0 0
  %4247 = vmatpush1.bf16.msra.mxu0 0
  %4248 = vmatprep.subr.bf16.mxu0 0
  %4249 = vmatpush1.bf16.msra.mxu0 0
  %4250 = vmatprep.subr.bf16.mxu0 0
  %4251 = vmatpush1.bf16.msra.mxu0 0
  %4252 = vmatprep.subr.bf16.mxu0 0
  %4253 = vmatpush1.bf16.msra.mxu0 0
  %4254 = vmatprep.subr.bf16.mxu0 0
  %4255 = vmatpush1.bf16.msra.mxu0 0
  %4256 = vmatprep.subr.bf16.mxu0 0
  %4257 = vmatpush1.bf16.msra.mxu0 0
  %4258 = vmatprep.subr.bf16.mxu0 0
  %4259 = vmatpush1.bf16.msra.mxu0 0
  %4260 = vmatprep.subr.bf16.mxu0 0
  %4261 = vmatpush1.bf16.msra.mxu0 0
  %4262 = vmatprep.subr.bf16.mxu0 0
  %4263 = vmatpush1.bf16.msra.mxu0 0
  %4264 = vmatprep.subr.bf16.mxu0 0
  %4265 = vmatpush1.bf16.msra.mxu0 0
  %4266 = vmatprep.subr.bf16.mxu0 0
  %4267 = vmatpush1.bf16.msra.mxu0 0
  %4268 = vmatprep.mubr.bf16.mxu0 0
  %4269 = vmatmul.mubr.bf16.gmra.mrb[0].mxu0 %v4137
  %v4270 = vpop.f32.mrb[0].mxu0
  %v4271 = vadd.f32 0.0, %v4270
  %v4272 = vpop.f32.mrb[0].mxu0
  %v4273 = vpop.f32.mrb[0].mxu0
  %v4274 = vpop.f32.mrb[0].mxu0
  %4275 = vdwg.mxu0
  %v4276 = vadd.f32 %v4033, %v4189
  %v4277 = vadd.f32 %v4035, %v4191
  %v4278 = vadd.f32 %v4074, %v4230
  %v4279 = vadd.f32 %v4076, %v4232
  %v4280 = vadd.f32 %v4115, %v4271
  %s4281 = scalar_lea.vmem %s18, 3
  %v4282 = vld [vmem:[%s4281] sm:$0x1]
  %4283 = vrot.lane.b32.xlu0 %v3811, 111
  %v4284 = vpop.permute.xlu0 %4283
  %4285 = vrot.lane.b32.xlu0 %v3812, 111
  %v4286 = vpop.permute.xlu0 %4285
  %4287 = vrot.lane.b32.xlu0 %v3813, 111
  %v4288 = vpop.permute.xlu0 %4287
  %4289 = vrot.lane.b32.xlu0 %v3814, 111
  %v4290 = vpop.permute.xlu0 %4289
  %4291 = vrot.lane.b32.xlu0 %v3815, 111
  %v4292 = vpop.permute.xlu0 %4291
  %v4293 = vsel %vm1356, %v4284, %v4286
  %v4294 = vsel %vm1356, %v4286, %v4288
  %v4295 = vsel %vm1356, %v4288, %v4290
  %v4296 = vsel %vm1356, %v4290, %v4292
  %v4298 = vsel %vm3838, %v4282, 0
  %v4301 = vsel %vm3842, %v4293, 0
  %v4304 = vsel %vm3842, %v4294, 0
  %v4307 = vsel %vm3842, %v4295, 0
  %v4310 = vsel %vm3842, %v4296, 0
  %v4313 = vsel %vm3842, %v4292, 0
  %4315 = vmatprep.subr.bf16.mxu0 %v4304
  %4316 = vmatpush1.bf16.msra.mxu0 %v4301
  %4317 = vmatprep.subr.bf16.mxu0 0
  %4318 = vmatpush1.bf16.msra.mxu0 0
  %4319 = vmatprep.subr.bf16.mxu0 0
  %4320 = vmatpush1.bf16.msra.mxu0 0
  %4321 = vmatprep.subr.bf16.mxu0 0
  %4322 = vmatpush1.bf16.msra.mxu0 0
  %4323 = vmatprep.subr.bf16.mxu0 0
  %4324 = vmatpush1.bf16.msra.mxu0 0
  %4325 = vmatprep.subr.bf16.mxu0 0
  %4326 = vmatpush1.bf16.msra.mxu0 0
  %4327 = vmatprep.subr.bf16.mxu0 0
  %4328 = vmatpush1.bf16.msra.mxu0 0
  %4329 = vmatprep.subr.bf16.mxu0 0
  %4330 = vmatpush1.bf16.msra.mxu0 0
  %4331 = vmatprep.subr.bf16.mxu0 0
  %4332 = vmatpush1.bf16.msra.mxu0 0
  %4333 = vmatprep.subr.bf16.mxu0 0
  %4334 = vmatpush1.bf16.msra.mxu0 0
  %4335 = vmatprep.subr.bf16.mxu0 0
  %4336 = vmatpush1.bf16.msra.mxu0 0
  %4337 = vmatprep.subr.bf16.mxu0 0
  %4338 = vmatpush1.bf16.msra.mxu0 0
  %4339 = vmatprep.subr.bf16.mxu0 0
  %4340 = vmatpush1.bf16.msra.mxu0 0
  %4341 = vmatprep.subr.bf16.mxu0 0
  %4342 = vmatpush1.bf16.msra.mxu0 0
  %4343 = vmatprep.subr.bf16.mxu0 0
  %4344 = vmatpush1.bf16.msra.mxu0 0
  %4345 = vmatprep.subr.bf16.mxu0 0
  %4346 = vmatpush1.bf16.msra.mxu0 0
  %4347 = vmatprep.mubr.bf16.mxu0 0
  %4348 = vmatmul.mubr.bf16.gmra.mrb[0].mxu0 %v4298
  %v4349 = vpop.f32.mrb[0].mxu0
  %v4350 = vadd.f32 0.0, %v4349
  %v4351 = vpop.f32.mrb[0].mxu0
  %v4352 = vadd.f32 0.0, %v4351
  %v4353 = vpop.f32.mrb[0].mxu0
  %v4354 = vpop.f32.mrb[0].mxu0
  %4355 = vdwg.mxu0
  %4356 = vmatprep.subr.bf16.mxu0 %v4310
  %4357 = vmatpush1.bf16.msra.mxu0 %v4307
  %4358 = vmatprep.subr.bf16.mxu0 0
  %4359 = vmatpush1.bf16.msra.mxu0 0
  %4360 = vmatprep.subr.bf16.mxu0 0
  %4361 = vmatpush1.bf16.msra.mxu0 0
  %4362 = vmatprep.subr.bf16.mxu0 0
  %4363 = vmatpush1.bf16.msra.mxu0 0
  %4364 = vmatprep.subr.bf16.mxu0 0
  %4365 = vmatpush1.bf16.msra.mxu0 0
  %4366 = vmatprep.subr.bf16.mxu0 0
  %4367 = vmatpush1.bf16.msra.mxu0 0
  %4368 = vmatprep.subr.bf16.mxu0 0
  %4369 = vmatpush1.bf16.msra.mxu0 0
  %4370 = vmatprep.subr.bf16.mxu0 0
  %4371 = vmatpush1.bf16.msra.mxu0 0
  %4372 = vmatprep.subr.bf16.mxu0 0
  %4373 = vmatpush1.bf16.msra.mxu0 0
  %4374 = vmatprep.subr.bf16.mxu0 0
  %4375 = vmatpush1.bf16.msra.mxu0 0
  %4376 = vmatprep.subr.bf16.mxu0 0
  %4377 = vmatpush1.bf16.msra.mxu0 0
  %4378 = vmatprep.subr.bf16.mxu0 0
  %4379 = vmatpush1.bf16.msra.mxu0 0
  %4380 = vmatprep.subr.bf16.mxu0 0
  %4381 = vmatpush1.bf16.msra.mxu0 0
  %4382 = vmatprep.subr.bf16.mxu0 0
  %4383 = vmatpush1.bf16.msra.mxu0 0
  %4384 = vmatprep.subr.bf16.mxu0 0
  %4385 = vmatpush1.bf16.msra.mxu0 0
  %4386 = vmatprep.subr.bf16.mxu0 0
  %4387 = vmatpush1.bf16.msra.mxu0 0
  %4388 = vmatprep.mubr.bf16.mxu0 0
  %4389 = vmatmul.mubr.bf16.gmra.mrb[0].mxu0 %v4298
  %v4390 = vpop.f32.mrb[0].mxu0
  %v4391 = vadd.f32 0.0, %v4390
  %v4392 = vpop.f32.mrb[0].mxu0
  %v4393 = vadd.f32 0.0, %v4392
  %v4394 = vpop.f32.mrb[0].mxu0
  %v4395 = vpop.f32.mrb[0].mxu0
  %4396 = vdwg.mxu0
  %4397 = vmatprep.subr.bf16.mxu0 0
  %4398 = vmatpush1.bf16.msra.mxu0 %v4313
  %4399 = vmatprep.subr.bf16.mxu0 0
  %4400 = vmatpush1.bf16.msra.mxu0 0
  %4401 = vmatprep.subr.bf16.mxu0 0
  %4402 = vmatpush1.bf16.msra.mxu0 0
  %4403 = vmatprep.subr.bf16.mxu0 0
  %4404 = vmatpush1.bf16.msra.mxu0 0
  %4405 = vmatprep.subr.bf16.mxu0 0
  %4406 = vmatpush1.bf16.msra.mxu0 0
  %4407 = vmatprep.subr.bf16.mxu0 0
  %4408 = vmatpush1.bf16.msra.mxu0 0
  %4409 = vmatprep.subr.bf16.mxu0 0
  %4410 = vmatpush1.bf16.msra.mxu0 0
  %4411 = vmatprep.subr.bf16.mxu0 0
  %4412 = vmatpush1.bf16.msra.mxu0 0
  %4413 = vmatprep.subr.bf16.mxu0 0
  %4414 = vmatpush1.bf16.msra.mxu0 0
  %4415 = vmatprep.subr.bf16.mxu0 0
  %4416 = vmatpush1.bf16.msra.mxu0 0
  %4417 = vmatprep.subr.bf16.mxu0 0
  %4418 = vmatpush1.bf16.msra.mxu0 0
  %4419 = vmatprep.subr.bf16.mxu0 0
  %4420 = vmatpush1.bf16.msra.mxu0 0
  %4421 = vmatprep.subr.bf16.mxu0 0
  %4422 = vmatpush1.bf16.msra.mxu0 0
  %4423 = vmatprep.subr.bf16.mxu0 0
  %4424 = vmatpush1.bf16.msra.mxu0 0
  %4425 = vmatprep.subr.bf16.mxu0 0
  %4426 = vmatpush1.bf16.msra.mxu0 0
  %4427 = vmatprep.subr.bf16.mxu0 0
  %4428 = vmatpush1.bf16.msra.mxu0 0
  %4429 = vmatprep.mubr.bf16.mxu0 0
  %4430 = vmatmul.mubr.bf16.gmra.mrb[0].mxu0 %v4298
  %v4431 = vpop.f32.mrb[0].mxu0
  %v4432 = vadd.f32 0.0, %v4431
  %v4433 = vpop.f32.mrb[0].mxu0
  %v4434 = vpop.f32.mrb[0].mxu0
  %v4435 = vpop.f32.mrb[0].mxu0
  %4436 = vdwg.mxu0
  %v4437 = vadd.f32 %v4276, %v4350
  %v4438 = vadd.f32 %v4277, %v4352
  %v4439 = vadd.f32 %v4278, %v4391
  %v4440 = vadd.f32 %v4279, %v4393
  %v4441 = vadd.f32 %v4280, %v4432
  %s4442 = scalar_lea.vmem %s18, 4
  %v4443 = vld [vmem:[%s4442] sm:$0x1]
  %4444 = vrot.lane.b32.xlu0 %v3811, 110
  %v4445 = vpop.permute.xlu0 %4444
  %4446 = vrot.lane.b32.xlu0 %v3812, 110
  %v4447 = vpop.permute.xlu0 %4446
  %4448 = vrot.lane.b32.xlu0 %v3813, 110
  %v4449 = vpop.permute.xlu0 %4448
  %4450 = vrot.lane.b32.xlu0 %v3814, 110
  %v4451 = vpop.permute.xlu0 %4450
  %4452 = vrot.lane.b32.xlu0 %v3815, 110
  %v4453 = vpop.permute.xlu0 %4452
  %v4454 = vsel %vm1422, %v4445, %v4447
  %v4455 = vsel %vm1422, %v4447, %v4449
  %v4456 = vsel %vm1422, %v4449, %v4451
  %v4457 = vsel %vm1422, %v4451, %v4453
  %v4459 = vsel %vm3838, %v4443, 0
  %v4462 = vsel %vm3842, %v4454, 0
  %v4465 = vsel %vm3842, %v4455, 0
  %v4468 = vsel %vm3842, %v4456, 0
  %v4471 = vsel %vm3842, %v4457, 0
  %v4474 = vsel %vm3842, %v4453, 0
  %4476 = vmatprep.subr.bf16.mxu0 %v4465
  %4477 = vmatpush1.bf16.msra.mxu0 %v4462
  %4478 = vmatprep.subr.bf16.mxu0 0
  %4479 = vmatpush1.bf16.msra.mxu0 0
  %4480 = vmatprep.subr.bf16.mxu0 0
  %4481 = vmatpush1.bf16.msra.mxu0 0
  %4482 = vmatprep.subr.bf16.mxu0 0
  %4483 = vmatpush1.bf16.msra.mxu0 0
  %4484 = vmatprep.subr.bf16.mxu0 0
  %4485 = vmatpush1.bf16.msra.mxu0 0
  %4486 = vmatprep.subr.bf16.mxu0 0
  %4487 = vmatpush1.bf16.msra.mxu0 0
  %4488 = vmatprep.subr.bf16.mxu0 0
  %4489 = vmatpush1.bf16.msra.mxu0 0
  %4490 = vmatprep.subr.bf16.mxu0 0
  %4491 = vmatpush1.bf16.msra.mxu0 0
  %4492 = vmatprep.subr.bf16.mxu0 0
  %4493 = vmatpush1.bf16.msra.mxu0 0
  %4494 = vmatprep.subr.bf16.mxu0 0
  %4495 = vmatpush1.bf16.msra.mxu0 0
  %4496 = vmatprep.subr.bf16.mxu0 0
  %4497 = vmatpush1.bf16.msra.mxu0 0
  %4498 = vmatprep.subr.bf16.mxu0 0
  %4499 = vmatpush1.bf16.msra.mxu0 0
  %4500 = vmatprep.subr.bf16.mxu0 0
  %4501 = vmatpush1.bf16.msra.mxu0 0
  %4502 = vmatprep.subr.bf16.mxu0 0
  %4503 = vmatpush1.bf16.msra.mxu0 0
  %4504 = vmatprep.subr.bf16.mxu0 0
  %4505 = vmatpush1.bf16.msra.mxu0 0
  %4506 = vmatprep.subr.bf16.mxu0 0
  %4507 = vmatpush1.bf16.msra.mxu0 0
  %4508 = vmatprep.mubr.bf16.mxu0 0
  %4509 = vmatmul.mubr.bf16.gmra.mrb[0].mxu0 %v4459
  %v4510 = vpop.f32.mrb[0].mxu0
  %v4511 = vadd.f32 0.0, %v4510
  %v4512 = vpop.f32.mrb[0].mxu0
  %v4513 = vadd.f32 0.0, %v4512
  %v4514 = vpop.f32.mrb[0].mxu0
  %v4515 = vpop.f32.mrb[0].mxu0
  %4516 = vdwg.mxu0
  %4517 = vmatprep.subr.bf16.mxu0 %v4471
  %4518 = vmatpush1.bf16.msra.mxu0 %v4468
  %4519 = vmatprep.subr.bf16.mxu0 0
  %4520 = vmatpush1.bf16.msra.mxu0 0
  %4521 = vmatprep.subr.bf16.mxu0 0
  %4522 = vmatpush1.bf16.msra.mxu0 0
  %4523 = vmatprep.subr.bf16.mxu0 0
  %4524 = vmatpush1.bf16.msra.mxu0 0
  %4525 = vmatprep.subr.bf16.mxu0 0
  %4526 = vmatpush1.bf16.msra.mxu0 0
  %4527 = vmatprep.subr.bf16.mxu0 0
  %4528 = vmatpush1.bf16.msra.mxu0 0
  %4529 = vmatprep.subr.bf16.mxu0 0
  %4530 = vmatpush1.bf16.msra.mxu0 0
  %4531 = vmatprep.subr.bf16.mxu0 0
  %4532 = vmatpush1.bf16.msra.mxu0 0
  %4533 = vmatprep.subr.bf16.mxu0 0
  %4534 = vmatpush1.bf16.msra.mxu0 0
  %4535 = vmatprep.subr.bf16.mxu0 0
  %4536 = vmatpush1.bf16.msra.mxu0 0
  %4537 = vmatprep.subr.bf16.mxu0 0
  %4538 = vmatpush1.bf16.msra.mxu0 0
  %4539 = vmatprep.subr.bf16.mxu0 0
  %4540 = vmatpush1.bf16.msra.mxu0 0
  %4541 = vmatprep.subr.bf16.mxu0 0
  %4542 = vmatpush1.bf16.msra.mxu0 0
  %4543 = vmatprep.subr.bf16.mxu0 0
  %4544 = vmatpush1.bf16.msra.mxu0 0
  %4545 = vmatprep.subr.bf16.mxu0 0
  %4546 = vmatpush1.bf16.msra.mxu0 0
  %4547 = vmatprep.subr.bf16.mxu0 0
  %4548 = vmatpush1.bf16.msra.mxu0 0
  %4549 = vmatprep.mubr.bf16.mxu0 0
  %4550 = vmatmul.mubr.bf16.gmra.mrb[0].mxu0 %v4459
  %v4551 = vpop.f32.mrb[0].mxu0
  %v4552 = vadd.f32 0.0, %v4551
  %v4553 = vpop.f32.mrb[0].mxu0
  %v4554 = vadd.f32 0.0, %v4553
  %v4555 = vpop.f32.mrb[0].mxu0
  %v4556 = vpop.f32.mrb[0].mxu0
  %4557 = vdwg.mxu0
  %4558 = vmatprep.subr.bf16.mxu0 0
  %4559 = vmatpush1.bf16.msra.mxu0 %v4474
  %4560 = vmatprep.subr.bf16.mxu0 0
  %4561 = vmatpush1.bf16.msra.mxu0 0
  %4562 = vmatprep.subr.bf16.mxu0 0
  %4563 = vmatpush1.bf16.msra.mxu0 0
  %4564 = vmatprep.subr.bf16.mxu0 0
  %4565 = vmatpush1.bf16.msra.mxu0 0
  %4566 = vmatprep.subr.bf16.mxu0 0
  %4567 = vmatpush1.bf16.msra.mxu0 0
  %4568 = vmatprep.subr.bf16.mxu0 0
  %4569 = vmatpush1.bf16.msra.mxu0 0
  %4570 = vmatprep.subr.bf16.mxu0 0
  %4571 = vmatpush1.bf16.msra.mxu0 0
  %4572 = vmatprep.subr.bf16.mxu0 0
  %4573 = vmatpush1.bf16.msra.mxu0 0
  %4574 = vmatprep.subr.bf16.mxu0 0
  %4575 = vmatpush1.bf16.msra.mxu0 0
  %4576 = vmatprep.subr.bf16.mxu0 0
  %4577 = vmatpush1.bf16.msra.mxu0 0
  %4578 = vmatprep.subr.bf16.mxu0 0
  %4579 = vmatpush1.bf16.msra.mxu0 0
  %4580 = vmatprep.subr.bf16.mxu0 0
  %4581 = vmatpush1.bf16.msra.mxu0 0
  %4582 = vmatprep.subr.bf16.mxu0 0
  %4583 = vmatpush1.bf16.msra.mxu0 0
  %4584 = vmatprep.subr.bf16.mxu0 0
  %4585 = vmatpush1.bf16.msra.mxu0 0
  %4586 = vmatprep.subr.bf16.mxu0 0
  %4587 = vmatpush1.bf16.msra.mxu0 0
  %4588 = vmatprep.subr.bf16.mxu0 0
  %4589 = vmatpush1.bf16.msra.mxu0 0
  %4590 = vmatprep.mubr.bf16.mxu0 0
  %4591 = vmatmul.mubr.bf16.gmra.mrb[0].mxu0 %v4459
  %v4592 = vpop.f32.mrb[0].mxu0
  %v4593 = vadd.f32 0.0, %v4592
  %v4594 = vpop.f32.mrb[0].mxu0
  %v4595 = vpop.f32.mrb[0].mxu0
  %v4596 = vpop.f32.mrb[0].mxu0
  %4597 = vdwg.mxu0
  %v4598 = vadd.f32 %v4437, %v4511
  %v4599 = vadd.f32 %v4438, %v4513
  %v4600 = vadd.f32 %v4439, %v4552
  %v4601 = vadd.f32 %v4440, %v4554
  %v4602 = vadd.f32 %v4441, %v4593
  %s4603 = scalar_lea.vmem %s18, 5
  %v4604 = vld [vmem:[%s4603] sm:$0x1]
  %4605 = vrot.lane.b32.xlu0 %v3811, 109
  %v4606 = vpop.permute.xlu0 %4605
  %4607 = vrot.lane.b32.xlu0 %v3812, 109
  %v4608 = vpop.permute.xlu0 %4607
  %4609 = vrot.lane.b32.xlu0 %v3813, 109
  %v4610 = vpop.permute.xlu0 %4609
  %4611 = vrot.lane.b32.xlu0 %v3814, 109
  %v4612 = vpop.permute.xlu0 %4611
  %4613 = vrot.lane.b32.xlu0 %v3815, 109
  %v4614 = vpop.permute.xlu0 %4613
  %v4615 = vsel %vm1488, %v4606, %v4608
  %v4616 = vsel %vm1488, %v4608, %v4610
  %v4617 = vsel %vm1488, %v4610, %v4612
  %v4618 = vsel %vm1488, %v4612, %v4614
  %v4620 = vsel %vm3838, %v4604, 0
  %v4623 = vsel %vm3842, %v4615, 0
  %v4626 = vsel %vm3842, %v4616, 0
  %v4629 = vsel %vm3842, %v4617, 0
  %v4632 = vsel %vm3842, %v4618, 0
  %v4635 = vsel %vm3842, %v4614, 0
  %4637 = vmatprep.subr.bf16.mxu0 %v4626
  %4638 = vmatpush1.bf16.msra.mxu0 %v4623
  %4639 = vmatprep.subr.bf16.mxu0 0
  %4640 = vmatpush1.bf16.msra.mxu0 0
  %4641 = vmatprep.subr.bf16.mxu0 0
  %4642 = vmatpush1.bf16.msra.mxu0 0
  %4643 = vmatprep.subr.bf16.mxu0 0
  %4644 = vmatpush1.bf16.msra.mxu0 0
  %4645 = vmatprep.subr.bf16.mxu0 0
  %4646 = vmatpush1.bf16.msra.mxu0 0
  %4647 = vmatprep.subr.bf16.mxu0 0
  %4648 = vmatpush1.bf16.msra.mxu0 0
  %4649 = vmatprep.subr.bf16.mxu0 0
  %4650 = vmatpush1.bf16.msra.mxu0 0
  %4651 = vmatprep.subr.bf16.mxu0 0
  %4652 = vmatpush1.bf16.msra.mxu0 0
  %4653 = vmatprep.subr.bf16.mxu0 0
  %4654 = vmatpush1.bf16.msra.mxu0 0
  %4655 = vmatprep.subr.bf16.mxu0 0
  %4656 = vmatpush1.bf16.msra.mxu0 0
  %4657 = vmatprep.subr.bf16.mxu0 0
  %4658 = vmatpush1.bf16.msra.mxu0 0
  %4659 = vmatprep.subr.bf16.mxu0 0
  %4660 = vmatpush1.bf16.msra.mxu0 0
  %4661 = vmatprep.subr.bf16.mxu0 0
  %4662 = vmatpush1.bf16.msra.mxu0 0
  %4663 = vmatprep.subr.bf16.mxu0 0
  %4664 = vmatpush1.bf16.msra.mxu0 0
  %4665 = vmatprep.subr.bf16.mxu0 0
  %4666 = vmatpush1.bf16.msra.mxu0 0
  %4667 = vmatprep.subr.bf16.mxu0 0
  %4668 = vmatpush1.bf16.msra.mxu0 0
  %4669 = vmatprep.mubr.bf16.mxu0 0
  %4670 = vmatmul.mubr.bf16.gmra.mrb[0].mxu0 %v4620
  %v4671 = vpop.f32.mrb[0].mxu0
  %v4672 = vadd.f32 0.0, %v4671
  %v4673 = vpop.f32.mrb[0].mxu0
  %v4674 = vadd.f32 0.0, %v4673
  %v4675 = vpop.f32.mrb[0].mxu0
  %v4676 = vpop.f32.mrb[0].mxu0
  %4677 = vdwg.mxu0
  %4678 = vmatprep.subr.bf16.mxu0 %v4632
  %4679 = vmatpush1.bf16.msra.mxu0 %v4629
  %4680 = vmatprep.subr.bf16.mxu0 0
  %4681 = vmatpush1.bf16.msra.mxu0 0
  %4682 = vmatprep.subr.bf16.mxu0 0
  %4683 = vmatpush1.bf16.msra.mxu0 0
  %4684 = vmatprep.subr.bf16.mxu0 0
  %4685 = vmatpush1.bf16.msra.mxu0 0
  %4686 = vmatprep.subr.bf16.mxu0 0
  %4687 = vmatpush1.bf16.msra.mxu0 0
  %4688 = vmatprep.subr.bf16.mxu0 0
  %4689 = vmatpush1.bf16.msra.mxu0 0
  %4690 = vmatprep.subr.bf16.mxu0 0
  %4691 = vmatpush1.bf16.msra.mxu0 0
  %4692 = vmatprep.subr.bf16.mxu0 0
  %4693 = vmatpush1.bf16.msra.mxu0 0
  %4694 = vmatprep.subr.bf16.mxu0 0
  %4695 = vmatpush1.bf16.msra.mxu0 0
  %4696 = vmatprep.subr.bf16.mxu0 0
  %4697 = vmatpush1.bf16.msra.mxu0 0
  %4698 = vmatprep.subr.bf16.mxu0 0
  %4699 = vmatpush1.bf16.msra.mxu0 0
  %4700 = vmatprep.subr.bf16.mxu0 0
  %4701 = vmatpush1.bf16.msra.mxu0 0
  %4702 = vmatprep.subr.bf16.mxu0 0
  %4703 = vmatpush1.bf16.msra.mxu0 0
  %4704 = vmatprep.subr.bf16.mxu0 0
  %4705 = vmatpush1.bf16.msra.mxu0 0
  %4706 = vmatprep.subr.bf16.mxu0 0
  %4707 = vmatpush1.bf16.msra.mxu0 0
  %4708 = vmatprep.subr.bf16.mxu0 0
  %4709 = vmatpush1.bf16.msra.mxu0 0
  %4710 = vmatprep.mubr.bf16.mxu0 0
  %4711 = vmatmul.mubr.bf16.gmra.mrb[0].mxu0 %v4620
  %v4712 = vpop.f32.mrb[0].mxu0
  %v4713 = vadd.f32 0.0, %v4712
  %v4714 = vpop.f32.mrb[0].mxu0
  %v4715 = vadd.f32 0.0, %v4714
  %v4716 = vpop.f32.mrb[0].mxu0
  %v4717 = vpop.f32.mrb[0].mxu0
  %4718 = vdwg.mxu0
  %4719 = vmatprep.subr.bf16.mxu0 0
  %4720 = vmatpush1.bf16.msra.mxu0 %v4635
  %4721 = vmatprep.subr.bf16.mxu0 0
  %4722 = vmatpush1.bf16.msra.mxu0 0
  %4723 = vmatprep.subr.bf16.mxu0 0
  %4724 = vmatpush1.bf16.msra.mxu0 0
  %4725 = vmatprep.subr.bf16.mxu0 0
  %4726 = vmatpush1.bf16.msra.mxu0 0
  %4727 = vmatprep.subr.bf16.mxu0 0
  %4728 = vmatpush1.bf16.msra.mxu0 0
  %4729 = vmatprep.subr.bf16.mxu0 0
  %4730 = vmatpush1.bf16.msra.mxu0 0
  %4731 = vmatprep.subr.bf16.mxu0 0
  %4732 = vmatpush1.bf16.msra.mxu0 0
  %4733 = vmatprep.subr.bf16.mxu0 0
  %4734 = vmatpush1.bf16.msra.mxu0 0
  %4735 = vmatprep.subr.bf16.mxu0 0
  %4736 = vmatpush1.bf16.msra.mxu0 0
  %4737 = vmatprep.subr.bf16.mxu0 0
  %4738 = vmatpush1.bf16.msra.mxu0 0
  %4739 = vmatprep.subr.bf16.mxu0 0
  %4740 = vmatpush1.bf16.msra.mxu0 0
  %4741 = vmatprep.subr.bf16.mxu0 0
  %4742 = vmatpush1.bf16.msra.mxu0 0
  %4743 = vmatprep.subr.bf16.mxu0 0
  %4744 = vmatpush1.bf16.msra.mxu0 0
  %4745 = vmatprep.subr.bf16.mxu0 0
  %4746 = vmatpush1.bf16.msra.mxu0 0
  %4747 = vmatprep.subr.bf16.mxu0 0
  %4748 = vmatpush1.bf16.msra.mxu0 0
  %4749 = vmatprep.subr.bf16.mxu0 0
  %4750 = vmatpush1.bf16.msra.mxu0 0
  %4751 = vmatprep.mubr.bf16.mxu0 0
  %4752 = vmatmul.mubr.bf16.gmra.mrb[0].mxu0 %v4620
  %v4753 = vpop.f32.mrb[0].mxu0
  %v4754 = vadd.f32 0.0, %v4753
  %v4755 = vpop.f32.mrb[0].mxu0
  %v4756 = vpop.f32.mrb[0].mxu0
  %v4757 = vpop.f32.mrb[0].mxu0
  %4758 = vdwg.mxu0
  %v4759 = vadd.f32 %v4598, %v4672
  %v4760 = vadd.f32 %v4599, %v4674
  %v4761 = vadd.f32 %v4600, %v4713
  %v4762 = vadd.f32 %v4601, %v4715
  %v4763 = vadd.f32 %v4602, %v4754
  %s4764 = scalar_lea.vmem %s18, 6
  %v4765 = vld [vmem:[%s4764] sm:$0x1]
  %4766 = vrot.lane.b32.xlu0 %v3811, 94
  %v4767 = vpop.permute.xlu0 %4766
  %4768 = vrot.lane.b32.xlu0 %v3812, 94
  %v4769 = vpop.permute.xlu0 %4768
  %4770 = vrot.lane.b32.xlu0 %v3813, 94
  %v4771 = vpop.permute.xlu0 %4770
  %4772 = vrot.lane.b32.xlu0 %v3814, 94
  %v4773 = vpop.permute.xlu0 %4772
  %4774 = vrot.lane.b32.xlu0 %v3815, 94
  %v4775 = vpop.permute.xlu0 %4774
  %v4776 = vsel %vm3222, %v4767, %v4769
  %v4777 = vsel %vm3222, %v4769, %v4771
  %v4778 = vsel %vm3222, %v4771, %v4773
  %v4779 = vsel %vm3222, %v4773, %v4775
  %v4781 = vsel %vm3838, %v4765, 0
  %v4784 = vsel %vm3842, %v4776, 0
  %v4787 = vsel %vm3842, %v4777, 0
  %v4790 = vsel %vm3842, %v4778, 0
  %v4793 = vsel %vm3842, %v4779, 0
  %v4796 = vsel %vm3842, %v4775, 0
  %4798 = vmatprep.subr.bf16.mxu0 %v4787
  %4799 = vmatpush1.bf16.msra.mxu0 %v4784
  %4800 = vmatprep.subr.bf16.mxu0 0
  %4801 = vmatpush1.bf16.msra.mxu0 0
  %4802 = vmatprep.subr.bf16.mxu0 0
  %4803 = vmatpush1.bf16.msra.mxu0 0
  %4804 = vmatprep.subr.bf16.mxu0 0
  %4805 = vmatpush1.bf16.msra.mxu0 0
  %4806 = vmatprep.subr.bf16.mxu0 0
  %4807 = vmatpush1.bf16.msra.mxu0 0
  %4808 = vmatprep.subr.bf16.mxu0 0
  %4809 = vmatpush1.bf16.msra.mxu0 0
  %4810 = vmatprep.subr.bf16.mxu0 0
  %4811 = vmatpush1.bf16.msra.mxu0 0
  %4812 = vmatprep.subr.bf16.mxu0 0
  %4813 = vmatpush1.bf16.msra.mxu0 0
  %4814 = vmatprep.subr.bf16.mxu0 0
  %4815 = vmatpush1.bf16.msra.mxu0 0
  %4816 = vmatprep.subr.bf16.mxu0 0
  %4817 = vmatpush1.bf16.msra.mxu0 0
  %4818 = vmatprep.subr.bf16.mxu0 0
  %4819 = vmatpush1.bf16.msra.mxu0 0
  %4820 = vmatprep.subr.bf16.mxu0 0
  %4821 = vmatpush1.bf16.msra.mxu0 0
  %4822 = vmatprep.subr.bf16.mxu0 0
  %4823 = vmatpush1.bf16.msra.mxu0 0
  %4824 = vmatprep.subr.bf16.mxu0 0
  %4825 = vmatpush1.bf16.msra.mxu0 0
  %4826 = vmatprep.subr.bf16.mxu0 0
  %4827 = vmatpush1.bf16.msra.mxu0 0
  %4828 = vmatprep.subr.bf16.mxu0 0
  %4829 = vmatpush1.bf16.msra.mxu0 0
  %4830 = vmatprep.mubr.bf16.mxu0 0
  %4831 = vmatmul.mubr.bf16.gmra.mrb[0].mxu0 %v4781
  %v4832 = vpop.f32.mrb[0].mxu0
  %v4833 = vadd.f32 0.0, %v4832
  %v4834 = vpop.f32.mrb[0].mxu0
  %v4835 = vadd.f32 0.0, %v4834
  %v4836 = vpop.f32.mrb[0].mxu0
  %v4837 = vpop.f32.mrb[0].mxu0
  %4838 = vdwg.mxu0
  %4839 = vmatprep.subr.bf16.mxu0 %v4793
  %4840 = vmatpush1.bf16.msra.mxu0 %v4790
  %4841 = vmatprep.subr.bf16.mxu0 0
  %4842 = vmatpush1.bf16.msra.mxu0 0
  %4843 = vmatprep.subr.bf16.mxu0 0
  %4844 = vmatpush1.bf16.msra.mxu0 0
  %4845 = vmatprep.subr.bf16.mxu0 0
  %4846 = vmatpush1.bf16.msra.mxu0 0
  %4847 = vmatprep.subr.bf16.mxu0 0
  %4848 = vmatpush1.bf16.msra.mxu0 0
  %4849 = vmatprep.subr.bf16.mxu0 0
  %4850 = vmatpush1.bf16.msra.mxu0 0
  %4851 = vmatprep.subr.bf16.mxu0 0
  %4852 = vmatpush1.bf16.msra.mxu0 0
  %4853 = vmatprep.subr.bf16.mxu0 0
  %4854 = vmatpush1.bf16.msra.mxu0 0
  %4855 = vmatprep.subr.bf16.mxu0 0
  %4856 = vmatpush1.bf16.msra.mxu0 0
  %4857 = vmatprep.subr.bf16.mxu0 0
  %4858 = vmatpush1.bf16.msra.mxu0 0
  %4859 = vmatprep.subr.bf16.mxu0 0
  %4860 = vmatpush1.bf16.msra.mxu0 0
  %4861 = vmatprep.subr.bf16.mxu0 0
  %4862 = vmatpush1.bf16.msra.mxu0 0
  %4863 = vmatprep.subr.bf16.mxu0 0
  %4864 = vmatpush1.bf16.msra.mxu0 0
  %4865 = vmatprep.subr.bf16.mxu0 0
  %4866 = vmatpush1.bf16.msra.mxu0 0
  %4867 = vmatprep.subr.bf16.mxu0 0
  %4868 = vmatpush1.bf16.msra.mxu0 0
  %4869 = vmatprep.subr.bf16.mxu0 0
  %4870 = vmatpush1.bf16.msra.mxu0 0
  %4871 = vmatprep.mubr.bf16.mxu0 0
  %4872 = vmatmul.mubr.bf16.gmra.mrb[0].mxu0 %v4781
  %v4873 = vpop.f32.mrb[0].mxu0
  %v4874 = vadd.f32 0.0, %v4873
  %v4875 = vpop.f32.mrb[0].mxu0
  %v4876 = vadd.f32 0.0, %v4875
  %v4877 = vpop.f32.mrb[0].mxu0
  %v4878 = vpop.f32.mrb[0].mxu0
  %4879 = vdwg.mxu0
  %4880 = vmatprep.subr.bf16.mxu0 0
  %4881 = vmatpush1.bf16.msra.mxu0 %v4796
  %4882 = vmatprep.subr.bf16.mxu0 0
  %4883 = vmatpush1.bf16.msra.mxu0 0
  %4884 = vmatprep.subr.bf16.mxu0 0
  %4885 = vmatpush1.bf16.msra.mxu0 0
  %4886 = vmatprep.subr.bf16.mxu0 0
  %4887 = vmatpush1.bf16.msra.mxu0 0
  %4888 = vmatprep.subr.bf16.mxu0 0
  %4889 = vmatpush1.bf16.msra.mxu0 0
  %4890 = vmatprep.subr.bf16.mxu0 0
  %4891 = vmatpush1.bf16.msra.mxu0 0
  %4892 = vmatprep.subr.bf16.mxu0 0
  %4893 = vmatpush1.bf16.msra.mxu0 0
  %4894 = vmatprep.subr.bf16.mxu0 0
  %4895 = vmatpush1.bf16.msra.mxu0 0
  %4896 = vmatprep.subr.bf16.mxu0 0
  %4897 = vmatpush1.bf16.msra.mxu0 0
  %4898 = vmatprep.subr.bf16.mxu0 0
  %4899 = vmatpush1.bf16.msra.mxu0 0
  %4900 = vmatprep.subr.bf16.mxu0 0
  %4901 = vmatpush1.bf16.msra.mxu0 0
  %4902 = vmatprep.subr.bf16.mxu0 0
  %4903 = vmatpush1.bf16.msra.mxu0 0
  %4904 = vmatprep.subr.bf16.mxu0 0
  %4905 = vmatpush1.bf16.msra.mxu0 0
  %4906 = vmatprep.subr.bf16.mxu0 0
  %4907 = vmatpush1.bf16.msra.mxu0 0
  %4908 = vmatprep.subr.bf16.mxu0 0
  %4909 = vmatpush1.bf16.msra.mxu0 0
  %4910 = vmatprep.subr.bf16.mxu0 0
  %4911 = vmatpush1.bf16.msra.mxu0 0
  %4912 = vmatprep.mubr.bf16.mxu0 0
  %4913 = vmatmul.mubr.bf16.gmra.mrb[0].mxu0 %v4781
  %v4914 = vpop.f32.mrb[0].mxu0
  %v4915 = vadd.f32 0.0, %v4914
  %v4916 = vpop.f32.mrb[0].mxu0
  %v4917 = vpop.f32.mrb[0].mxu0
  %v4918 = vpop.f32.mrb[0].mxu0
  %4919 = vdwg.mxu0
  %v4920 = vadd.f32 %v4759, %v4833
  %v4921 = vadd.f32 %v4760, %v4835
  %v4922 = vadd.f32 %v4761, %v4874
  %v4923 = vadd.f32 %v4762, %v4876
  %v4924 = vadd.f32 %v4763, %v4915
  %s4925 = scalar_lea.vmem %s18, 7
  %v4926 = vld [vmem:[%s4925] sm:$0x1]
  %4927 = vrot.lane.b32.xlu0 %v3811, 93
  %v4928 = vpop.permute.xlu0 %4927
  %4929 = vrot.lane.b32.xlu0 %v3812, 93
  %v4930 = vpop.permute.xlu0 %4929
  %4931 = vrot.lane.b32.xlu0 %v3813, 93
  %v4932 = vpop.permute.xlu0 %4931
  %4933 = vrot.lane.b32.xlu0 %v3814, 93
  %v4934 = vpop.permute.xlu0 %4933
  %4935 = vrot.lane.b32.xlu0 %v3815, 93
  %v4936 = vpop.permute.xlu0 %4935
  %v4937 = vsel %vm3374, %v4928, %v4930
  %v4938 = vsel %vm3374, %v4930, %v4932
  %v4939 = vsel %vm3374, %v4932, %v4934
  %v4940 = vsel %vm3374, %v4934, %v4936
  %v4942 = vsel %vm3838, %v4926, 0
  %v4945 = vsel %vm3842, %v4937, 0
  %v4948 = vsel %vm3842, %v4938, 0
  %v4951 = vsel %vm3842, %v4939, 0
  %v4954 = vsel %vm3842, %v4940, 0
  %v4957 = vsel %vm3842, %v4936, 0
  %4959 = vmatprep.subr.bf16.mxu0 %v4948
  %4960 = vmatpush1.bf16.msra.mxu0 %v4945
  %4961 = vmatprep.subr.bf16.mxu0 0
  %4962 = vmatpush1.bf16.msra.mxu0 0
  %4963 = vmatprep.subr.bf16.mxu0 0
  %4964 = vmatpush1.bf16.msra.mxu0 0
  %4965 = vmatprep.subr.bf16.mxu0 0
  %4966 = vmatpush1.bf16.msra.mxu0 0
  %4967 = vmatprep.subr.bf16.mxu0 0
  %4968 = vmatpush1.bf16.msra.mxu0 0
  %4969 = vmatprep.subr.bf16.mxu0 0
  %4970 = vmatpush1.bf16.msra.mxu0 0
  %4971 = vmatprep.subr.bf16.mxu0 0
  %4972 = vmatpush1.bf16.msra.mxu0 0
  %4973 = vmatprep.subr.bf16.mxu0 0
  %4974 = vmatpush1.bf16.msra.mxu0 0
  %4975 = vmatprep.subr.bf16.mxu0 0
  %4976 = vmatpush1.bf16.msra.mxu0 0
  %4977 = vmatprep.subr.bf16.mxu0 0
  %4978 = vmatpush1.bf16.msra.mxu0 0
  %4979 = vmatprep.subr.bf16.mxu0 0
  %4980 = vmatpush1.bf16.msra.mxu0 0
  %4981 = vmatprep.subr.bf16.mxu0 0
  %4982 = vmatpush1.bf16.msra.mxu0 0
  %4983 = vmatprep.subr.bf16.mxu0 0
  %4984 = vmatpush1.bf16.msra.mxu0 0
  %4985 = vmatprep.subr.bf16.mxu0 0
  %4986 = vmatpush1.bf16.msra.mxu0 0
  %4987 = vmatprep.subr.bf16.mxu0 0
  %4988 = vmatpush1.bf16.msra.mxu0 0
  %4989 = vmatprep.subr.bf16.mxu0 0
  %4990 = vmatpush1.bf16.msra.mxu0 0
  %4991 = vmatprep.mubr.bf16.mxu0 0
  %4992 = vmatmul.mubr.bf16.gmra.mrb[0].mxu0 %v4942
  %v4993 = vpop.f32.mrb[0].mxu0
  %v4994 = vadd.f32 0.0, %v4993
  %v4995 = vpop.f32.mrb[0].mxu0
  %v4996 = vadd.f32 0.0, %v4995
  %v4997 = vpop.f32.mrb[0].mxu0
  %v4998 = vpop.f32.mrb[0].mxu0
  %4999 = vdwg.mxu0
  %5000 = vmatprep.subr.bf16.mxu0 %v4954
  %5001 = vmatpush1.bf16.msra.mxu0 %v4951
  %5002 = vmatprep.subr.bf16.mxu0 0
  %5003 = vmatpush1.bf16.msra.mxu0 0
  %5004 = vmatprep.subr.bf16.mxu0 0
  %5005 = vmatpush1.bf16.msra.mxu0 0
  %5006 = vmatprep.subr.bf16.mxu0 0
  %5007 = vmatpush1.bf16.msra.mxu0 0
  %5008 = vmatprep.subr.bf16.mxu0 0
  %5009 = vmatpush1.bf16.msra.mxu0 0
  %5010 = vmatprep.subr.bf16.mxu0 0
  %5011 = vmatpush1.bf16.msra.mxu0 0
  %5012 = vmatprep.subr.bf16.mxu0 0
  %5013 = vmatpush1.bf16.msra.mxu0 0
  %5014 = vmatprep.subr.bf16.mxu0 0
  %5015 = vmatpush1.bf16.msra.mxu0 0
  %5016 = vmatprep.subr.bf16.mxu0 0
  %5017 = vmatpush1.bf16.msra.mxu0 0
  %5018 = vmatprep.subr.bf16.mxu0 0
  %5019 = vmatpush1.bf16.msra.mxu0 0
  %5020 = vmatprep.subr.bf16.mxu0 0
  %5021 = vmatpush1.bf16.msra.mxu0 0
  %5022 = vmatprep.subr.bf16.mxu0 0
  %5023 = vmatpush1.bf16.msra.mxu0 0
  %5024 = vmatprep.subr.bf16.mxu0 0
  %5025 = vmatpush1.bf16.msra.mxu0 0
  %5026 = vmatprep.subr.bf16.mxu0 0
  %5027 = vmatpush1.bf16.msra.mxu0 0
  %5028 = vmatprep.subr.bf16.mxu0 0
  %5029 = vmatpush1.bf16.msra.mxu0 0
  %5030 = vmatprep.subr.bf16.mxu0 0
  %5031 = vmatpush1.bf16.msra.mxu0 0
  %5032 = vmatprep.mubr.bf16.mxu0 0
  %5033 = vmatmul.mubr.bf16.gmra.mrb[0].mxu0 %v4942
  %v5034 = vpop.f32.mrb[0].mxu0
  %v5035 = vadd.f32 0.0, %v5034
  %v5036 = vpop.f32.mrb[0].mxu0
  %v5037 = vadd.f32 0.0, %v5036
  %v5038 = vpop.f32.mrb[0].mxu0
  %v5039 = vpop.f32.mrb[0].mxu0
  %5040 = vdwg.mxu0
  %5041 = vmatprep.subr.bf16.mxu0 0
  %5042 = vmatpush1.bf16.msra.mxu0 %v4957
  %5043 = vmatprep.subr.bf16.mxu0 0
  %5044 = vmatpush1.bf16.msra.mxu0 0
  %5045 = vmatprep.subr.bf16.mxu0 0
  %5046 = vmatpush1.bf16.msra.mxu0 0
  %5047 = vmatprep.subr.bf16.mxu0 0
  %5048 = vmatpush1.bf16.msra.mxu0 0
  %5049 = vmatprep.subr.bf16.mxu0 0
  %5050 = vmatpush1.bf16.msra.mxu0 0
  %5051 = vmatprep.subr.bf16.mxu0 0
  %5052 = vmatpush1.bf16.msra.mxu0 0
  %5053 = vmatprep.subr.bf16.mxu0 0
  %5054 = vmatpush1.bf16.msra.mxu0 0
  %5055 = vmatprep.subr.bf16.mxu0 0
  %5056 = vmatpush1.bf16.msra.mxu0 0
  %5057 = vmatprep.subr.bf16.mxu0 0
  %5058 = vmatpush1.bf16.msra.mxu0 0
  %5059 = vmatprep.subr.bf16.mxu0 0
  %5060 = vmatpush1.bf16.msra.mxu0 0
  %5061 = vmatprep.subr.bf16.mxu0 0
  %5062 = vmatpush1.bf16.msra.mxu0 0
  %5063 = vmatprep.subr.bf16.mxu0 0
  %5064 = vmatpush1.bf16.msra.mxu0 0
  %5065 = vmatprep.subr.bf16.mxu0 0
  %5066 = vmatpush1.bf16.msra.mxu0 0
  %5067 = vmatprep.subr.bf16.mxu0 0
  %5068 = vmatpush1.bf16.msra.mxu0 0
  %5069 = vmatprep.subr.bf16.mxu0 0
  %5070 = vmatpush1.bf16.msra.mxu0 0
  %5071 = vmatprep.subr.bf16.mxu0 0
  %5072 = vmatpush1.bf16.msra.mxu0 0
  %5073 = vmatprep.mubr.bf16.mxu0 0
  %5074 = vmatmul.mubr.bf16.gmra.mrb[0].mxu0 %v4942
  %v5075 = vpop.f32.mrb[0].mxu0
  %v5076 = vadd.f32 0.0, %v5075
  %v5077 = vpop.f32.mrb[0].mxu0
  %v5078 = vpop.f32.mrb[0].mxu0
  %v5079 = vpop.f32.mrb[0].mxu0
  %5080 = vdwg.mxu0
  %v5081 = vadd.f32 %v4920, %v4994
  %v5082 = vadd.f32 %v4921, %v4996
  %v5083 = vadd.f32 %v4922, %v5035
  %v5084 = vadd.f32 %v4923, %v5037
  %v5085 = vadd.f32 %v4924, %v5076
  %s5086 = scalar_lea.vmem %s18, 8
  %v5087 = vld [vmem:[%s5086] sm:$0x1]
  %5088 = vrot.lane.b32.xlu0 %v3811, 92
  %v5089 = vpop.permute.xlu0 %5088
  %5090 = vrot.lane.b32.xlu0 %v3812, 92
  %v5091 = vpop.permute.xlu0 %5090
  %5092 = vrot.lane.b32.xlu0 %v3813, 92
  %v5093 = vpop.permute.xlu0 %5092
  %5094 = vrot.lane.b32.xlu0 %v3814, 92
  %v5095 = vpop.permute.xlu0 %5094
  %5096 = vrot.lane.b32.xlu0 %v3815, 92
  %v5097 = vpop.permute.xlu0 %5096
  %v5098 = vsel %vm3526, %v5089, %v5091
  %v5099 = vsel %vm3526, %v5091, %v5093
  %v5100 = vsel %vm3526, %v5093, %v5095
  %v5101 = vsel %vm3526, %v5095, %v5097
  %v5103 = vsel %vm3838, %v5087, 0
  %v5106 = vsel %vm3842, %v5098, 0
  %v5109 = vsel %vm3842, %v5099, 0
  %v5112 = vsel %vm3842, %v5100, 0
  %v5115 = vsel %vm3842, %v5101, 0
  %v5118 = vsel %vm3842, %v5097, 0
  %5120 = vmatprep.subr.bf16.mxu0 %v5109
  %5121 = vmatpush1.bf16.msra.mxu0 %v5106
  %5122 = vmatprep.subr.bf16.mxu0 0
  %5123 = vmatpush1.bf16.msra.mxu0 0
  %5124 = vmatprep.subr.bf16.mxu0 0
  %5125 = vmatpush1.bf16.msra.mxu0 0
  %5126 = vmatprep.subr.bf16.mxu0 0
  %5127 = vmatpush1.bf16.msra.mxu0 0
  %5128 = vmatprep.subr.bf16.mxu0 0
  %5129 = vmatpush1.bf16.msra.mxu0 0
  %5130 = vmatprep.subr.bf16.mxu0 0
  %5131 = vmatpush1.bf16.msra.mxu0 0
  %5132 = vmatprep.subr.bf16.mxu0 0
  %5133 = vmatpush1.bf16.msra.mxu0 0
  %5134 = vmatprep.subr.bf16.mxu0 0
  %5135 = vmatpush1.bf16.msra.mxu0 0
  %5136 = vmatprep.subr.bf16.mxu0 0
  %5137 = vmatpush1.bf16.msra.mxu0 0
  %5138 = vmatprep.subr.bf16.mxu0 0
  %5139 = vmatpush1.bf16.msra.mxu0 0
  %5140 = vmatprep.subr.bf16.mxu0 0
  %5141 = vmatpush1.bf16.msra.mxu0 0
  %5142 = vmatprep.subr.bf16.mxu0 0
  %5143 = vmatpush1.bf16.msra.mxu0 0
  %5144 = vmatprep.subr.bf16.mxu0 0
  %5145 = vmatpush1.bf16.msra.mxu0 0
  %5146 = vmatprep.subr.bf16.mxu0 0
  %5147 = vmatpush1.bf16.msra.mxu0 0
  %5148 = vmatprep.subr.bf16.mxu0 0
  %5149 = vmatpush1.bf16.msra.mxu0 0
  %5150 = vmatprep.subr.bf16.mxu0 0
  %5151 = vmatpush1.bf16.msra.mxu0 0
  %5152 = vmatprep.mubr.bf16.mxu0 0
  %5153 = vmatmul.mubr.bf16.gmra.mrb[0].mxu0 %v5103
  %v5154 = vpop.f32.mrb[0].mxu0
  %v5155 = vadd.f32 0.0, %v5154
  %v5156 = vpop.f32.mrb[0].mxu0
  %v5157 = vadd.f32 0.0, %v5156
  %v5158 = vpop.f32.mrb[0].mxu0
  %v5159 = vpop.f32.mrb[0].mxu0
  %5160 = vdwg.mxu0
  %5161 = vmatprep.subr.bf16.mxu0 %v5115
  %5162 = vmatpush1.bf16.msra.mxu0 %v5112
  %5163 = vmatprep.subr.bf16.mxu0 0
  %5164 = vmatpush1.bf16.msra.mxu0 0
  %5165 = vmatprep.subr.bf16.mxu0 0
  %5166 = vmatpush1.bf16.msra.mxu0 0
  %5167 = vmatprep.subr.bf16.mxu0 0
  %5168 = vmatpush1.bf16.msra.mxu0 0
  %5169 = vmatprep.subr.bf16.mxu0 0
  %5170 = vmatpush1.bf16.msra.mxu0 0
  %5171 = vmatprep.subr.bf16.mxu0 0
  %5172 = vmatpush1.bf16.msra.mxu0 0
  %5173 = vmatprep.subr.bf16.mxu0 0
  %5174 = vmatpush1.bf16.msra.mxu0 0
  %5175 = vmatprep.subr.bf16.mxu0 0
  %5176 = vmatpush1.bf16.msra.mxu0 0
  %5177 = vmatprep.subr.bf16.mxu0 0
  %5178 = vmatpush1.bf16.msra.mxu0 0
  %5179 = vmatprep.subr.bf16.mxu0 0
  %5180 = vmatpush1.bf16.msra.mxu0 0
  %5181 = vmatprep.subr.bf16.mxu0 0
  %5182 = vmatpush1.bf16.msra.mxu0 0
  %5183 = vmatprep.subr.bf16.mxu0 0
  %5184 = vmatpush1.bf16.msra.mxu0 0
  %5185 = vmatprep.subr.bf16.mxu0 0
  %5186 = vmatpush1.bf16.msra.mxu0 0
  %5187 = vmatprep.subr.bf16.mxu0 0
  %5188 = vmatpush1.bf16.msra.mxu0 0
  %5189 = vmatprep.subr.bf16.mxu0 0
  %5190 = vmatpush1.bf16.msra.mxu0 0
  %5191 = vmatprep.subr.bf16.mxu0 0
  %5192 = vmatpush1.bf16.msra.mxu0 0
  %5193 = vmatprep.mubr.bf16.mxu0 0
  %5194 = vmatmul.mubr.bf16.gmra.mrb[0].mxu0 %v5103
  %v5195 = vpop.f32.mrb[0].mxu0
  %v5196 = vadd.f32 0.0, %v5195
  %v5197 = vpop.f32.mrb[0].mxu0
  %v5198 = vadd.f32 0.0, %v5197
  %v5199 = vpop.f32.mrb[0].mxu0
  %v5200 = vpop.f32.mrb[0].mxu0
  %5201 = vdwg.mxu0
  %5202 = vmatprep.subr.bf16.mxu0 0
  %5203 = vmatpush1.bf16.msra.mxu0 %v5118
  %5204 = vmatprep.subr.bf16.mxu0 0
  %5205 = vmatpush1.bf16.msra.mxu0 0
  %5206 = vmatprep.subr.bf16.mxu0 0
  %5207 = vmatpush1.bf16.msra.mxu0 0
  %5208 = vmatprep.subr.bf16.mxu0 0
  %5209 = vmatpush1.bf16.msra.mxu0 0
  %5210 = vmatprep.subr.bf16.mxu0 0
  %5211 = vmatpush1.bf16.msra.mxu0 0
  %5212 = vmatprep.subr.bf16.mxu0 0
  %5213 = vmatpush1.bf16.msra.mxu0 0
  %5214 = vmatprep.subr.bf16.mxu0 0
  %5215 = vmatpush1.bf16.msra.mxu0 0
  %5216 = vmatprep.subr.bf16.mxu0 0
  %5217 = vmatpush1.bf16.msra.mxu0 0
  %5218 = vmatprep.subr.bf16.mxu0 0
  %5219 = vmatpush1.bf16.msra.mxu0 0
  %5220 = vmatprep.subr.bf16.mxu0 0
  %5221 = vmatpush1.bf16.msra.mxu0 0
  %5222 = vmatprep.subr.bf16.mxu0 0
  %5223 = vmatpush1.bf16.msra.mxu0 0
  %5224 = vmatprep.subr.bf16.mxu0 0
  %5225 = vmatpush1.bf16.msra.mxu0 0
  %5226 = vmatprep.subr.bf16.mxu0 0
  %5227 = vmatpush1.bf16.msra.mxu0 0
  %5228 = vmatprep.subr.bf16.mxu0 0
  %5229 = vmatpush1.bf16.msra.mxu0 0
  %5230 = vmatprep.subr.bf16.mxu0 0
  %5231 = vmatpush1.bf16.msra.mxu0 0
  %5232 = vmatprep.subr.bf16.mxu0 0
  %5233 = vmatpush1.bf16.msra.mxu0 0
  %5234 = vmatprep.mubr.bf16.mxu0 0
  %5235 = vmatmul.mubr.bf16.gmra.mrb[0].mxu0 %v5103
  %v5236 = vpop.f32.mrb[0].mxu0
  %v5237 = vadd.f32 0.0, %v5236
  %v5238 = vpop.f32.mrb[0].mxu0
  %v5239 = vpop.f32.mrb[0].mxu0
  %v5240 = vpop.f32.mrb[0].mxu0
  %5241 = vdwg.mxu0
  %v5242 = vadd.f32 %v5081, %v5155
  %v5243 = vadd.f32 %v5082, %v5157
  %v5244 = vadd.f32 %v5083, %v5196
  %v5245 = vadd.f32 %v5084, %v5198
  %v5246 = vadd.f32 %v5085, %v5237
  %v5247 = vld [vmem:[#allocation3] sm:$0x1]
  %5249 = vset.pattern.permute.xlu0 0
  %5250 = vperm.xlu0 %5249, %v5247
  %v5251 = vpop.permute.xlu0 %5250
  %v5253 = vlaneseq
  %v5254 = vshrl.u32 %v5253, 7
  %v5255 = vsub.s32 0, %v5254
  %v5256 = vrot.slane %v5251, %v5255
  %v5257 = vadd.f32 %v5242, %v5256
  %v5258 = vadd.f32 %v5243, %v5256
  %v5259 = vadd.f32 %v5244, %v5256
  %v5260 = vadd.f32 %v5245, %v5256
  %v5261 = vadd.f32 %v5246, %v5256
  %v5262 = vtanh.pop %v5257
  %v5263 = vtanh.pop %v5258
  %v5264 = vtanh.pop %v5259
  %v5265 = vtanh.pop %v5260
  %v5266 = vtanh.pop %v5261
  %v5267 = vld [vmem:[%s21] sm:$0x1f]
  %v5269 = vlaneseq
  %v5270 = vshrl.u32 %v5269, 7
  %v5271 = vsub.s32 0, %v5270
  %v5272 = vrot.slane %v5267, %v5271
  %v5273 = vlaneseq
  %v5274 = vshrl.u32 %v5273, 7
  %v5275 = vsub.s32 1, %v5274
  %v5276 = vrot.slane %v5267, %v5275
  %v5277 = vlaneseq
  %v5278 = vshrl.u32 %v5277, 7
  %v5279 = vsub.s32 2, %v5278
  %v5280 = vrot.slane %v5267, %v5279
  %v5281 = vlaneseq
  %v5282 = vshrl.u32 %v5281, 7
  %v5283 = vsub.s32 3, %v5282
  %v5284 = vrot.slane %v5267, %v5283
  %v5285 = vlaneseq
  %v5286 = vshrl.u32 %v5285, 7
  %v5287 = vsub.s32 4, %v5286
  %v5288 = vrot.slane %v5267, %v5287
  %v5294 = vmul.f32 %v5262, %v5272
  %v5295 = vmul.f32 %v5263, %v5276
  %v5296 = vmul.f32 %v5264, %v5280
  %v5297 = vmul.f32 %v5265, %v5284
  %v5298 = vmul.f32 %v5266, %v5288
  %v5299 = vsel %vm668, %v5294, 0.0
  %v5300 = vsel %vm668, %v5295, 0.0
  %v5301 = vadd.f32 %v5299, %v5300
  %v5302 = vsel %vm668, %v5296, 0.0
  %v5303 = vadd.f32 %v5301, %v5302
  %v5304 = vsel %vm668, %v5297, 0.0
  %v5305 = vadd.f32 %v5303, %v5304
  %vm5306 = vcmask 532480
  %v5307 = vsel %vm5306, %v5298, 0.0
  %v5308 = vadd.f32 %v5305, %v5307
  %5309 = vadd.xlane.f32.xlu0 %v5308
  %v5310 = vpop.xlane.xlu0 %5309
  %v5311 = vmul.f32 %v5294, %v5294
  %v5312 = vmul.f32 %v5295, %v5295
  %v5313 = vmul.f32 %v5296, %v5296
  %v5314 = vmul.f32 %v5297, %v5297
  %v5315 = vmul.f32 %v5298, %v5298
  %v5316 = vsel %vm668, %v5311, 0.0
  %v5317 = vsel %vm668, %v5312, 0.0
  %v5318 = vadd.f32 %v5316, %v5317
  %v5319 = vsel %vm668, %v5313, 0.0
  %v5320 = vadd.f32 %v5318, %v5319
  %v5321 = vsel %vm668, %v5314, 0.0
  %v5322 = vadd.f32 %v5320, %v5321
  %v5323 = vsel %vm5306, %v5315, 0.0
  %v5324 = vadd.f32 %v5322, %v5323
  %5325 = vadd.xlane.f32.xlu0 %v5324
  %v5326 = vpop.xlane.xlu0 %5325
  %v5327 = vmul.f32 %v5310, 0.001953125
  %v5328 = vmul.f32 %v5326, 0.001953125
  %v5329 = vmul.f32 %v5327, %v5327
  %v5330 = vsub.f32 %v5328, %v5329
  %v5331 = vadd.f32 %v5330, 1e-05
  %v5332 = vrsqrt.pop %v5331
  %v5333 = vsub.f32 %v5262, %v5327
  %v5334 = vsub.f32 %v5263, %v5327
  %v5335 = vsub.f32 %v5264, %v5327
  %v5336 = vsub.f32 %v5265, %v5327
  %v5337 = vsub.f32 %v5266, %v5327
  %v5338 = vmul.f32 %v5333, %v5332
  %v5339 = vmul.f32 %v5334, %v5332
  %v5340 = vmul.f32 %v5335, %v5332
  %v5341 = vmul.f32 %v5336, %v5332
  %v5342 = vmul.f32 %v5337, %v5332
  %v5348 = vcombine.low %v5338, %v5339
  %v5349 = vcombine.low %v5340, %v5341
  %v5351 = vunpack.c.l.s4 1966171168
  %v5352 = vunpack.c.0.s8 %v5351
  %v5353 = vlaneseq
  %v5354 = vshrl.u32 %v5353, 7
  %v5355 = vsub.s32 %v5352, %v5354
  %v5356 = vrot.slane %v5348, %v5355
  %v5358 = vunpack.c.l.s4 1966171168
  %v5359 = vunpack.c.0.s8 %v5358
  %v5360 = vlaneseq
  %v5361 = vshrl.u32 %v5360, 7
  %v5362 = vsub.s32 %v5359, %v5361
  %v5363 = vrot.slane %v5349, %v5362
  %v5365 = vunpack.c.l.s4 1966171168
  %v5366 = vunpack.c.0.s8 %v5365
  %v5367 = vlaneseq
  %v5368 = vshrl.u32 %v5367, 7
  %v5369 = vsub.s32 %v5366, %v5368
  %v5370 = vrot.slane %v5342, %v5369
  %v5371 = vcombine.low %v5356, %v5363
  %v5373 = vunpack.c.l.s4 1966171168
  %v5374 = vunpack.c.0.s8 %v5373
  %v5375 = vlaneseq
  %v5376 = vshrl.u32 %v5375, 7
  %v5377 = vsub.s32 %v5374, %v5376
  %v5378 = vrot.slane %v5371, %v5377
  %v5380 = vunpack.c.l.s4 1966171168
  %v5381 = vunpack.c.0.s8 %v5380
  %v5382 = vlaneseq
  %v5383 = vshrl.u32 %v5382, 7
  %v5384 = vsub.s32 %v5381, %v5383
  %v5385 = vrot.slane %v5370, %v5384
  %v5386 = vcombine.low %v5378, %v5385
  %v5388 = vlaneseq
  %vm5389 = vcmp.ge.s32.totalorder %v5388, 0
  %vm5390 = vcmp.lt.s32.totalorder %v5388, 578
  %vm5391 = vmand %vm5389, %vm5390
  %5392 = vst.msk [vmem:[%s22] sm:$0x1f] %vm5391, %v5386
  // Predicated region
  $region90: #{generator_forward.1} parent=0 // pred_check
    _
  $region91: #{generator_forward.1} parent=0 // pred_check_branch
    %5394 = sbr.rel (0) target = $region93
  $region92: #{generator_forward.1} parent=0 // pred_region
    _
  $region93: #{generator_forward.1} parent=0 // pred_fallthru
    _
  // Predicated region
  $region94: #{generator_forward.1} parent=0 // pred_check
    _
  $region95: #{generator_forward.1} parent=0 // pred_check_branch
    %5396 = sbr.rel (0) target = $region97
  $region96: #{generator_forward.1} parent=0 // pred_region
    _
  $region97: #{generator_forward.1} parent=0 // pred_fallthru
    _

</llo_original>
